<compile_context>
chip_gen: v7x
topology: tpu7x:2x2x1
jax: 0.10.0
libtpu: 0.0.40
codegen_flags: <defaults>
</compile_context>

<pallas_src>
import functools

import jax
import jax.numpy as jnp
from jax.experimental import pallas as pl
from jax.experimental.pallas import tpu as pltpu


def _round_up(x, m):
    return (x + m - 1) // m * m


# -----------------------------------------------------------------------------
# Kernel 1: fused BatchNorm + LeakyReLU + 3x3x1 / stride-(2,2,1) conv (main
# branch) and fused BatchNorm + 1x1x1 / stride-(2,2,1) conv (residual branch).
# Input is the padded, even/odd phase-split activation (4, Hq, Wq, Cin) per
# (batch*depth) slab; one program per slab (D folded into batch).
# -----------------------------------------------------------------------------
def _conv_kernel(xph_ref, mask_ref, w_ref, b_ref, s_ref, t_ref,
                 wres_ref, bres_ref, sres_ref, tres_ref,
                 o_ref, ores_ref, *, Ho, Wo, neg_slope):
    x = xph_ref[...].astype(jnp.float32)                 # (4, Hq, Wq, Cin)
    cin = x.shape[-1]

    # residual branch: BN_res affine on the (always valid) centre tap, no act,
    # then the 1x1x1 conv as a plain (Ho*Wo, Cin) @ (Cin, Cout) dot.
    centre = x[3, 0:Ho, 0:Wo, :]
    res_in = (centre * sres_ref[...] + tres_ref[...]).reshape(Ho * Wo, cin)
    res = jnp.dot(res_in.astype(jnp.bfloat16), wres_ref[...],
                  preferred_element_type=jnp.float32) + bres_ref[...]
    ores_ref[0] = res.astype(ores_ref.dtype)

    # main branch: BN + LeakyReLU + conv zero-padding mask applied ONCE.
    a = x * s_ref[...] + t_ref[...]
    a = jnp.where(a >= 0.0, a, neg_slope * a)
    a = a * mask_ref[...]

    # gather the 9 taps into a single (Ho*Wo, 9*Cin) operand -> one MXU dot.
    taps = []
    for kh in range(3):
        for kw in range(3):
            p = (kh % 2) * 2 + (kw % 2)
            taps.append(
                a[p, kh // 2:kh // 2 + Ho, kw // 2:kw // 2 + Wo, :]
                .reshape(Ho * Wo, cin))
    patch = jnp.concatenate(taps, axis=-1).astype(jnp.bfloat16)
    acc = jnp.dot(patch, w_ref[...], preferred_element_type=jnp.float32)
    o_ref[0] = (acc + b_ref[...]).astype(o_ref.dtype)


def conv_dual_branch(x, params, scale, shift, scale_r, shift_r, *,
                     negative_slope):
    """x: (B, Cin, H, W, D) f32.  Returns (main, res), each (B*D, Ho*Wo, Cout)
    in bf16."""
    B, Cin, H, W, D = x.shape
    Cout = params["conv_w"].shape[0]
    Ho = (H - 1) // 2 + 1
    Wo = (W - 1) // 2 + 1
    Hq = (H + 3) // 2
    Wq = (W + 3) // 2
    BD = B * D

    # channels-last, D folded into batch, pad + even/odd phase split (bf16).
    x_bd = x.transpose(0, 4, 2, 3, 1).reshape(BD, H, W, Cin)
    xp = jnp.pad(x_bd, ((0, 0), (1, 2 * Hq - H - 1),
                        (1, 2 * Wq - W - 1), (0, 0)))
    xph = xp.reshape(BD, Hq, 2, Wq, 2, Cin).transpose(0, 2, 4, 1, 3, 5)
    xph = xph.reshape(BD * 4, Hq, Wq, Cin).astype(jnp.bfloat16)

    # conv zero-padding validity mask per phase (computed once on the host).
    rows = jnp.arange(Hq)
    cols = jnp.arange(Wq)
    masks = []
    for p in range(4):
        ph, pw = p // 2, p % 2
        rv = (2 * rows + ph >= 1) & (2 * rows + ph <= H)
        cv = (2 * cols + pw >= 1) & (2 * cols + pw <= W)
        masks.append(rv[:, None] & cv[None, :])
    mask = jnp.stack(masks).astype(jnp.float32)[..., None]   # (4, Hq, Wq, 1)

    # packed conv weight: rows ordered (kh, kw, cin) to match the tap gather.
    w9 = (params["conv_w"][..., 0].transpose(2, 3, 1, 0)
          .reshape(9 * Cin, Cout).astype(jnp.bfloat16))
    w_res = params["conv_res_w"].reshape(Cout, Cin).T.astype(jnp.bfloat16)

    kern = functools.partial(_conv_kernel, Ho=Ho, Wo=Wo,
                             neg_slope=negative_slope)
    out_main, out_res = pl.pallas_call(
        kern,
        out_shape=(jax.ShapeDtypeStruct((BD, Ho * Wo, Cout), jnp.bfloat16),
                   jax.ShapeDtypeStruct((BD, Ho * Wo, Cout), jnp.bfloat16)),
        grid=(BD,),
        in_specs=[
            pl.BlockSpec((4, Hq, Wq, Cin), lambda i: (i, 0, 0, 0)),
            pl.BlockSpec((4, Hq, Wq, 1), lambda i: (0, 0, 0, 0)),  # resident
            pl.BlockSpec((9 * Cin, Cout), lambda i: (0, 0)),       # resident
            pl.BlockSpec((1, Cout), lambda i: (0, 0)),
            pl.BlockSpec((1, Cin), lambda i: (0, 0)),
            pl.BlockSpec((1, Cin), lambda i: (0, 0)),
            pl.BlockSpec((Cin, Cout), lambda i: (0, 0)),
            pl.BlockSpec((1, Cout), lambda i: (0, 0)),
            pl.BlockSpec((1, Cin), lambda i: (0, 0)),
            pl.BlockSpec((1, Cin), lambda i: (0, 0)),
        ],
        out_specs=(pl.BlockSpec((1, Ho * Wo, Cout), lambda i: (i, 0, 0)),
                   pl.BlockSpec((1, Ho * Wo, Cout), lambda i: (i, 0, 0))),
        compiler_params=pltpu.CompilerParams(
            dimension_semantics=("parallel",)),
    )(xph, mask, w9,
      params["conv_b"].reshape(1, Cout).astype(jnp.float32),
      scale.reshape(1, Cin).astype(jnp.float32),
      shift.reshape(1, Cin).astype(jnp.float32),
      w_res,
      params["conv_res_b"].reshape(1, Cout).astype(jnp.float32),
      scale_r.reshape(1, Cin).astype(jnp.float32),
      shift_r.reshape(1, Cin).astype(jnp.float32))
    return out_main, out_res


# -----------------------------------------------------------------------------
# Kernel 2: fully fused SIA stage per block of windows:
#   LayerNorm -> QKV matmul -> per-head attention (resident instruction K/V,
#   key axis padded to 128) -> output projection + both residual adds.
# -----------------------------------------------------------------------------
def _sia_kernel(xw_ref, rw_ref, g_ref, bt_ref, wqkv_ref, bqkv_ref,
                kin_ref, vin_ref, kbias_ref, wp_ref, bp_ref, o_ref,
                *, heads, eps):
    Wb, wtok, C = xw_ref.shape
    d = C // heads
    n_kpad = kin_ref.shape[1]

    x = xw_ref[...].astype(jnp.float32)                    # (Wb, wtok, C)
    mu = jnp.mean(x, axis=-1, keepdims=True)
    var = jnp.mean(jnp.square(x - mu), axis=-1, keepdims=True)
    ln = (x - mu) * jax.lax.rsqrt(var + eps) * g_ref[...] + bt_ref[...]
    qkv = jnp.dot(ln.reshape(Wb * wtok, C).astype(jnp.bfloat16),
                  wqkv_ref[...],
                  preferred_element_type=jnp.float32) + bqkv_ref[...]

    kin = kin_ref[...]                                     # (heads, n_kpad, d)
    vin = vin_ref[...]
    kbias = kbias_ref[...]                                 # (heads, Tk)

    outs = []
    for h in range(heads):
        q = qkv[:, h * d:(h + 1) * d].reshape(Wb, wtok, d).astype(jnp.bfloat16)
        kw_ = (qkv[:, C + h * d:C + (h + 1) * d]
               .reshape(Wb, wtok, d).astype(jnp.bfloat16))
        vw_ = (qkv[:, 2 * C + h * d:2 * C + (h + 1) * d]
               .reshape(Wb, wtok, d).astype(jnp.bfloat16))
        k = jnp.concatenate(
            [kw_, jnp.broadcast_to(kin[h][None], (Wb, n_kpad, d))], axis=1)
        v = jnp.concatenate(
            [vw_, jnp.broadcast_to(vin[h][None], (Wb, n_kpad, d))], axis=1)
        s = jnp.einsum('wqd,wkd->wqk', q, k,
                       preferred_element_type=jnp.float32)
        s = s + kbias[h:h + 1][None]                       # (1, 1, Tk)
        m = jnp.max(s, axis=-1, keepdims=True)
        p = jnp.exp(s - m)
        l = jnp.sum(p, axis=-1, keepdims=True)
        o = jnp.einsum('wqk,wkd->wqd', p.astype(jnp.bfloat16), v,
                       preferred_element_type=jnp.float32)
        outs.append(o * pl.reciprocal(l, approx=True))
    attn = jnp.concatenate(outs, axis=-1).reshape(Wb * wtok, C)

    y = (jnp.dot(attn.astype(jnp.bfloat16), wp_ref[...],
                 preferred_element_type=jnp.float32)
         + bp_ref[...]
         + x.reshape(Wb * wtok, C)
         + rw_ref[...].astype(jnp.float32).reshape(Wb * wtok, C))
    o_ref[...] = y.reshape(Wb, wtok, C).astype(o_ref.dtype)


def _pick_window_block(nW, wtok, C):
    """Largest Wb dividing nW with >= 2 grid blocks (v7x 2-TC) and a modest
    per-block qkv VMEM footprint."""
    budget = 6 << 20
    for wb in (128, 64, 32, 16, 8, 4, 2):
        if nW % wb == 0 and nW // wb >= 2 and wb * wtok * 3 * C * 4 <= budget:
            return wb
    return 1


def sia_stage(params, xw, rw, label_indices, *, heads, eps=1e-5):
    """xw, rw: (nW, wtok, C) bf16 window tokens / outer residual tokens."""
    nW, wtok, C = xw.shape
    d = C // heads
    scale = 1.0 / (d ** 0.5)

    instr = params["instr_emb"]                  # (n_instr, tpi, C)
    ibias = params["instr_bias"]                 # (heads, n_instr, tpi)
    if label_indices is not None:
        instr = instr[label_indices]
        ibias = ibias[:, label_indices]
    n_i = instr.shape[0] * instr.shape[1]
    instr_tok = instr.reshape(n_i, C).astype(jnp.float32)

    # instruction K/V projected ONCE (tiny host matmul), head-major layout.
    mu = instr_tok.mean(-1, keepdims=True)
    var = jnp.mean(jnp.square(instr_tok - mu), -1, keepdims=True)
    ln_i = ((instr_tok - mu) * jax.lax.rsqrt(var + eps)
            * params["ln_gamma"] + params["ln_beta"])
    qkv_i = ln_i @ params["w_qkv"].astype(jnp.float32) + params["b_qkv"]
    k_i = qkv_i[:, C:2 * C].reshape(n_i, heads, d).transpose(1, 0, 2)
    v_i = qkv_i[:, 2 * C:].reshape(n_i, heads, d).transpose(1, 0, 2)

    # pad the key axis to a lane-dense multiple of 128 (-1e30 bias on pads).
    Tk = _round_up(wtok + n_i, 128)
    n_kpad = Tk - wtok
    k_i = jnp.pad(k_i, ((0, 0), (0, n_kpad - n_i), (0, 0))).astype(jnp.bfloat16)
    v_i = jnp.pad(v_i, ((0, 0), (0, n_kpad - n_i), (0, 0))).astype(jnp.bfloat16)
    content = jnp.broadcast_to(params["content_bias"][:, None], (heads, wtok))
    key_bias = jnp.concatenate(
        [content, ibias.reshape(heads, n_i),
         jnp.full((heads, n_kpad - n_i), -1e30, jnp.float32)],
        axis=1).astype(jnp.float32)

    # fold the 1/sqrt(d) query scale into the q columns of w_qkv / b_qkv.
    w_qkv = params["w_qkv"].astype(jnp.float32)
    b_qkv = params["b_qkv"].astype(jnp.float32)
    w_qkv = jnp.concatenate([w_qkv[:, :C] * scale, w_qkv[:, C:]], axis=1)
    b_qkv = jnp.concatenate([b_qkv[:C] * scale, b_qkv[C:]])

    Wb = _pick_window_block(nW, wtok, C)
    kern = functools.partial(_sia_kernel, heads=heads, eps=eps)
    return pl.pallas_call(
        kern,
        out_shape=jax.ShapeDtypeStruct((nW, wtok, C), jnp.float32),
        grid=(nW // Wb,),
        in_specs=[
            pl.BlockSpec((Wb, wtok, C), lambda i: (i, 0, 0)),
            pl.BlockSpec((Wb, wtok, C), lambda i: (i, 0, 0)),
            pl.BlockSpec((1, C), lambda i: (0, 0)),            # resident
            pl.BlockSpec((1, C), lambda i: (0, 0)),
            pl.BlockSpec((C, 3 * C), lambda i: (0, 0)),
            pl.BlockSpec((1, 3 * C), lambda i: (0, 0)),
            pl.BlockSpec((heads, n_kpad, d), lambda i: (0, 0, 0)),
            pl.BlockSpec((heads, n_kpad, d), lambda i: (0, 0, 0)),
            pl.BlockSpec((heads, Tk), lambda i: (0, 0)),
            pl.BlockSpec((C, C), lambda i: (0, 0)),
            pl.BlockSpec((1, C), lambda i: (0, 0)),
        ],
        out_specs=pl.BlockSpec((Wb, wtok, C), lambda i: (i, 0, 0)),
        compiler_params=pltpu.CompilerParams(
            dimension_semantics=("parallel",)),
    )(xw, rw,
      params["ln_gamma"].reshape(1, C).astype(jnp.float32),
      params["ln_beta"].reshape(1, C).astype(jnp.float32),
      w_qkv.astype(jnp.bfloat16),
      b_qkv.reshape(1, 3 * C),
      k_i, v_i, key_bias,
      params["w_proj"].astype(jnp.bfloat16),
      params["b_proj"].reshape(1, C).astype(jnp.float32))


# -----------------------------------------------------------------------------
# Window (un)partition helpers (channels-last, (B, D, Ho, Wo, C) layout).
# -----------------------------------------------------------------------------
def _window_partition(x, window_size):
    B, D, Ho, Wo, C = x.shape
    wh, ww, wd = window_size
    nwh, nww, nwd = Ho // wh, Wo // ww, D // wd
    x = x.reshape(B, nwd, wd, nwh, wh, nww, ww, C)
    x = x.transpose(0, 1, 3, 5, 4, 6, 2, 7)
    return x.reshape(B * nwd * nwh * nww, wh * ww * wd, C)


def _window_unpartition(y, window_size, B, D, Ho, Wo):
    wh, ww, wd = window_size
    nwh, nww, nwd = Ho // wh, Wo // ww, D // wd
    C = y.shape[-1]
    y = y.reshape(B, nwd, nwh, nww, wh, ww, wd, C)
    y = y.transpose(0, 1, 6, 2, 4, 3, 5, 7)
    return y.reshape(B, D, Ho, Wo, C)


# -----------------------------------------------------------------------------
# Full forward pass.
# -----------------------------------------------------------------------------
def deep_sia_res_block_forward(params, x, label_indices=None, *,
                               heads=4, window_size=(8, 8, 1),
                               negative_slope=0.01):
    B, Cin, H, W, D = x.shape
    x = x.astype(jnp.float32)

    # BatchNorm statistics (training mode, biased variance); both branch
    # norms see the same input -> shared stats, per-branch gamma/beta.
    mean = x.mean(axis=(0, 2, 3, 4))
    var = x.var(axis=(0, 2, 3, 4))
    inv = jax.lax.rsqrt(var + 1e-5)
    scale = params["norm_gamma"] * inv
    shift = params["norm_beta"] - mean * scale
    scale_r = params["norm_res_gamma"] * inv
    shift_r = params["norm_res_beta"] - mean * scale_r

    Ho = (H - 1) // 2 + 1
    Wo = (W - 1) // 2 + 1
    Cout = params["conv_w"].shape[0]

    conv_main, conv_res = conv_dual_branch(
        x, params, scale, shift, scale_r, shift_r,
        negative_slope=negative_slope)

    xw = _window_partition(conv_main.reshape(B, D, Ho, Wo, Cout), window_size)
    rw = _window_partition(conv_res.reshape(B, D, Ho, Wo, Cout), window_size)

    y = sia_stage(params, xw, rw, label_indices, heads=heads)
    y5 = _window_unpartition(y, window_size, B, D, Ho, Wo)
    return y5.transpose(0, 4, 2, 3, 1)                 # (B, Cout, Ho, Wo, D)


def init_params(key, cin, cout, pool, tpi, heads, separate_background=True):
    ks = jax.random.split(key, 9)
    n_instr = pool + (1 if separate_background else 0)
    return {
        "norm_gamma": jnp.ones((cin,), jnp.float32),
        "norm_beta": jnp.zeros((cin,), jnp.float32),
        "norm_res_gamma": jnp.ones((cin,), jnp.float32),
        "norm_res_beta": jnp.zeros((cin,), jnp.float32),
        "conv_w": 0.1 * jax.random.normal(ks[0], (cout, cin, 3, 3, 1), jnp.float32),
        "conv_b": 0.1 * jax.random.normal(ks[1], (cout,), jnp.float32),
        "conv_res_w": 0.1 * jax.random.normal(ks[2], (cout, cin, 1, 1, 1), jnp.float32),
        "conv_res_b": 0.1 * jax.random.normal(ks[3], (cout,), jnp.float32),
        "instr_emb": 0.1 * jax.random.normal(ks[4], (n_instr, tpi, cout), jnp.float32),
        "ln_gamma": jnp.ones((cout,), jnp.float32),
        "ln_beta": jnp.zeros((cout,), jnp.float32),
        "w_qkv": 0.1 * jax.random.normal(ks[5], (cout, 3 * cout), jnp.float32),
        "b_qkv": jnp.zeros((3 * cout,), jnp.float32),
        "w_proj": 0.1 * jax.random.normal(ks[6], (cout, cout), jnp.float32),
        "b_proj": jnp.zeros((cout,), jnp.float32),
        "instr_bias": 0.02 * jax.random.normal(ks[7], (heads, n_instr, tpi), jnp.float32),
        "content_bias": 0.02 * jax.random.normal(ks[8], (heads,), jnp.float32),
    }


if __name__ == "__main__":
    B, Cin, Cout = 2, 4, 8
    H, W, D = 16, 16, 1
    pool, tpi, heads = 3, 2, 4

    key = jax.random.PRNGKey(0)
    kx, kp = jax.random.split(key)
    x = jax.random.normal(kx, (B, Cin, H, W, D), jnp.float32)
    params = init_params(kp, Cin, Cout, pool, tpi, heads)

    fwd = jax.jit(functools.partial(deep_sia_res_block_forward,
                                    heads=heads, window_size=(8, 8, 1)))
    out = fwd(params, x)
    out = jax.block_until_ready(out)
    assert out.shape == (B, Cout, H // 2, W // 2, D), out.shape
    assert bool(jnp.all(jnp.isfinite(out)))
    print("KERNEL_OK")
</pallas_src>

<mosaic_0001>
module attributes {stable_mosaic.version = 11 : i64} {
  func.func @_conv_kernel(%arg0: i32, %arg1: memref<4x9x9x4xbf16, #tpu.memory_space<vmem>>, %arg2: memref<4x9x9x1xf32, #tpu.memory_space<vmem>>, %arg3: memref<36x8xbf16, #tpu.memory_space<vmem>>, %arg4: memref<1x8xf32, #tpu.memory_space<vmem>>, %arg5: memref<1x4xf32, #tpu.memory_space<vmem>>, %arg6: memref<1x4xf32, #tpu.memory_space<vmem>>, %arg7: memref<4x8xbf16, #tpu.memory_space<vmem>>, %arg8: memref<1x8xf32, #tpu.memory_space<vmem>>, %arg9: memref<1x4xf32, #tpu.memory_space<vmem>>, %arg10: memref<1x4xf32, #tpu.memory_space<vmem>>, %arg11: memref<1x64x8xbf16, #tpu.memory_space<vmem>>, %arg12: memref<1x64x8xbf16, #tpu.memory_space<vmem>>) attributes {dimension_semantics = [#tpu.dimension_semantics<parallel>], iteration_bounds = array<i64: 2>, scalar_prefetch = 0 : i64, scratch_operands = 0 : i64, tpu.core_type = #tpu.core_type<tc>, window_params = [{transform_indices = @transform_0, window_bounds = array<i64: 4, 9, 9, 4>}, {pipeline_mode = #tpu.pipeline_mode<synchronous>, transform_indices = @transform_1, window_bounds = array<i64: 4, 9, 9, 1>}, {pipeline_mode = #tpu.pipeline_mode<synchronous>, transform_indices = @transform_2, window_bounds = array<i64: 36, 8>}, {pipeline_mode = #tpu.pipeline_mode<synchronous>, transform_indices = @transform_3, window_bounds = array<i64: 1, 8>}, {pipeline_mode = #tpu.pipeline_mode<synchronous>, transform_indices = @transform_4, window_bounds = array<i64: 1, 4>}, {pipeline_mode = #tpu.pipeline_mode<synchronous>, transform_indices = @transform_5, window_bounds = array<i64: 1, 4>}, {pipeline_mode = #tpu.pipeline_mode<synchronous>, transform_indices = @transform_6, window_bounds = array<i64: 4, 8>}, {pipeline_mode = #tpu.pipeline_mode<synchronous>, transform_indices = @transform_7, window_bounds = array<i64: 1, 8>}, {pipeline_mode = #tpu.pipeline_mode<synchronous>, transform_indices = @transform_8, window_bounds = array<i64: 1, 4>}, {pipeline_mode = #tpu.pipeline_mode<synchronous>, transform_indices = @transform_9, window_bounds = array<i64: 1, 4>}, {transform_indices = @transform_10, window_bounds = array<i64: 1, 64, 8>}, {transform_indices = @transform_11, window_bounds = array<i64: 1, 64, 8>}]} {
    %c0 = arith.constant 0 : index
    %c0_0 = arith.constant 0 : index
    %c0_1 = arith.constant 0 : index
    %c0_2 = arith.constant 0 : index
    %0 = vector.load %arg1[%c0, %c0_0, %c0_1, %c0_2] : memref<4x9x9x4xbf16, #tpu.memory_space<vmem>>, vector<4x9x9x4xbf16>
    %1 = arith.extf %0 : vector<4x9x9x4xbf16> to vector<4x9x9x4xf32>
    %2 = vector.extract_strided_slice %1 {offsets = [3, 0, 0, 0], sizes = [1, 8, 8, 4], strides = [1, 1, 1, 1]} : vector<4x9x9x4xf32> to vector<1x8x8x4xf32>
    %3 = vector.shape_cast %2 : vector<1x8x8x4xf32> to vector<8x8x4xf32>
    %c0_3 = arith.constant 0 : index
    %c0_4 = arith.constant 0 : index
    %4 = vector.load %arg9[%c0_3, %c0_4] : memref<1x4xf32, #tpu.memory_space<vmem>>, vector<1x4xf32>
    %5 = vector.shape_cast %4 : vector<1x4xf32> to vector<1x1x4xf32>
    %6 = vector.broadcast %5 : vector<1x1x4xf32> to vector<8x8x4xf32>
    %7 = arith.mulf %3, %6 : vector<8x8x4xf32>
    %c0_5 = arith.constant 0 : index
    %c0_6 = arith.constant 0 : index
    %8 = vector.load %arg10[%c0_5, %c0_6] : memref<1x4xf32, #tpu.memory_space<vmem>>, vector<1x4xf32>
    %9 = vector.shape_cast %8 : vector<1x4xf32> to vector<1x1x4xf32>
    %10 = vector.broadcast %9 : vector<1x1x4xf32> to vector<8x8x4xf32>
    %11 = arith.addf %7, %10 : vector<8x8x4xf32>
    %12 = vector.shape_cast %11 : vector<8x8x4xf32> to vector<64x4xf32>
    %13 = arith.truncf %12 : vector<64x4xf32> to vector<64x4xbf16>
    %c0_7 = arith.constant 0 : index
    %c0_8 = arith.constant 0 : index
    %14 = vector.load %arg7[%c0_7, %c0_8] : memref<4x8xbf16, #tpu.memory_space<vmem>>, vector<4x8xbf16>
    %cst = arith.constant dense<0.000000e+00> : vector<64x8xf32>
    %15 = tpu.matmul %13, %14, %cst {dimension_numbers = #tpu.dot_dimension_numbers<[1], [0], [0], [1], [0, 0, 1, 1], [], []>} : vector<64x4xbf16>, vector<4x8xbf16>, vector<64x8xf32> -> vector<64x8xf32>
    %c0_9 = arith.constant 0 : index
    %c0_10 = arith.constant 0 : index
    %16 = vector.load %arg8[%c0_9, %c0_10] : memref<1x8xf32, #tpu.memory_space<vmem>>, vector<1x8xf32>
    %17 = vector.broadcast %16 : vector<1x8xf32> to vector<64x8xf32>
    %18 = arith.addf %15, %17 : vector<64x8xf32>
    %19 = arith.truncf %18 : vector<64x8xf32> to vector<64x8xbf16>
    %c0_11 = arith.constant 0 : index
    %c0_12 = arith.constant 0 : index
    %c0_13 = arith.constant 0 : index
    %20 = vector.load %arg12[%c0_11, %c0_12, %c0_13] : memref<1x64x8xbf16, #tpu.memory_space<vmem>>, vector<1x64x8xbf16>
    %21 = vector.shape_cast %20 : vector<1x64x8xbf16> to vector<64x8xbf16>
    %22 = vector.shape_cast %19 : vector<64x8xbf16> to vector<1x64x8xbf16>
    tpu.vector_store %arg12[%c0_11, %c0_12, %c0_13], %22 {strides = array<i32>} : memref<1x64x8xbf16, #tpu.memory_space<vmem>>, vector<1x64x8xbf16>,
    %c0_14 = arith.constant 0 : index
    %c0_15 = arith.constant 0 : index
    %23 = vector.load %arg5[%c0_14, %c0_15] : memref<1x4xf32, #tpu.memory_space<vmem>>, vector<1x4xf32>
    %24 = vector.shape_cast %23 : vector<1x4xf32> to vector<1x1x1x4xf32>
    %25 = vector.broadcast %24 : vector<1x1x1x4xf32> to vector<4x9x9x4xf32>
    %26 = arith.mulf %1, %25 : vector<4x9x9x4xf32>
    %c0_16 = arith.constant 0 : index
    %c0_17 = arith.constant 0 : index
    %27 = vector.load %arg6[%c0_16, %c0_17] : memref<1x4xf32, #tpu.memory_space<vmem>>, vector<1x4xf32>
    %28 = vector.shape_cast %27 : vector<1x4xf32> to vector<1x1x1x4xf32>
    %29 = vector.broadcast %28 : vector<1x1x1x4xf32> to vector<4x9x9x4xf32>
    %30 = arith.addf %26, %29 : vector<4x9x9x4xf32>
    %cst_18 = arith.constant 0.000000e+00 : f32
    %31 = vector.broadcast %cst_18 : f32 to vector<4x9x9x4xf32>
    %32 = arith.cmpf oge, %30, %31 : vector<4x9x9x4xf32>
    %cst_19 = arith.constant 0.00999999977 : f32
    %33 = vector.broadcast %cst_19 : f32 to vector<4x9x9x4xf32>
    %34 = arith.mulf %33, %30 : vector<4x9x9x4xf32>
    %35 = arith.select %32, %30, %34 : vector<4x9x9x4xi1>, vector<4x9x9x4xf32>
    %c0_20 = arith.constant 0 : index
    %c0_21 = arith.constant 0 : index
    %c0_22 = arith.constant 0 : index
    %c0_23 = arith.constant 0 : index
    %36 = vector.load %arg2[%c0_20, %c0_21, %c0_22, %c0_23] : memref<4x9x9x1xf32, #tpu.memory_space<vmem>>, vector<4x9x9x1xf32>
    %37 = vector.broadcast %36 : vector<4x9x9x1xf32> to vector<4x9x9x4xf32>
    %38 = arith.mulf %35, %37 : vector<4x9x9x4xf32>
    %39 = vector.extract_strided_slice %38 {offsets = [0, 0, 0, 0], sizes = [1, 8, 8, 4], strides = [1, 1, 1, 1]} : vector<4x9x9x4xf32> to vector<1x8x8x4xf32>
    %40 = vector.shape_cast %39 : vector<1x8x8x4xf32> to vector<8x8x4xf32>
    %41 = vector.shape_cast %40 : vector<8x8x4xf32> to vector<64x4xf32>
    %42 = vector.extract_strided_slice %38 {offsets = [1, 0, 0, 0], sizes = [1, 8, 8, 4], strides = [1, 1, 1, 1]} : vector<4x9x9x4xf32> to vector<1x8x8x4xf32>
    %43 = vector.shape_cast %42 : vector<1x8x8x4xf32> to vector<8x8x4xf32>
    %44 = vector.shape_cast %43 : vector<8x8x4xf32> to vector<64x4xf32>
    %45 = vector.extract_strided_slice %38 {offsets = [0, 0, 1, 0], sizes = [1, 8, 8, 4], strides = [1, 1, 1, 1]} : vector<4x9x9x4xf32> to vector<1x8x8x4xf32>
    %46 = vector.shape_cast %45 : vector<1x8x8x4xf32> to vector<8x8x4xf32>
    %47 = vector.shape_cast %46 : vector<8x8x4xf32> to vector<64x4xf32>
    %48 = vector.extract_strided_slice %38 {offsets = [2, 0, 0, 0], sizes = [1, 8, 8, 4], strides = [1, 1, 1, 1]} : vector<4x9x9x4xf32> to vector<1x8x8x4xf32>
    %49 = vector.shape_cast %48 : vector<1x8x8x4xf32> to vector<8x8x4xf32>
    %50 = vector.shape_cast %49 : vector<8x8x4xf32> to vector<64x4xf32>
    %51 = vector.extract_strided_slice %38 {offsets = [3, 0, 0, 0], sizes = [1, 8, 8, 4], strides = [1, 1, 1, 1]} : vector<4x9x9x4xf32> to vector<1x8x8x4xf32>
    %52 = vector.shape_cast %51 : vector<1x8x8x4xf32> to vector<8x8x4xf32>
    %53 = vector.shape_cast %52 : vector<8x8x4xf32> to vector<64x4xf32>
    %54 = vector.extract_strided_slice %38 {offsets = [2, 0, 1, 0], sizes = [1, 8, 8, 4], strides = [1, 1, 1, 1]} : vector<4x9x9x4xf32> to vector<1x8x8x4xf32>
    %55 = vector.shape_cast %54 : vector<1x8x8x4xf32> to vector<8x8x4xf32>
    %56 = vector.shape_cast %55 : vector<8x8x4xf32> to vector<64x4xf32>
    %57 = vector.extract_strided_slice %38 {offsets = [0, 1, 0, 0], sizes = [1, 8, 8, 4], strides = [1, 1, 1, 1]} : vector<4x9x9x4xf32> to vector<1x8x8x4xf32>
    %58 = vector.shape_cast %57 : vector<1x8x8x4xf32> to vector<8x8x4xf32>
    %59 = vector.shape_cast %58 : vector<8x8x4xf32> to vector<64x4xf32>
    %60 = vector.extract_strided_slice %38 {offsets = [1, 1, 0, 0], sizes = [1, 8, 8, 4], strides = [1, 1, 1, 1]} : vector<4x9x9x4xf32> to vector<1x8x8x4xf32>
    %61 = vector.shape_cast %60 : vector<1x8x8x4xf32> to vector<8x8x4xf32>
    %62 = vector.shape_cast %61 : vector<8x8x4xf32> to vector<64x4xf32>
    %63 = vector.extract_strided_slice %38 {offsets = [0, 1, 1, 0], sizes = [1, 8, 8, 4], strides = [1, 1, 1, 1]} : vector<4x9x9x4xf32> to vector<1x8x8x4xf32>
    %64 = vector.shape_cast %63 : vector<1x8x8x4xf32> to vector<8x8x4xf32>
    %65 = vector.shape_cast %64 : vector<8x8x4xf32> to vector<64x4xf32>
    %66 = tpu.concatenate %41, %44, %47, %50, %53, %56, %59, %62, %65 in 1 : vector<64x4xf32>, vector<64x4xf32>, vector<64x4xf32>, vector<64x4xf32>, vector<64x4xf32>, vector<64x4xf32>, vector<64x4xf32>, vector<64x4xf32>, vector<64x4xf32> -> vector<64x36xf32>
    %67 = arith.truncf %66 : vector<64x36xf32> to vector<64x36xbf16>
    %c0_24 = arith.constant 0 : index
    %c0_25 = arith.constant 0 : index
    %68 = vector.load %arg3[%c0_24, %c0_25] : memref<36x8xbf16, #tpu.memory_space<vmem>>, vector<36x8xbf16>
    %cst_26 = arith.constant dense<0.000000e+00> : vector<64x8xf32>
    %69 = tpu.matmul %67, %68, %cst_26 {dimension_numbers = #tpu.dot_dimension_numbers<[1], [0], [0], [1], [0, 0, 1, 1], [], []>} : vector<64x36xbf16>, vector<36x8xbf16>, vector<64x8xf32> -> vector<64x8xf32>
    %c0_27 = arith.constant 0 : index
    %c0_28 = arith.constant 0 : index
    %70 = vector.load %arg4[%c0_27, %c0_28] : memref<1x8xf32, #tpu.memory_space<vmem>>, vector<1x8xf32>
    %71 = vector.broadcast %70 : vector<1x8xf32> to vector<64x8xf32>
    %72 = arith.addf %69, %71 : vector<64x8xf32>
    %73 = arith.truncf %72 : vector<64x8xf32> to vector<64x8xbf16>
    %c0_29 = arith.constant 0 : index
    %c0_30 = arith.constant 0 : index
    %c0_31 = arith.constant 0 : index
    %74 = vector.load %arg11[%c0_29, %c0_30, %c0_31] : memref<1x64x8xbf16, #tpu.memory_space<vmem>>, vector<1x64x8xbf16>
    %75 = vector.shape_cast %74 : vector<1x64x8xbf16> to vector<64x8xbf16>
    %76 = vector.shape_cast %73 : vector<64x8xbf16> to vector<1x64x8xbf16>
    tpu.vector_store %arg11[%c0_29, %c0_30, %c0_31], %76 {strides = array<i32>} : memref<1x64x8xbf16, #tpu.memory_space<vmem>>, vector<1x64x8xbf16>,
    return
  }
  func.func @transform_0(%arg0: i32) -> (i32, i32, i32, i32) {
    %c0_i32 = arith.constant 0 : i32
    %c0_i32_0 = arith.constant 0 : i32
    %c0_i32_1 = arith.constant 0 : i32
    %c0_i32_2 = arith.constant 0 : i32
    return %arg0, %c0_i32, %c0_i32_0, %c0_i32_1 : i32, i32, i32, i32
  }
  func.func @transform_1(%arg0: i32) -> (i32, i32, i32, i32) {
    %c0_i32 = arith.constant 0 : i32
    %c0_i32_0 = arith.constant 0 : i32
    %c0_i32_1 = arith.constant 0 : i32
    %c0_i32_2 = arith.constant 0 : i32
    %c0_i32_3 = arith.constant 0 : i32
    return %c0_i32, %c0_i32_0, %c0_i32_1, %c0_i32_2 : i32, i32, i32, i32
  }
  func.func @transform_2(%arg0: i32) -> (i32, i32) {
    %c0_i32 = arith.constant 0 : i32
    %c0_i32_0 = arith.constant 0 : i32
    %c0_i32_1 = arith.constant 0 : i32
    return %c0_i32, %c0_i32_0 : i32, i32
  }
  func.func @transform_3(%arg0: i32) -> (i32, i32) {
    %c0_i32 = arith.constant 0 : i32
    %c0_i32_0 = arith.constant 0 : i32
    %c0_i32_1 = arith.constant 0 : i32
    return %c0_i32, %c0_i32_0 : i32, i32
  }
  func.func @transform_4(%arg0: i32) -> (i32, i32) {
    %c0_i32 = arith.constant 0 : i32
    %c0_i32_0 = arith.constant 0 : i32
    %c0_i32_1 = arith.constant 0 : i32
    return %c0_i32, %c0_i32_0 : i32, i32
  }
  func.func @transform_5(%arg0: i32) -> (i32, i32) {
    %c0_i32 = arith.constant 0 : i32
    %c0_i32_0 = arith.constant 0 : i32
    %c0_i32_1 = arith.constant 0 : i32
    return %c0_i32, %c0_i32_0 : i32, i32
  }
  func.func @transform_6(%arg0: i32) -> (i32, i32) {
    %c0_i32 = arith.constant 0 : i32
    %c0_i32_0 = arith.constant 0 : i32
    %c0_i32_1 = arith.constant 0 : i32
    return %c0_i32, %c0_i32_0 : i32, i32
  }
  func.func @transform_7(%arg0: i32) -> (i32, i32) {
    %c0_i32 = arith.constant 0 : i32
    %c0_i32_0 = arith.constant 0 : i32
    %c0_i32_1 = arith.constant 0 : i32
    return %c0_i32, %c0_i32_0 : i32, i32
  }
  func.func @transform_8(%arg0: i32) -> (i32, i32) {
    %c0_i32 = arith.constant 0 : i32
    %c0_i32_0 = arith.constant 0 : i32
    %c0_i32_1 = arith.constant 0 : i32
    return %c0_i32, %c0_i32_0 : i32, i32
  }
  func.func @transform_9(%arg0: i32) -> (i32, i32) {
    %c0_i32 = arith.constant 0 : i32
    %c0_i32_0 = arith.constant 0 : i32
    %c0_i32_1 = arith.constant 0 : i32
    return %c0_i32, %c0_i32_0 : i32, i32
  }
  func.func @transform_10(%arg0: i32) -> (i32, i32, i32) {
    %c0_i32 = arith.constant 0 : i32
    %c0_i32_0 = arith.constant 0 : i32
    %c0_i32_1 = arith.constant 0 : i32
    return %arg0, %c0_i32, %c0_i32_0 : i32, i32, i32
  }
  func.func @transform_11(%arg0: i32) -> (i32, i32, i32) {
    %c0_i32 = arith.constant 0 : i32
    %c0_i32_0 = arith.constant 0 : i32
    %c0_i32_1 = arith.constant 0 : i32
    return %arg0, %c0_i32, %c0_i32_0 : i32, i32, i32
  }
}

module attributes {stable_mosaic.version = 11 : i64} {
  func.func @_sia_kernel(%arg0: i32, %arg1: memref<1x64x8xbf16, #tpu.memory_space<vmem>>, %arg2: memref<1x64x8xbf16, #tpu.memory_space<vmem>>, %arg3: memref<1x8xf32, #tpu.memory_space<vmem>>, %arg4: memref<1x8xf32, #tpu.memory_space<vmem>>, %arg5: memref<8x24xbf16, #tpu.memory_space<vmem>>, %arg6: memref<1x24xf32, #tpu.memory_space<vmem>>, %arg7: memref<4x64x2xbf16, #tpu.memory_space<vmem>>, %arg8: memref<4x64x2xbf16, #tpu.memory_space<vmem>>, %arg9: memref<4x128xf32, #tpu.memory_space<vmem>>, %arg10: memref<8x8xbf16, #tpu.memory_space<vmem>>, %arg11: memref<1x8xf32, #tpu.memory_space<vmem>>, %arg12: memref<1x64x8xf32, #tpu.memory_space<vmem>>) attributes {dimension_semantics = [#tpu.dimension_semantics<parallel>], iteration_bounds = array<i64: 2>, scalar_prefetch = 0 : i64, scratch_operands = 0 : i64, tpu.core_type = #tpu.core_type<tc>, window_params = [{transform_indices = @transform_0, window_bounds = array<i64: 1, 64, 8>}, {transform_indices = @transform_1, window_bounds = array<i64: 1, 64, 8>}, {pipeline_mode = #tpu.pipeline_mode<synchronous>, transform_indices = @transform_2, window_bounds = array<i64: 1, 8>}, {pipeline_mode = #tpu.pipeline_mode<synchronous>, transform_indices = @transform_3, window_bounds = array<i64: 1, 8>}, {pipeline_mode = #tpu.pipeline_mode<synchronous>, transform_indices = @transform_4, window_bounds = array<i64: 8, 24>}, {pipeline_mode = #tpu.pipeline_mode<synchronous>, transform_indices = @transform_5, window_bounds = array<i64: 1, 24>}, {pipeline_mode = #tpu.pipeline_mode<synchronous>, transform_indices = @transform_6, window_bounds = array<i64: 4, 64, 2>}, {pipeline_mode = #tpu.pipeline_mode<synchronous>, transform_indices = @transform_7, window_bounds = array<i64: 4, 64, 2>}, {pipeline_mode = #tpu.pipeline_mode<synchronous>, transform_indices = @transform_8, window_bounds = array<i64: 4, 128>}, {pipeline_mode = #tpu.pipeline_mode<synchronous>, transform_indices = @transform_9, window_bounds = array<i64: 8, 8>}, {pipeline_mode = #tpu.pipeline_mode<synchronous>, transform_indices = @transform_10, window_bounds = array<i64: 1, 8>}, {transform_indices = @transform_11, window_bounds = array<i64: 1, 64, 8>}]} {
    %c0 = arith.constant 0 : index
    %c0_0 = arith.constant 0 : index
    %c0_1 = arith.constant 0 : index
    %0 = vector.load %arg1[%c0, %c0_0, %c0_1] : memref<1x64x8xbf16, #tpu.memory_space<vmem>>, vector<1x64x8xbf16>
    %1 = arith.extf %0 : vector<1x64x8xbf16> to vector<1x64x8xf32>
    %cst = arith.constant dense<0.000000e+00> : vector<1x64xf32>
    %2 = vector.multi_reduction <add>, %1, %cst [2] : vector<1x64x8xf32> to vector<1x64xf32>
    %3 = vector.shape_cast %2 : vector<1x64xf32> to vector<1x64x1xf32>
    %cst_2 = arith.constant 8.000000e+00 : f32
    %4 = vector.broadcast %cst_2 : f32 to vector<1x64x1xf32>
    %5 = arith.divf %3, %4 : vector<1x64x1xf32>
    %6 = vector.broadcast %5 : vector<1x64x1xf32> to vector<1x64x8xf32>
    %7 = arith.subf %1, %6 : vector<1x64x8xf32>
    %8 = arith.mulf %7, %7 : vector<1x64x8xf32>
    %cst_3 = arith.constant dense<0.000000e+00> : vector<1x64xf32>
    %9 = vector.multi_reduction <add>, %8, %cst_3 [2] : vector<1x64x8xf32> to vector<1x64xf32>
    %10 = vector.shape_cast %9 : vector<1x64xf32> to vector<1x64x1xf32>
    %cst_4 = arith.constant 8.000000e+00 : f32
    %11 = vector.broadcast %cst_4 : f32 to vector<1x64x1xf32>
    %12 = arith.divf %10, %11 : vector<1x64x1xf32>
    %13 = vector.broadcast %5 : vector<1x64x1xf32> to vector<1x64x8xf32>
    %14 = arith.subf %1, %13 : vector<1x64x8xf32>
    %cst_5 = arith.constant 9.99999974E-6 : f32
    %15 = vector.broadcast %cst_5 : f32 to vector<1x64x1xf32>
    %16 = arith.addf %12, %15 : vector<1x64x1xf32>
    %17 = math.rsqrt %16 : vector<1x64x1xf32>
    %18 = vector.broadcast %17 : vector<1x64x1xf32> to vector<1x64x8xf32>
    %19 = arith.mulf %14, %18 : vector<1x64x8xf32>
    %c0_6 = arith.constant 0 : index
    %c0_7 = arith.constant 0 : index
    %20 = vector.load %arg3[%c0_6, %c0_7] : memref<1x8xf32, #tpu.memory_space<vmem>>, vector<1x8xf32>
    %21 = vector.shape_cast %20 : vector<1x8xf32> to vector<1x1x8xf32>
    %22 = vector.broadcast %21 : vector<1x1x8xf32> to vector<1x64x8xf32>
    %23 = arith.mulf %19, %22 : vector<1x64x8xf32>
    %c0_8 = arith.constant 0 : index
    %c0_9 = arith.constant 0 : index
    %24 = vector.load %arg4[%c0_8, %c0_9] : memref<1x8xf32, #tpu.memory_space<vmem>>, vector<1x8xf32>
    %25 = vector.shape_cast %24 : vector<1x8xf32> to vector<1x1x8xf32>
    %26 = vector.broadcast %25 : vector<1x1x8xf32> to vector<1x64x8xf32>
    %27 = arith.addf %23, %26 : vector<1x64x8xf32>
    %28 = vector.shape_cast %27 : vector<1x64x8xf32> to vector<64x8xf32>
    %29 = arith.truncf %28 : vector<64x8xf32> to vector<64x8xbf16>
    %c0_10 = arith.constant 0 : index
    %c0_11 = arith.constant 0 : index
    %30 = vector.load %arg5[%c0_10, %c0_11] : memref<8x24xbf16, #tpu.memory_space<vmem>>, vector<8x24xbf16>
    %cst_12 = arith.constant dense<0.000000e+00> : vector<64x24xf32>
    %31 = tpu.matmul %29, %30, %cst_12 {dimension_numbers = #tpu.dot_dimension_numbers<[1], [0], [0], [1], [0, 0, 1, 1], [], []>} : vector<64x8xbf16>, vector<8x24xbf16>, vector<64x24xf32> -> vector<64x24xf32>
    %c0_13 = arith.constant 0 : index
    %c0_14 = arith.constant 0 : index
    %32 = vector.load %arg6[%c0_13, %c0_14] : memref<1x24xf32, #tpu.memory_space<vmem>>, vector<1x24xf32>
    %33 = vector.broadcast %32 : vector<1x24xf32> to vector<64x24xf32>
    %34 = arith.addf %31, %33 : vector<64x24xf32>
    %c0_15 = arith.constant 0 : index
    %c0_16 = arith.constant 0 : index
    %c0_17 = arith.constant 0 : index
    %35 = vector.load %arg7[%c0_15, %c0_16, %c0_17] : memref<4x64x2xbf16, #tpu.memory_space<vmem>>, vector<4x64x2xbf16>
    %c0_18 = arith.constant 0 : index
    %c0_19 = arith.constant 0 : index
    %c0_20 = arith.constant 0 : index
    %36 = vector.load %arg8[%c0_18, %c0_19, %c0_20] : memref<4x64x2xbf16, #tpu.memory_space<vmem>>, vector<4x64x2xbf16>
    %c0_21 = arith.constant 0 : index
    %c0_22 = arith.constant 0 : index
    %37 = vector.load %arg9[%c0_21, %c0_22] : memref<4x128xf32, #tpu.memory_space<vmem>>, vector<4x128xf32>
    %38 = vector.extract_strided_slice %34 {offsets = [0, 0], sizes = [64, 2], strides = [1, 1]} : vector<64x24xf32> to vector<64x2xf32>
    %39 = vector.shape_cast %38 : vector<64x2xf32> to vector<1x64x2xf32>
    %40 = arith.truncf %39 : vector<1x64x2xf32> to vector<1x64x2xbf16>
    %41 = vector.extract_strided_slice %34 {offsets = [0, 8], sizes = [64, 2], strides = [1, 1]} : vector<64x24xf32> to vector<64x2xf32>
    %42 = vector.shape_cast %41 : vector<64x2xf32> to vector<1x64x2xf32>
    %43 = arith.truncf %42 : vector<1x64x2xf32> to vector<1x64x2xbf16>
    %44 = vector.extract_strided_slice %34 {offsets = [0, 16], sizes = [64, 2], strides = [1, 1]} : vector<64x24xf32> to vector<64x2xf32>
    %45 = vector.shape_cast %44 : vector<64x2xf32> to vector<1x64x2xf32>
    %46 = arith.truncf %45 : vector<1x64x2xf32> to vector<1x64x2xbf16>
    %47 = vector.extract_strided_slice %35 {offsets = [0, 0, 0], sizes = [1, 64, 2], strides = [1, 1, 1]} : vector<4x64x2xbf16> to vector<1x64x2xbf16>
    %48 = vector.shape_cast %47 : vector<1x64x2xbf16> to vector<64x2xbf16>
    %49 = vector.shape_cast %48 : vector<64x2xbf16> to vector<1x64x2xbf16>
    %50 = tpu.concatenate %43, %49 in 1 : vector<1x64x2xbf16>, vector<1x64x2xbf16> -> vector<1x128x2xbf16>
    %51 = vector.extract_strided_slice %36 {offsets = [0, 0, 0], sizes = [1, 64, 2], strides = [1, 1, 1]} : vector<4x64x2xbf16> to vector<1x64x2xbf16>
    %52 = vector.shape_cast %51 : vector<1x64x2xbf16> to vector<64x2xbf16>
    %53 = vector.shape_cast %52 : vector<64x2xbf16> to vector<1x64x2xbf16>
    %54 = tpu.concatenate %46, %53 in 1 : vector<1x64x2xbf16>, vector<1x64x2xbf16> -> vector<1x128x2xbf16>
    "tpu.trace_start"() <{level = 10 : i32, message = "wqd,wkd->wqk"}> : () -> ()
    %cst_23 = arith.constant dense<0.000000e+00> : vector<1x64x128xf32>
    %55 = tpu.matmul %40, %50, %cst_23 {dimension_numbers = #tpu.dot_dimension_numbers<[2], [2], [1], [1], [0, 0, 0, 1, 1, 1], [0], [0]>} : vector<1x64x2xbf16>, vector<1x128x2xbf16>, vector<1x64x128xf32> -> vector<1x64x128xf32>
    "tpu.trace_stop"() : () -> ()
    %56 = vector.extract_strided_slice %37 {offsets = [0, 0], sizes = [1, 128], strides = [1, 1]} : vector<4x128xf32> to vector<1x128xf32>
    %57 = vector.shape_cast %56 : vector<1x128xf32> to vector<1x1x128xf32>
    %58 = vector.broadcast %57 : vector<1x1x128xf32> to vector<1x64x128xf32>
    %59 = arith.addf %55, %58 : vector<1x64x128xf32>
    %cst_24 = arith.constant dense<0xFF800000> : vector<1x64xf32>
    %60 = vector.multi_reduction <maximumf>, %59, %cst_24 [2] : vector<1x64x128xf32> to vector<1x64xf32>
    %61 = vector.shape_cast %60 : vector<1x64xf32> to vector<1x64x1xf32>
    %62 = vector.broadcast %61 : vector<1x64x1xf32> to vector<1x64x128xf32>
    %63 = arith.subf %59, %62 : vector<1x64x128xf32>
    %64 = math.exp %63 : vector<1x64x128xf32>
    %cst_25 = arith.constant dense<0.000000e+00> : vector<1x64xf32>
    %65 = vector.multi_reduction <add>, %64, %cst_25 [2] : vector<1x64x128xf32> to vector<1x64xf32>
    %66 = vector.shape_cast %65 : vector<1x64xf32> to vector<1x64x1xf32>
    %67 = arith.truncf %64 : vector<1x64x128xf32> to vector<1x64x128xbf16>
    "tpu.trace_start"() <{level = 10 : i32, message = "wqk,wkd->wqd"}> : () -> ()
    %cst_26 = arith.constant dense<0.000000e+00> : vector<1x64x2xf32>
    %68 = tpu.matmul %67, %54, %cst_26 {dimension_numbers = #tpu.dot_dimension_numbers<[2], [1], [1], [2], [0, 0, 0, 1, 1, 2], [0], [0]>} : vector<1x64x128xbf16>, vector<1x128x2xbf16>, vector<1x64x2xf32> -> vector<1x64x2xf32>
    "tpu.trace_stop"() : () -> ()
    %69 = tpu.reciprocal %66 {approx = true} : vector<1x64x1xf32> -> vector<1x64x1xf32>
    %70 = vector.broadcast %69 : vector<1x64x1xf32> to vector<1x64x2xf32>
    %71 = arith.mulf %68, %70 : vector<1x64x2xf32>
    %72 = vector.extract_strided_slice %34 {offsets = [0, 2], sizes = [64, 2], strides = [1, 1]} : vector<64x24xf32> to vector<64x2xf32>
    %73 = vector.shape_cast %72 : vector<64x2xf32> to vector<1x64x2xf32>
    %74 = arith.truncf %73 : vector<1x64x2xf32> to vector<1x64x2xbf16>
    %75 = vector.extract_strided_slice %34 {offsets = [0, 10], sizes = [64, 2], strides = [1, 1]} : vector<64x24xf32> to vector<64x2xf32>
    %76 = vector.shape_cast %75 : vector<64x2xf32> to vector<1x64x2xf32>
    %77 = arith.truncf %76 : vector<1x64x2xf32> to vector<1x64x2xbf16>
    %78 = vector.extract_strided_slice %34 {offsets = [0, 18], sizes = [64, 2], strides = [1, 1]} : vector<64x24xf32> to vector<64x2xf32>
    %79 = vector.shape_cast %78 : vector<64x2xf32> to vector<1x64x2xf32>
    %80 = arith.truncf %79 : vector<1x64x2xf32> to vector<1x64x2xbf16>
    %81 = vector.extract_strided_slice %35 {offsets = [1, 0, 0], sizes = [1, 64, 2], strides = [1, 1, 1]} : vector<4x64x2xbf16> to vector<1x64x2xbf16>
    %82 = vector.shape_cast %81 : vector<1x64x2xbf16> to vector<64x2xbf16>
    %83 = vector.shape_cast %82 : vector<64x2xbf16> to vector<1x64x2xbf16>
    %84 = tpu.concatenate %77, %83 in 1 : vector<1x64x2xbf16>, vector<1x64x2xbf16> -> vector<1x128x2xbf16>
    %85 = vector.extract_strided_slice %36 {offsets = [1, 0, 0], sizes = [1, 64, 2], strides = [1, 1, 1]} : vector<4x64x2xbf16> to vector<1x64x2xbf16>
    %86 = vector.shape_cast %85 : vector<1x64x2xbf16> to vector<64x2xbf16>
    %87 = vector.shape_cast %86 : vector<64x2xbf16> to vector<1x64x2xbf16>
    %88 = tpu.concatenate %80, %87 in 1 : vector<1x64x2xbf16>, vector<1x64x2xbf16> -> vector<1x128x2xbf16>
    "tpu.trace_start"() <{level = 10 : i32, message = "wqd,wkd->wqk"}> : () -> ()
    %cst_27 = arith.constant dense<0.000000e+00> : vector<1x64x128xf32>
    %89 = tpu.matmul %74, %84, %cst_27 {dimension_numbers = #tpu.dot_dimension_numbers<[2], [2], [1], [1], [0, 0, 0, 1, 1, 1], [0], [0]>} : vector<1x64x2xbf16>, vector<1x128x2xbf16>, vector<1x64x128xf32> -> vector<1x64x128xf32>
    "tpu.trace_stop"() : () -> ()
    %90 = vector.extract_strided_slice %37 {offsets = [1, 0], sizes = [1, 128], strides = [1, 1]} : vector<4x128xf32> to vector<1x128xf32>
    %91 = vector.shape_cast %90 : vector<1x128xf32> to vector<1x1x128xf32>
    %92 = vector.broadcast %91 : vector<1x1x128xf32> to vector<1x64x128xf32>
    %93 = arith.addf %89, %92 : vector<1x64x128xf32>
    %cst_28 = arith.constant dense<0xFF800000> : vector<1x64xf32>
    %94 = vector.multi_reduction <maximumf>, %93, %cst_28 [2] : vector<1x64x128xf32> to vector<1x64xf32>
    %95 = vector.shape_cast %94 : vector<1x64xf32> to vector<1x64x1xf32>
    %96 = vector.broadcast %95 : vector<1x64x1xf32> to vector<1x64x128xf32>
    %97 = arith.subf %93, %96 : vector<1x64x128xf32>
    %98 = math.exp %97 : vector<1x64x128xf32>
    %cst_29 = arith.constant dense<0.000000e+00> : vector<1x64xf32>
    %99 = vector.multi_reduction <add>, %98, %cst_29 [2] : vector<1x64x128xf32> to vector<1x64xf32>
    %100 = vector.shape_cast %99 : vector<1x64xf32> to vector<1x64x1xf32>
    %101 = arith.truncf %98 : vector<1x64x128xf32> to vector<1x64x128xbf16>
    "tpu.trace_start"() <{level = 10 : i32, message = "wqk,wkd->wqd"}> : () -> ()
    %cst_30 = arith.constant dense<0.000000e+00> : vector<1x64x2xf32>
    %102 = tpu.matmul %101, %88, %cst_30 {dimension_numbers = #tpu.dot_dimension_numbers<[2], [1], [1], [2], [0, 0, 0, 1, 1, 2], [0], [0]>} : vector<1x64x128xbf16>, vector<1x128x2xbf16>, vector<1x64x2xf32> -> vector<1x64x2xf32>
    "tpu.trace_stop"() : () -> ()
    %103 = tpu.reciprocal %100 {approx = true} : vector<1x64x1xf32> -> vector<1x64x1xf32>
    %104 = vector.broadcast %103 : vector<1x64x1xf32> to vector<1x64x2xf32>
    %105 = arith.mulf %102, %104 : vector<1x64x2xf32>
    %106 = vector.extract_strided_slice %34 {offsets = [0, 4], sizes = [64, 2], strides = [1, 1]} : vector<64x24xf32> to vector<64x2xf32>
    %107 = vector.shape_cast %106 : vector<64x2xf32> to vector<1x64x2xf32>
    %108 = arith.truncf %107 : vector<1x64x2xf32> to vector<1x64x2xbf16>
    %109 = vector.extract_strided_slice %34 {offsets = [0, 12], sizes = [64, 2], strides = [1, 1]} : vector<64x24xf32> to vector<64x2xf32>
    %110 = vector.shape_cast %109 : vector<64x2xf32> to vector<1x64x2xf32>
    %111 = arith.truncf %110 : vector<1x64x2xf32> to vector<1x64x2xbf16>
    %112 = vector.extract_strided_slice %34 {offsets = [0, 20], sizes = [64, 2], strides = [1, 1]} : vector<64x24xf32> to vector<64x2xf32>
    %113 = vector.shape_cast %112 : vector<64x2xf32> to vector<1x64x2xf32>
    %114 = arith.truncf %113 : vector<1x64x2xf32> to vector<1x64x2xbf16>
    %115 = vector.extract_strided_slice %35 {offsets = [2, 0, 0], sizes = [1, 64, 2], strides = [1, 1, 1]} : vector<4x64x2xbf16> to vector<1x64x2xbf16>
    %116 = vector.shape_cast %115 : vector<1x64x2xbf16> to vector<64x2xbf16>
    %117 = vector.shape_cast %116 : vector<64x2xbf16> to vector<1x64x2xbf16>
    %118 = tpu.concatenate %111, %117 in 1 : vector<1x64x2xbf16>, vector<1x64x2xbf16> -> vector<1x128x2xbf16>
    %119 = vector.extract_strided_slice %36 {offsets = [2, 0, 0], sizes = [1, 64, 2], strides = [1, 1, 1]} : vector<4x64x2xbf16> to vector<1x64x2xbf16>
    %120 = vector.shape_cast %119 : vector<1x64x2xbf16> to vector<64x2xbf16>
    %121 = vector.shape_cast %120 : vector<64x2xbf16> to vector<1x64x2xbf16>
    %122 = tpu.concatenate %114, %121 in 1 : vector<1x64x2xbf16>, vector<1x64x2xbf16> -> vector<1x128x2xbf16>
    "tpu.trace_start"() <{level = 10 : i32, message = "wqd,wkd->wqk"}> : () -> ()
    %cst_31 = arith.constant dense<0.000000e+00> : vector<1x64x128xf32>
    %123 = tpu.matmul %108, %118, %cst_31 {dimension_numbers = #tpu.dot_dimension_numbers<[2], [2], [1], [1], [0, 0, 0, 1, 1, 1], [0], [0]>} : vector<1x64x2xbf16>, vector<1x128x2xbf16>, vector<1x64x128xf32> -> vector<1x64x128xf32>
    "tpu.trace_stop"() : () -> ()
    %124 = vector.extract_strided_slice %37 {offsets = [2, 0], sizes = [1, 128], strides = [1, 1]} : vector<4x128xf32> to vector<1x128xf32>
    %125 = vector.shape_cast %124 : vector<1x128xf32> to vector<1x1x128xf32>
    %126 = vector.broadcast %125 : vector<1x1x128xf32> to vector<1x64x128xf32>
    %127 = arith.addf %123, %126 : vector<1x64x128xf32>
    %cst_32 = arith.constant dense<0xFF800000> : vector<1x64xf32>
    %128 = vector.multi_reduction <maximumf>, %127, %cst_32 [2] : vector<1x64x128xf32> to vector<1x64xf32>
    %129 = vector.shape_cast %128 : vector<1x64xf32> to vector<1x64x1xf32>
    %130 = vector.broadcast %129 : vector<1x64x1xf32> to vector<1x64x128xf32>
    %131 = arith.subf %127, %130 : vector<1x64x128xf32>
    %132 = math.exp %131 : vector<1x64x128xf32>
    %cst_33 = arith.constant dense<0.000000e+00> : vector<1x64xf32>
    %133 = vector.multi_reduction <add>, %132, %cst_33 [2] : vector<1x64x128xf32> to vector<1x64xf32>
    %134 = vector.shape_cast %133 : vector<1x64xf32> to vector<1x64x1xf32>
    %135 = arith.truncf %132 : vector<1x64x128xf32> to vector<1x64x128xbf16>
    "tpu.trace_start"() <{level = 10 : i32, message = "wqk,wkd->wqd"}> : () -> ()
    %cst_34 = arith.constant dense<0.000000e+00> : vector<1x64x2xf32>
    %136 = tpu.matmul %135, %122, %cst_34 {dimension_numbers = #tpu.dot_dimension_numbers<[2], [1], [1], [2], [0, 0, 0, 1, 1, 2], [0], [0]>} : vector<1x64x128xbf16>, vector<1x128x2xbf16>, vector<1x64x2xf32> -> vector<1x64x2xf32>
    "tpu.trace_stop"() : () -> ()
    %137 = tpu.reciprocal %134 {approx = true} : vector<1x64x1xf32> -> vector<1x64x1xf32>
    %138 = vector.broadcast %137 : vector<1x64x1xf32> to vector<1x64x2xf32>
    %139 = arith.mulf %136, %138 : vector<1x64x2xf32>
    %140 = vector.extract_strided_slice %34 {offsets = [0, 6], sizes = [64, 2], strides = [1, 1]} : vector<64x24xf32> to vector<64x2xf32>
    %141 = vector.shape_cast %140 : vector<64x2xf32> to vector<1x64x2xf32>
    %142 = arith.truncf %141 : vector<1x64x2xf32> to vector<1x64x2xbf16>
    %143 = vector.extract_strided_slice %34 {offsets = [0, 14], sizes = [64, 2], strides = [1, 1]} : vector<64x24xf32> to vector<64x2xf32>
    %144 = vector.shape_cast %143 : vector<64x2xf32> to vector<1x64x2xf32>
    %145 = arith.truncf %144 : vector<1x64x2xf32> to vector<1x64x2xbf16>
    %146 = vector.extract_strided_slice %34 {offsets = [0, 22], sizes = [64, 2], strides = [1, 1]} : vector<64x24xf32> to vector<64x2xf32>
    %147 = vector.shape_cast %146 : vector<64x2xf32> to vector<1x64x2xf32>
    %148 = arith.truncf %147 : vector<1x64x2xf32> to vector<1x64x2xbf16>
    %149 = vector.extract_strided_slice %35 {offsets = [3, 0, 0], sizes = [1, 64, 2], strides = [1, 1, 1]} : vector<4x64x2xbf16> to vector<1x64x2xbf16>
    %150 = vector.shape_cast %149 : vector<1x64x2xbf16> to vector<64x2xbf16>
    %151 = vector.shape_cast %150 : vector<64x2xbf16> to vector<1x64x2xbf16>
    %152 = tpu.concatenate %145, %151 in 1 : vector<1x64x2xbf16>, vector<1x64x2xbf16> -> vector<1x128x2xbf16>
    %153 = vector.extract_strided_slice %36 {offsets = [3, 0, 0], sizes = [1, 64, 2], strides = [1, 1, 1]} : vector<4x64x2xbf16> to vector<1x64x2xbf16>
    %154 = vector.shape_cast %153 : vector<1x64x2xbf16> to vector<64x2xbf16>
    %155 = vector.shape_cast %154 : vector<64x2xbf16> to vector<1x64x2xbf16>
    %156 = tpu.concatenate %148, %155 in 1 : vector<1x64x2xbf16>, vector<1x64x2xbf16> -> vector<1x128x2xbf16>
    "tpu.trace_start"() <{level = 10 : i32, message = "wqd,wkd->wqk"}> : () -> ()
    %cst_35 = arith.constant dense<0.000000e+00> : vector<1x64x128xf32>
    %157 = tpu.matmul %142, %152, %cst_35 {dimension_numbers = #tpu.dot_dimension_numbers<[2], [2], [1], [1], [0, 0, 0, 1, 1, 1], [0], [0]>} : vector<1x64x2xbf16>, vector<1x128x2xbf16>, vector<1x64x128xf32> -> vector<1x64x128xf32>
    "tpu.trace_stop"() : () -> ()
    %158 = vector.extract_strided_slice %37 {offsets = [3, 0], sizes = [1, 128], strides = [1, 1]} : vector<4x128xf32> to vector<1x128xf32>
    %159 = vector.shape_cast %158 : vector<1x128xf32> to vector<1x1x128xf32>
    %160 = vector.broadcast %159 : vector<1x1x128xf32> to vector<1x64x128xf32>
    %161 = arith.addf %157, %160 : vector<1x64x128xf32>
    %cst_36 = arith.constant dense<0xFF800000> : vector<1x64xf32>
    %162 = vector.multi_reduction <maximumf>, %161, %cst_36 [2] : vector<1x64x128xf32> to vector<1x64xf32>
    %163 = vector.shape_cast %162 : vector<1x64xf32> to vector<1x64x1xf32>
    %164 = vector.broadcast %163 : vector<1x64x1xf32> to vector<1x64x128xf32>
    %165 = arith.subf %161, %164 : vector<1x64x128xf32>
    %166 = math.exp %165 : vector<1x64x128xf32>
    %cst_37 = arith.constant dense<0.000000e+00> : vector<1x64xf32>
    %167 = vector.multi_reduction <add>, %166, %cst_37 [2] : vector<1x64x128xf32> to vector<1x64xf32>
    %168 = vector.shape_cast %167 : vector<1x64xf32> to vector<1x64x1xf32>
    %169 = arith.truncf %166 : vector<1x64x128xf32> to vector<1x64x128xbf16>
    "tpu.trace_start"() <{level = 10 : i32, message = "wqk,wkd->wqd"}> : () -> ()
    %cst_38 = arith.constant dense<0.000000e+00> : vector<1x64x2xf32>
    %170 = tpu.matmul %169, %156, %cst_38 {dimension_numbers = #tpu.dot_dimension_numbers<[2], [1], [1], [2], [0, 0, 0, 1, 1, 2], [0], [0]>} : vector<1x64x128xbf16>, vector<1x128x2xbf16>, vector<1x64x2xf32> -> vector<1x64x2xf32>
    "tpu.trace_stop"() : () -> ()
    %171 = tpu.reciprocal %168 {approx = true} : vector<1x64x1xf32> -> vector<1x64x1xf32>
    %172 = vector.broadcast %171 : vector<1x64x1xf32> to vector<1x64x2xf32>
    %173 = arith.mulf %170, %172 : vector<1x64x2xf32>
    %174 = tpu.concatenate %71, %105, %139, %173 in 2 : vector<1x64x2xf32>, vector<1x64x2xf32>, vector<1x64x2xf32>, vector<1x64x2xf32> -> vector<1x64x8xf32>
    %175 = vector.shape_cast %174 : vector<1x64x8xf32> to vector<64x8xf32>
    %176 = arith.truncf %175 : vector<64x8xf32> to vector<64x8xbf16>
    %c0_39 = arith.constant 0 : index
    %c0_40 = arith.constant 0 : index
    %177 = vector.load %arg10[%c0_39, %c0_40] : memref<8x8xbf16, #tpu.memory_space<vmem>>, vector<8x8xbf16>
    %cst_41 = arith.constant dense<0.000000e+00> : vector<64x8xf32>
    %178 = tpu.matmul %176, %177, %cst_41 {dimension_numbers = #tpu.dot_dimension_numbers<[1], [0], [0], [1], [0, 0, 1, 1], [], []>} : vector<64x8xbf16>, vector<8x8xbf16>, vector<64x8xf32> -> vector<64x8xf32>
    %c0_42 = arith.constant 0 : index
    %c0_43 = arith.constant 0 : index
    %179 = vector.load %arg11[%c0_42, %c0_43] : memref<1x8xf32, #tpu.memory_space<vmem>>, vector<1x8xf32>
    %180 = vector.broadcast %179 : vector<1x8xf32> to vector<64x8xf32>
    %181 = arith.addf %178, %180 : vector<64x8xf32>
    %182 = vector.shape_cast %1 : vector<1x64x8xf32> to vector<64x8xf32>
    %183 = arith.addf %181, %182 : vector<64x8xf32>
    %c0_44 = arith.constant 0 : index
    %c0_45 = arith.constant 0 : index
    %c0_46 = arith.constant 0 : index
    %184 = vector.load %arg2[%c0_44, %c0_45, %c0_46] : memref<1x64x8xbf16, #tpu.memory_space<vmem>>, vector<1x64x8xbf16>
    %185 = arith.extf %184 : vector<1x64x8xbf16> to vector<1x64x8xf32>
    %186 = vector.shape_cast %185 : vector<1x64x8xf32> to vector<64x8xf32>
    %187 = arith.addf %183, %186 : vector<64x8xf32>
    %188 = vector.shape_cast %187 : vector<64x8xf32> to vector<1x64x8xf32>
    %c0_47 = arith.constant 0 : index
    %c0_48 = arith.constant 0 : index
    %c0_49 = arith.constant 0 : index
    %189 = vector.load %arg12[%c0_47, %c0_48, %c0_49] : memref<1x64x8xf32, #tpu.memory_space<vmem>>, vector<1x64x8xf32>
    tpu.vector_store %arg12[%c0_47, %c0_48, %c0_49], %188 {strides = array<i32>} : memref<1x64x8xf32, #tpu.memory_space<vmem>>, vector<1x64x8xf32>,
    return
  }
  func.func @transform_0(%arg0: i32) -> (i32, i32, i32) {
    %c0_i32 = arith.constant 0 : i32
    %c0_i32_0 = arith.constant 0 : i32
    %c0_i32_1 = arith.constant 0 : i32
    return %arg0, %c0_i32, %c0_i32_0 : i32, i32, i32
  }
  func.func @transform_1(%arg0: i32) -> (i32, i32, i32) {
    %c0_i32 = arith.constant 0 : i32
    %c0_i32_0 = arith.constant 0 : i32
    %c0_i32_1 = arith.constant 0 : i32
    return %arg0, %c0_i32, %c0_i32_0 : i32, i32, i32
  }
  func.func @transform_2(%arg0: i32) -> (i32, i32) {
    %c0_i32 = arith.constant 0 : i32
    %c0_i32_0 = arith.constant 0 : i32
    %c0_i32_1 = arith.constant 0 : i32
    return %c0_i32, %c0_i32_0 : i32, i32
  }
  func.func @transform_3(%arg0: i32) -> (i32, i32) {
    %c0_i32 = arith.constant 0 : i32
    %c0_i32_0 = arith.constant 0 : i32
    %c0_i32_1 = arith.constant 0 : i32
    return %c0_i32, %c0_i32_0 : i32, i32
  }
  func.func @transform_4(%arg0: i32) -> (i32, i32) {
    %c0_i32 = arith.constant 0 : i32
    %c0_i32_0 = arith.constant 0 : i32
    %c0_i32_1 = arith.constant 0 : i32
    return %c0_i32, %c0_i32_0 : i32, i32
  }
  func.func @transform_5(%arg0: i32) -> (i32, i32) {
    %c0_i32 = arith.constant 0 : i32
    %c0_i32_0 = arith.constant 0 : i32
    %c0_i32_1 = arith.constant 0 : i32
    return %c0_i32, %c0_i32_0 : i32, i32
  }
  func.func @transform_6(%arg0: i32) -> (i32, i32, i32) {
    %c0_i32 = arith.constant 0 : i32
    %c0_i32_0 = arith.constant 0 : i32
    %c0_i32_1 = arith.constant 0 : i32
    %c0_i32_2 = arith.constant 0 : i32
    return %c0_i32, %c0_i32_0, %c0_i32_1 : i32, i32, i32
  }
  func.func @transform_7(%arg0: i32) -> (i32, i32, i32) {
    %c0_i32 = arith.constant 0 : i32
    %c0_i32_0 = arith.constant 0 : i32
    %c0_i32_1 = arith.constant 0 : i32
    %c0_i32_2 = arith.constant 0 : i32
    return %c0_i32, %c0_i32_0, %c0_i32_1 : i32, i32, i32
  }
  func.func @transform_8(%arg0: i32) -> (i32, i32) {
    %c0_i32 = arith.constant 0 : i32
    %c0_i32_0 = arith.constant 0 : i32
    %c0_i32_1 = arith.constant 0 : i32
    return %c0_i32, %c0_i32_0 : i32, i32
  }
  func.func @transform_9(%arg0: i32) -> (i32, i32) {
    %c0_i32 = arith.constant 0 : i32
    %c0_i32_0 = arith.constant 0 : i32
    %c0_i32_1 = arith.constant 0 : i32
    return %c0_i32, %c0_i32_0 : i32, i32
  }
  func.func @transform_10(%arg0: i32) -> (i32, i32) {
    %c0_i32 = arith.constant 0 : i32
    %c0_i32_0 = arith.constant 0 : i32
    %c0_i32_1 = arith.constant 0 : i32
    return %c0_i32, %c0_i32_0 : i32, i32
  }
  func.func @transform_11(%arg0: i32) -> (i32, i32, i32) {
    %c0_i32 = arith.constant 0 : i32
    %c0_i32_0 = arith.constant 0 : i32
    %c0_i32_1 = arith.constant 0 : i32
    return %arg0, %c0_i32, %c0_i32_0 : i32, i32, i32
  }
}

</mosaic_0001>

<llo_original>
// kernel: deep_sia_res_block_forward.2
$region0: #{deep_sia_res_block_forward.2}
  #allocation0 [shape = 'u32[]', space=smem, size = 0x4, offset = 0x4, fixed_abs, tag = 'smem constant byte address 0x4 - core index']
  #allocation1 [shape = 'u32[144,128]{1,0:T(1,128)}', space=vmem, size = 0x12000, scoped, tag = 'internal scratch']
  %s0 = inlined_call_operand.vmem [shape: bf16[8,9,9,4], index: 0, kind: input, shape index: {}]
  %s1 = inlined_call_operand.vmem [shape: f32[4,9,9,1], index: 1, kind: input, shape index: {}]
  %s2 = inlined_call_operand.vmem [shape: bf16[36,8], index: 2, kind: input, shape index: {}]
  %s3 = inlined_call_operand.vmem [shape: f32[1,8], index: 3, kind: input, shape index: {}]
  %s4 = inlined_call_operand.vmem [shape: f32[1,4], index: 4, kind: input, shape index: {}]
  %s5 = inlined_call_operand.vmem [shape: f32[1,4], index: 5, kind: input, shape index: {}]
  %s6 = inlined_call_operand.vmem [shape: bf16[4,8], index: 6, kind: input, shape index: {}]
  %s7 = inlined_call_operand.vmem [shape: f32[1,8], index: 7, kind: input, shape index: {}]
  %s8 = inlined_call_operand.vmem [shape: f32[1,4], index: 8, kind: input, shape index: {}]
  %s9 = inlined_call_operand.vmem [shape: f32[1,4], index: 9, kind: input, shape index: {}]
  %s10 = inlined_call_operand.vmem [shape: bf16[2,64,8], index: 10, kind: output, shape index: {0}]
  %s11 = inlined_call_operand.vmem [shape: bf16[2,64,8], index: 11, kind: output, shape index: {1}]
  %12 = xla_tuple %s10, %s11
  %s13 = sld [smem:[#allocation0]]
  $region81: #{deep_sia_res_block_forward.2} parent=0
    _
  %s15 = ssub.s32 1, %s13
  %s16 = scalar_select 0, %s15, %s13
  loop: start=0, step=1, limit=4
  $region2: #{deep_sia_res_block_forward.2} parent=0 // loop_pre_header
    _
  $region3: #{deep_sia_res_block_forward.2} parent=0 // loop_header
    %s18 = sphi 0, %s22
    %p19 = scmp.ge.s32.totalorder %s18, 4
    %s28 = sphi 0, %s30
    %s31 = sphi 0, %s28
    %s32 = sphi 0, %s31
    %s48 = sphi 0, %s32
    %s52 = sphi 0, %s52
    %s54 = sphi 0, %s52
    %s55 = sphi 0, %s54
    %s69 = sphi 0, %s55
    %s73 = sphi 0, %s73
    %s75 = sphi 0, %s73
    %s76 = sphi 0, %s75
    %s90 = sphi 0, %s76
    %s94 = sphi 0, %s94
    %s96 = sphi 0, %s94
    %s97 = sphi 0, %s96
    %s111 = sphi 0, %s97
    %s115 = sphi 0, %s115
    %s117 = sphi 0, %s115
    %s118 = sphi 0, %s117
    %s132 = sphi 0, %s118
    %s136 = sphi 0, %s136
    %s138 = sphi 0, %s136
    %s139 = sphi 0, %s138
    %s153 = sphi 0, %s139
    %s157 = sphi 0, %s157
    %s159 = sphi 0, %s157
    %s160 = sphi 0, %s159
    %s174 = sphi 0, %s160
    %s178 = sphi 0, %s178
    %s180 = sphi 0, %s178
    %s181 = sphi 0, %s180
    %s195 = sphi 0, %s181
    %s199 = sphi 0, %s199
    %s201 = sphi 0, %s199
    %s202 = sphi 0, %s201
    %s216 = sphi 0, %s202
    %s220 = sphi 0, %s220
    %s222 = sphi 0, %s220
    %s223 = sphi 0, %s222
    %s237 = sphi 0, %s223
    %s243 = sphi 0, %s245
    %s246 = sphi 0, %s243
    %s247 = sphi 0, %s246
    %s263 = sphi 0, %s247
    %s269 = sphi 0, %s271
    %s272 = sphi 0, %s269
    %s273 = sphi 0, %s272
    %s289 = sphi 0, %s273
  $region4: #{deep_sia_res_block_forward.2} parent=0 // loop_header_branch
    %21 = sbr.rel (%p19) target = $region8
  $region5: #{deep_sia_res_block_forward.2} parent=0 // loop_body
    %s23 = ssub.s32 %s18, 1
    %s24 = ssub.s32 %s18, 2
    %s25 = sadd.s32 %s18, 1
    %s26 = ssub.s32 %s18, %s25
    %p27 = scmp.eq.s32.totalorder %s26, 0
    %s29 = sadd.s32 %s28, 1
    %s30 = scalar_select %p27, %s28, %s29
    %p33 = pneg %p27
    %p34 = scmp.eq.s32.totalorder %s18, 1
    %p35 = por %p33, %p34
    %p36 = scmp.ne.s32.totalorder %s28, %s31
    %p37 = scmp.eq.s32.totalorder %s18, 0
    %p38 = por %p36, %p37
    %p39 = scmp.ne.s32.totalorder %s28, %s31
    %p40 = scmp.eq.s32.totalorder %s23, 1
    %p41 = por %p39, %p40
    %p42 = scmp.ne.s32.totalorder %s31, %s32
    %p43 = scmp.eq.s32.totalorder %s23, 0
    %p44 = por %p42, %p43
    %p45 = scmp.ne.s32.totalorder %s31, %s32
    %p46 = scmp.eq.s32.totalorder %s24, 1
    %p47 = por %p45, %p46
    %p49 = scmp.ne.s32.totalorder %s32, %s48
    %p50 = scmp.eq.s32.totalorder %s24, 0
    %p51 = por %p49, %p50
    %s53 = sadd.s32 %s52, 1
    %p56 = scmp.eq.s32.totalorder %s18, 1
    %p57 = scmp.ne.s32.totalorder %s52, %s54
    %p58 = scmp.eq.s32.totalorder %s18, 0
    %p59 = por %p57, %p58
    %p60 = scmp.ne.s32.totalorder %s52, %s54
    %p61 = scmp.eq.s32.totalorder %s23, 1
    %p62 = por %p60, %p61
    %p63 = scmp.ne.s32.totalorder %s54, %s55
    %p64 = scmp.eq.s32.totalorder %s23, 0
    %p65 = por %p63, %p64
    %p66 = scmp.ne.s32.totalorder %s54, %s55
    %p67 = scmp.eq.s32.totalorder %s24, 1
    %p68 = por %p66, %p67
    %p70 = scmp.ne.s32.totalorder %s55, %s69
    %p71 = scmp.eq.s32.totalorder %s24, 0
    %p72 = por %p70, %p71
    %s74 = sadd.s32 %s73, 1
    %p77 = scmp.eq.s32.totalorder %s18, 1
    %p78 = scmp.ne.s32.totalorder %s73, %s75
    %p79 = scmp.eq.s32.totalorder %s18, 0
    %p80 = por %p78, %p79
    %p81 = scmp.ne.s32.totalorder %s73, %s75
    %p82 = scmp.eq.s32.totalorder %s23, 1
    %p83 = por %p81, %p82
    %p84 = scmp.ne.s32.totalorder %s75, %s76
    %p85 = scmp.eq.s32.totalorder %s23, 0
    %p86 = por %p84, %p85
    %p87 = scmp.ne.s32.totalorder %s75, %s76
    %p88 = scmp.eq.s32.totalorder %s24, 1
    %p89 = por %p87, %p88
    %p91 = scmp.ne.s32.totalorder %s76, %s90
    %p92 = scmp.eq.s32.totalorder %s24, 0
    %p93 = por %p91, %p92
    %s95 = sadd.s32 %s94, 1
    %p98 = scmp.eq.s32.totalorder %s18, 1
    %p99 = scmp.ne.s32.totalorder %s94, %s96
    %p100 = scmp.eq.s32.totalorder %s18, 0
    %p101 = por %p99, %p100
    %p102 = scmp.ne.s32.totalorder %s94, %s96
    %p103 = scmp.eq.s32.totalorder %s23, 1
    %p104 = por %p102, %p103
    %p105 = scmp.ne.s32.totalorder %s96, %s97
    %p106 = scmp.eq.s32.totalorder %s23, 0
    %p107 = por %p105, %p106
    %p108 = scmp.ne.s32.totalorder %s96, %s97
    %p109 = scmp.eq.s32.totalorder %s24, 1
    %p110 = por %p108, %p109
    %p112 = scmp.ne.s32.totalorder %s97, %s111
    %p113 = scmp.eq.s32.totalorder %s24, 0
    %p114 = por %p112, %p113
    %s116 = sadd.s32 %s115, 1
    %p119 = scmp.eq.s32.totalorder %s18, 1
    %p120 = scmp.ne.s32.totalorder %s115, %s117
    %p121 = scmp.eq.s32.totalorder %s18, 0
    %p122 = por %p120, %p121
    %p123 = scmp.ne.s32.totalorder %s115, %s117
    %p124 = scmp.eq.s32.totalorder %s23, 1
    %p125 = por %p123, %p124
    %p126 = scmp.ne.s32.totalorder %s117, %s118
    %p127 = scmp.eq.s32.totalorder %s23, 0
    %p128 = por %p126, %p127
    %p129 = scmp.ne.s32.totalorder %s117, %s118
    %p130 = scmp.eq.s32.totalorder %s24, 1
    %p131 = por %p129, %p130
    %p133 = scmp.ne.s32.totalorder %s118, %s132
    %p134 = scmp.eq.s32.totalorder %s24, 0
    %p135 = por %p133, %p134
    %s137 = sadd.s32 %s136, 1
    %p140 = scmp.eq.s32.totalorder %s18, 1
    %p141 = scmp.ne.s32.totalorder %s136, %s138
    %p142 = scmp.eq.s32.totalorder %s18, 0
    %p143 = por %p141, %p142
    %p144 = scmp.ne.s32.totalorder %s136, %s138
    %p145 = scmp.eq.s32.totalorder %s23, 1
    %p146 = por %p144, %p145
    %p147 = scmp.ne.s32.totalorder %s138, %s139
    %p148 = scmp.eq.s32.totalorder %s23, 0
    %p149 = por %p147, %p148
    %p150 = scmp.ne.s32.totalorder %s138, %s139
    %p151 = scmp.eq.s32.totalorder %s24, 1
    %p152 = por %p150, %p151
    %p154 = scmp.ne.s32.totalorder %s139, %s153
    %p155 = scmp.eq.s32.totalorder %s24, 0
    %p156 = por %p154, %p155
    %s158 = sadd.s32 %s157, 1
    %p161 = scmp.eq.s32.totalorder %s18, 1
    %p162 = scmp.ne.s32.totalorder %s157, %s159
    %p163 = scmp.eq.s32.totalorder %s18, 0
    %p164 = por %p162, %p163
    %p165 = scmp.ne.s32.totalorder %s157, %s159
    %p166 = scmp.eq.s32.totalorder %s23, 1
    %p167 = por %p165, %p166
    %p168 = scmp.ne.s32.totalorder %s159, %s160
    %p169 = scmp.eq.s32.totalorder %s23, 0
    %p170 = por %p168, %p169
    %p171 = scmp.ne.s32.totalorder %s159, %s160
    %p172 = scmp.eq.s32.totalorder %s24, 1
    %p173 = por %p171, %p172
    %p175 = scmp.ne.s32.totalorder %s160, %s174
    %p176 = scmp.eq.s32.totalorder %s24, 0
    %p177 = por %p175, %p176
    %s179 = sadd.s32 %s178, 1
    %p182 = scmp.eq.s32.totalorder %s18, 1
    %p183 = scmp.ne.s32.totalorder %s178, %s180
    %p184 = scmp.eq.s32.totalorder %s18, 0
    %p185 = por %p183, %p184
    %p186 = scmp.ne.s32.totalorder %s178, %s180
    %p187 = scmp.eq.s32.totalorder %s23, 1
    %p188 = por %p186, %p187
    %p189 = scmp.ne.s32.totalorder %s180, %s181
    %p190 = scmp.eq.s32.totalorder %s23, 0
    %p191 = por %p189, %p190
    %p192 = scmp.ne.s32.totalorder %s180, %s181
    %p193 = scmp.eq.s32.totalorder %s24, 1
    %p194 = por %p192, %p193
    %p196 = scmp.ne.s32.totalorder %s181, %s195
    %p197 = scmp.eq.s32.totalorder %s24, 0
    %p198 = por %p196, %p197
    %s200 = sadd.s32 %s199, 1
    %p203 = scmp.eq.s32.totalorder %s18, 1
    %p204 = scmp.ne.s32.totalorder %s199, %s201
    %p205 = scmp.eq.s32.totalorder %s18, 0
    %p206 = por %p204, %p205
    %p207 = scmp.ne.s32.totalorder %s199, %s201
    %p208 = scmp.eq.s32.totalorder %s23, 1
    %p209 = por %p207, %p208
    %p210 = scmp.ne.s32.totalorder %s201, %s202
    %p211 = scmp.eq.s32.totalorder %s23, 0
    %p212 = por %p210, %p211
    %p213 = scmp.ne.s32.totalorder %s201, %s202
    %p214 = scmp.eq.s32.totalorder %s24, 1
    %p215 = por %p213, %p214
    %p217 = scmp.ne.s32.totalorder %s202, %s216
    %p218 = scmp.eq.s32.totalorder %s24, 0
    %p219 = por %p217, %p218
    %s221 = sadd.s32 %s220, 1
    %p224 = scmp.eq.s32.totalorder %s18, 1
    %p225 = scmp.ne.s32.totalorder %s220, %s222
    %p226 = scmp.eq.s32.totalorder %s18, 0
    %p227 = por %p225, %p226
    %p228 = scmp.ne.s32.totalorder %s220, %s222
    %p229 = scmp.eq.s32.totalorder %s23, 1
    %p230 = por %p228, %p229
    %p231 = scmp.ne.s32.totalorder %s222, %s223
    %p232 = scmp.eq.s32.totalorder %s23, 0
    %p233 = por %p231, %p232
    %p234 = scmp.ne.s32.totalorder %s222, %s223
    %p235 = scmp.eq.s32.totalorder %s24, 1
    %p236 = por %p234, %p235
    %p238 = scmp.ne.s32.totalorder %s223, %s237
    %p239 = scmp.eq.s32.totalorder %s24, 0
    %p240 = por %p238, %p239
    %s241 = ssub.s32 %s18, %s25
    %p242 = scmp.eq.s32.totalorder %s241, 0
    %s244 = sadd.s32 %s243, 1
    %s245 = scalar_select %p242, %s243, %s244
    %p248 = pneg %p242
    %p249 = scmp.eq.s32.totalorder %s18, 1
    %p250 = por %p248, %p249
    %p251 = scmp.ne.s32.totalorder %s243, %s246
    %p252 = scmp.eq.s32.totalorder %s18, 0
    %p253 = por %p251, %p252
    %p254 = scmp.ne.s32.totalorder %s243, %s246
    %p255 = scmp.eq.s32.totalorder %s23, 1
    %p256 = por %p254, %p255
    %p257 = scmp.ne.s32.totalorder %s246, %s247
    %p258 = scmp.eq.s32.totalorder %s23, 0
    %p259 = por %p257, %p258
    %p260 = scmp.ne.s32.totalorder %s246, %s247
    %p261 = scmp.eq.s32.totalorder %s24, 1
    %p262 = por %p260, %p261
    %p264 = scmp.ne.s32.totalorder %s247, %s263
    %p265 = scmp.eq.s32.totalorder %s24, 0
    %p266 = por %p264, %p265
    %s267 = ssub.s32 %s18, %s25
    %p268 = scmp.eq.s32.totalorder %s267, 0
    %s270 = sadd.s32 %s269, 1
    %s271 = scalar_select %p268, %s269, %s270
    %p274 = pneg %p268
    %p275 = scmp.eq.s32.totalorder %s18, 1
    %p276 = por %p274, %p275
    %p277 = scmp.ne.s32.totalorder %s269, %s272
    %p278 = scmp.eq.s32.totalorder %s18, 0
    %p279 = por %p277, %p278
    %p280 = scmp.ne.s32.totalorder %s269, %s272
    %p281 = scmp.eq.s32.totalorder %s23, 1
    %p282 = por %p280, %p281
    %p283 = scmp.ne.s32.totalorder %s272, %s273
    %p284 = scmp.eq.s32.totalorder %s23, 0
    %p285 = por %p283, %p284
    %p286 = scmp.ne.s32.totalorder %s272, %s273
    %p287 = scmp.eq.s32.totalorder %s24, 1
    %p288 = por %p286, %p287
    %p290 = scmp.ne.s32.totalorder %s273, %s289
    %p291 = scmp.eq.s32.totalorder %s24, 0
    %p292 = por %p290, %p291
    %p293 = scmp.le.s32.totalorder 1, %s18
    %p294 = scmp.lt.s32.totalorder %s18, 3
    %p295 = pnand %p293, %p294
    %p296 = pneg %p295
    // Predicated region
    $region9: #{deep_sia_res_block_forward.2} parent=5 // pred_check
      _
    $region10: #{deep_sia_res_block_forward.2} parent=5 // pred_check_branch
      %298 = sbr.rel (%p295) target = $region12
    $region11: #{deep_sia_res_block_forward.2} parent=5 // pred_region
      %s299 = ssub.s32 %s18, 1
      // Predicated region
      $region13: #{deep_sia_res_block_forward.2} parent=11 // pred_check
        %p300 = pneg %p65
      $region14: #{deep_sia_res_block_forward.2} parent=11 // pred_check_branch
        %302 = sbr.rel (%p300) target = $region16
      $region15: #{deep_sia_res_block_forward.2} parent=11 // pred_region
        _
      $region16: #{deep_sia_res_block_forward.2} parent=11 // pred_fallthru
        _
      // Predicated region
      $region17: #{deep_sia_res_block_forward.2} parent=11 // pred_check
        %p303 = pneg %p86
      $region18: #{deep_sia_res_block_forward.2} parent=11 // pred_check_branch
        %305 = sbr.rel (%p303) target = $region20
      $region19: #{deep_sia_res_block_forward.2} parent=11 // pred_region
        _
      $region20: #{deep_sia_res_block_forward.2} parent=11 // pred_fallthru
        _
      // Predicated region
      $region21: #{deep_sia_res_block_forward.2} parent=11 // pred_check
        %p306 = pneg %p107
      $region22: #{deep_sia_res_block_forward.2} parent=11 // pred_check_branch
        %308 = sbr.rel (%p306) target = $region24
      $region23: #{deep_sia_res_block_forward.2} parent=11 // pred_region
        _
      $region24: #{deep_sia_res_block_forward.2} parent=11 // pred_fallthru
        _
      // Predicated region
      $region25: #{deep_sia_res_block_forward.2} parent=11 // pred_check
        %p309 = pneg %p128
      $region26: #{deep_sia_res_block_forward.2} parent=11 // pred_check_branch
        %311 = sbr.rel (%p309) target = $region28
      $region27: #{deep_sia_res_block_forward.2} parent=11 // pred_region
        _
      $region28: #{deep_sia_res_block_forward.2} parent=11 // pred_fallthru
        _
      // Predicated region
      $region29: #{deep_sia_res_block_forward.2} parent=11 // pred_check
        %p312 = pneg %p149
      $region30: #{deep_sia_res_block_forward.2} parent=11 // pred_check_branch
        %314 = sbr.rel (%p312) target = $region32
      $region31: #{deep_sia_res_block_forward.2} parent=11 // pred_region
        _
      $region32: #{deep_sia_res_block_forward.2} parent=11 // pred_fallthru
        _
      // Predicated region
      $region33: #{deep_sia_res_block_forward.2} parent=11 // pred_check
        %p315 = pneg %p170
      $region34: #{deep_sia_res_block_forward.2} parent=11 // pred_check_branch
        %317 = sbr.rel (%p315) target = $region36
      $region35: #{deep_sia_res_block_forward.2} parent=11 // pred_region
        _
      $region36: #{deep_sia_res_block_forward.2} parent=11 // pred_fallthru
        _
      // Predicated region
      $region37: #{deep_sia_res_block_forward.2} parent=11 // pred_check
        %p318 = pneg %p191
      $region38: #{deep_sia_res_block_forward.2} parent=11 // pred_check_branch
        %320 = sbr.rel (%p318) target = $region40
      $region39: #{deep_sia_res_block_forward.2} parent=11 // pred_region
        _
      $region40: #{deep_sia_res_block_forward.2} parent=11 // pred_fallthru
        _
      // Predicated region
      $region41: #{deep_sia_res_block_forward.2} parent=11 // pred_check
        %p321 = pneg %p212
      $region42: #{deep_sia_res_block_forward.2} parent=11 // pred_check_branch
        %323 = sbr.rel (%p321) target = $region44
      $region43: #{deep_sia_res_block_forward.2} parent=11 // pred_region
        _
      $region44: #{deep_sia_res_block_forward.2} parent=11 // pred_fallthru
        _
      // Predicated region
      $region45: #{deep_sia_res_block_forward.2} parent=11 // pred_check
        %p324 = pneg %p233
      $region46: #{deep_sia_res_block_forward.2} parent=11 // pred_check_branch
        %326 = sbr.rel (%p324) target = $region48
      $region47: #{deep_sia_res_block_forward.2} parent=11 // pred_region
        _
      $region48: #{deep_sia_res_block_forward.2} parent=11 // pred_fallthru
        _
    $region12: #{deep_sia_res_block_forward.2} parent=5 // pred_fallthru
      _
    %p327 = scmp.lt.s32.totalorder %s18, 2
    // Predicated region
    $region49: #{deep_sia_res_block_forward.2} parent=5 // pred_check
      %p328 = pneg %p327
    $region50: #{deep_sia_res_block_forward.2} parent=5 // pred_check_branch
      %330 = sbr.rel (%p328) target = $region52
    $region51: #{deep_sia_res_block_forward.2} parent=5 // pred_region
      // Predicated region
      $region53: #{deep_sia_res_block_forward.2} parent=51 // pred_check
        %p331 = pneg %p38
      $region54: #{deep_sia_res_block_forward.2} parent=51 // pred_check_branch
        %333 = sbr.rel (%p331) target = $region56
      $region55: #{deep_sia_res_block_forward.2} parent=51 // pred_region
        %s334 = smul.u32 4, %s18
        %p335 = scmp.lt.s32.totalorder %s334, 7
        %s336 = scalar_select %p335, %s334, 7
        %s337 = smul.addr %s336, 18
        %s338 = smul.addr %s337, 4
        %s339 = scalar_lea.vmem %s0, %s338
        %s340 = smul.u32 4, %s18
      $region56: #{deep_sia_res_block_forward.2} parent=51 // pred_fallthru
        _
    $region52: #{deep_sia_res_block_forward.2} parent=5 // pred_fallthru
      _
    %p341 = scmp.le.s32.totalorder 1, %s18
    %p342 = scmp.lt.s32.totalorder %s18, 3
    %p343 = pnand %p341, %p342
    %p344 = pneg %p343
    // Predicated region
    $region57: #{deep_sia_res_block_forward.2} parent=5 // pred_check
      _
    $region58: #{deep_sia_res_block_forward.2} parent=5 // pred_check_branch
      %346 = sbr.rel (%p343) target = $region60
    $region59: #{deep_sia_res_block_forward.2} parent=5 // pred_region
      %s347 = ssub.s32 %s18, 1
      %s348 = smul.u32 4, %s23
      %p349 = scmp.lt.s32.totalorder %s348, 7
      %s350 = scalar_select %p349, %s348, 7
      %s351 = smul.addr %s350, 18
      %s352 = smul.addr %s351, 4
      %s353 = scalar_lea.vmem %s0, %s352
      %p354 = pneg %p44
      %p355 = pneg %p41
      %p356 = pneg %p65
      %p357 = pneg %p62
      %p358 = pneg %p86
      %p359 = pneg %p83
      %p360 = pneg %p107
      %p361 = pneg %p104
      %p362 = pneg %p128
      %p363 = pneg %p125
      %p364 = pneg %p149
      %p365 = pneg %p146
      %p366 = pneg %p170
      %p367 = pneg %p167
      %p368 = pneg %p191
      %p369 = pneg %p188
      %p370 = pneg %p212
      %p371 = pneg %p209
      %p372 = pneg %p233
      %p373 = pneg %p230
      %p374 = pneg %p259
      %p375 = pneg %p256
      %p376 = scmp.lt.s32.totalorder %s23, 1
      %s377 = scalar_select %p376, %s23, 1
      %s378 = smul.addr %s377, 8
      %s379 = smul.addr %s378, 4
      %s380 = scalar_lea.vmem %s10, %s379
      %p381 = pneg %p285
      %p382 = pneg %p282
      %p383 = scmp.lt.s32.totalorder %s23, 1
      %s384 = scalar_select %p383, %s23, 1
      %s385 = smul.addr %s384, 8
      %s386 = smul.addr %s385, 4
      %s387 = scalar_lea.vmem %s11, %s386
      %s388 = smul.u32 4, %s23
      %p389 = scmp.lt.s32.totalorder %s388, 7
      %s390 = scalar_select %p389, %s388, 7
      %s391 = smul.addr %s390, 18
      %s392 = smul.addr %s391, 4
      %s393 = scalar_lea.vmem %s0, %s392
      %s394 = smul.u32 4, %s23
      %p395 = scmp.lt.s32.totalorder %s23, 1
      %s396 = scalar_select %p395, %s23, 1
      %s397 = smul.addr %s396, 8
      %s398 = smul.addr %s397, 4
      %s399 = scalar_lea.vmem %s10, %s398
      %p400 = scmp.lt.s32.totalorder %s23, 1
      %s401 = scalar_select %p400, %s23, 1
      %s402 = smul.addr %s401, 8
      %s403 = smul.addr %s402, 4
      %s404 = scalar_lea.vmem %s11, %s403
      %v406 = vld [vmem:[%s393] sm:$0xf]
      %v407 = vld [vmem:[%s393 + $0x4] sm:$0x1]
      %v408 = vld [vmem:[%s393 + $0x8] sm:$0xf]
      %v409 = vld [vmem:[%s393 + $0xc] sm:$0x1]
      %v410 = vld [vmem:[%s393 + $0x10] sm:$0xf]
      %v411 = vld [vmem:[%s393 + $0x14] sm:$0x1]
      %v412 = vld [vmem:[%s393 + $0x18] sm:$0xf]
      %v413 = vld [vmem:[%s393 + $0x1c] sm:$0x1]
      %v414 = vld [vmem:[%s393 + $0x20] sm:$0xf]
      %v415 = vld [vmem:[%s393 + $0x24] sm:$0x1]
      %v416 = vld [vmem:[%s393 + $0x28] sm:$0xf]
      %v417 = vld [vmem:[%s393 + $0x2c] sm:$0x1]
      %v418 = vld [vmem:[%s393 + $0x30] sm:$0xf]
      %v419 = vld [vmem:[%s393 + $0x34] sm:$0x1]
      %v420 = vld [vmem:[%s393 + $0x38] sm:$0xf]
      %v421 = vld [vmem:[%s393 + $0x3c] sm:$0x1]
      %v422 = vld [vmem:[%s393 + $0x40] sm:$0xf]
      %v423 = vld [vmem:[%s393 + $0x44] sm:$0x1]
      %v424 = vld [vmem:[%s393 + $0x48] sm:$0xf]
      %v425 = vld [vmem:[%s393 + $0x50] sm:$0xf]
      %v426 = vld [vmem:[%s393 + $0x58] sm:$0xf]
      %v427 = vld [vmem:[%s393 + $0x60] sm:$0xf]
      %v428 = vld [vmem:[%s393 + $0x68] sm:$0xf]
      %v429 = vld [vmem:[%s393 + $0x70] sm:$0xf]
      %v430 = vld [vmem:[%s393 + $0x78] sm:$0xf]
      %v431 = vld [vmem:[%s393 + $0x80] sm:$0xf]
      %v432 = vld [vmem:[%s393 + $0x88] sm:$0xf]
      %v433 = vld [vmem:[%s393 + $0x90] sm:$0xf]
      %v434 = vld [vmem:[%s393 + $0x94] sm:$0x1]
      %v435 = vld [vmem:[%s393 + $0x98] sm:$0xf]
      %v436 = vld [vmem:[%s393 + $0x9c] sm:$0x1]
      %v437 = vld [vmem:[%s393 + $0xa0] sm:$0xf]
      %v438 = vld [vmem:[%s393 + $0xa4] sm:$0x1]
      %v439 = vld [vmem:[%s393 + $0xa8] sm:$0xf]
      %v440 = vld [vmem:[%s393 + $0xac] sm:$0x1]
      %v441 = vld [vmem:[%s393 + $0xb0] sm:$0xf]
      %v442 = vld [vmem:[%s393 + $0xb4] sm:$0x1]
      %v443 = vld [vmem:[%s393 + $0xb8] sm:$0xf]
      %v444 = vld [vmem:[%s393 + $0xbc] sm:$0x1]
      %v445 = vld [vmem:[%s393 + $0xc0] sm:$0xf]
      %v446 = vld [vmem:[%s393 + $0xc4] sm:$0x1]
      %v447 = vld [vmem:[%s393 + $0xc8] sm:$0xf]
      %v448 = vld [vmem:[%s393 + $0xcc] sm:$0x1]
      %v449 = vld [vmem:[%s393 + $0xd8] sm:$0xf]
      %v450 = vld [vmem:[%s393 + $0xe0] sm:$0xf]
      %v451 = vld [vmem:[%s393 + $0xe8] sm:$0xf]
      %v452 = vld [vmem:[%s393 + $0xf0] sm:$0xf]
      %v453 = vld [vmem:[%s393 + $0xf8] sm:$0xf]
      %v454 = vld [vmem:[%s393 + $0x100] sm:$0xf]
      %v455 = vld [vmem:[%s393 + $0x108] sm:$0xf]
      %v456 = vld [vmem:[%s393 + $0x110] sm:$0xf]
      %v457 = vunpack.c.l.bf16 %v406
      %v458 = vunpack.c.l.bf16 %v407
      %v459 = vunpack.c.l.bf16 %v408
      %v460 = vunpack.c.l.bf16 %v409
      %v461 = vunpack.c.l.bf16 %v410
      %v462 = vunpack.c.l.bf16 %v411
      %v463 = vunpack.c.l.bf16 %v412
      %v464 = vunpack.c.l.bf16 %v413
      %v465 = vunpack.c.l.bf16 %v414
      %v466 = vunpack.c.l.bf16 %v415
      %v467 = vunpack.c.l.bf16 %v416
      %v468 = vunpack.c.l.bf16 %v417
      %v469 = vunpack.c.l.bf16 %v418
      %v470 = vunpack.c.l.bf16 %v419
      %v471 = vunpack.c.l.bf16 %v420
      %v472 = vunpack.c.l.bf16 %v421
      %v473 = vunpack.c.l.bf16 %v422
      %v474 = vunpack.c.l.bf16 %v423
      %v475 = vunpack.c.l.bf16 %v424
      %v476 = vunpack.c.l.bf16 %v425
      %v477 = vunpack.c.l.bf16 %v426
      %v478 = vunpack.c.l.bf16 %v427
      %v479 = vunpack.c.l.bf16 %v428
      %v480 = vunpack.c.l.bf16 %v429
      %v481 = vunpack.c.l.bf16 %v430
      %v482 = vunpack.c.l.bf16 %v431
      %v483 = vunpack.c.l.bf16 %v432
      %v484 = vunpack.c.l.bf16 %v433
      %v485 = vunpack.c.l.bf16 %v434
      %v486 = vunpack.c.l.bf16 %v435
      %v487 = vunpack.c.l.bf16 %v436
      %v488 = vunpack.c.l.bf16 %v437
      %v489 = vunpack.c.l.bf16 %v438
      %v490 = vunpack.c.l.bf16 %v439
      %v491 = vunpack.c.l.bf16 %v440
      %v492 = vunpack.c.l.bf16 %v441
      %v493 = vunpack.c.l.bf16 %v442
      %v494 = vunpack.c.l.bf16 %v443
      %v495 = vunpack.c.l.bf16 %v444
      %v496 = vunpack.c.l.bf16 %v445
      %v497 = vunpack.c.l.bf16 %v446
      %v498 = vunpack.c.l.bf16 %v447
      %v499 = vunpack.c.l.bf16 %v448
      %v500 = vunpack.c.l.bf16 %v449
      %v501 = vunpack.c.l.bf16 %v450
      %v502 = vunpack.c.l.bf16 %v451
      %v503 = vunpack.c.l.bf16 %v452
      %v504 = vunpack.c.l.bf16 %v453
      %v505 = vunpack.c.l.bf16 %v454
      %v506 = vunpack.c.l.bf16 %v455
      %v507 = vunpack.c.l.bf16 %v456
      %v508 = vld [vmem:[%s8] sm:$0x1]
      %v510 = vlaneseq
      %v511 = vshrl.u32 %v510, 7
      %v512 = vsub.s32 0, %v511
      %v513 = vrot.slane %v508, %v512
      %v515 = vmul.f32 %v500, %v513
      %v516 = vmul.f32 %v501, %v513
      %v517 = vmul.f32 %v502, %v513
      %v518 = vmul.f32 %v503, %v513
      %v519 = vmul.f32 %v504, %v513
      %v520 = vmul.f32 %v505, %v513
      %v521 = vmul.f32 %v506, %v513
      %v522 = vmul.f32 %v507, %v513
      %v523 = vld [vmem:[%s9] sm:$0x1]
      %v525 = vlaneseq
      %v526 = vshrl.u32 %v525, 7
      %v527 = vsub.s32 0, %v526
      %v528 = vrot.slane %v523, %v527
      %v530 = vadd.f32 %v515, %v528
      %v531 = vadd.f32 %v516, %v528
      %v532 = vadd.f32 %v517, %v528
      %v533 = vadd.f32 %v518, %v528
      %v534 = vadd.f32 %v519, %v528
      %v535 = vadd.f32 %v520, %v528
      %v536 = vadd.f32 %v521, %v528
      %v537 = vadd.f32 %v522, %v528
      %v538 = vpack.c.bf16 %v531, %v530
      %v539 = vpack.c.bf16 %v533, %v532
      %v540 = vpack.c.bf16 %v535, %v534
      %v541 = vpack.c.bf16 %v537, %v536
      %v542 = vld [vmem:[%s6] sm:$0x3]
      %v543 = vld [vmem:[%s7] sm:$0x1]
      %v545 = vlaneseq
      %v546 = vshrl.u32 %v545, 7
      %v547 = vsub.s32 0, %v546
      %v548 = vrot.slane %v543, %v547
      %vm550 = vcmask 31744
      %v552 = vsel %vm550, %v538, 0
      %v555 = vsel %vm550, %v539, 0
      %v558 = vsel %vm550, %v540, 0
      %v561 = vsel %vm550, %v541, 0
      %vm563 = vcmask 1041408
      %v565 = vsel %vm563, %v542, 0
      %567 = vmatprep.subr.bf16.mxu0 0
      %568 = vmatpush1.bf16.msra.mxu0 %v565
      %569 = vmatprep.subr.bf16.mxu0 0
      %570 = vmatpush1.bf16.msra.mxu0 0
      %571 = vmatprep.subr.bf16.mxu0 0
      %572 = vmatpush1.bf16.msra.mxu0 0
      %573 = vmatprep.subr.bf16.mxu0 0
      %574 = vmatpush1.bf16.msra.mxu0 0
      %575 = vmatprep.subr.bf16.mxu0 0
      %576 = vmatpush1.bf16.msra.mxu0 0
      %577 = vmatprep.subr.bf16.mxu0 0
      %578 = vmatpush1.bf16.msra.mxu0 0
      %579 = vmatprep.subr.bf16.mxu0 0
      %580 = vmatpush1.bf16.msra.mxu0 0
      %581 = vmatprep.subr.bf16.mxu0 0
      %582 = vmatpush1.bf16.msra.mxu0 0
      %583 = vmatprep.subr.bf16.mxu0 0
      %584 = vmatpush1.bf16.msra.mxu0 0
      %585 = vmatprep.subr.bf16.mxu0 0
      %586 = vmatpush1.bf16.msra.mxu0 0
      %587 = vmatprep.subr.bf16.mxu0 0
      %588 = vmatpush1.bf16.msra.mxu0 0
      %589 = vmatprep.subr.bf16.mxu0 0
      %590 = vmatpush1.bf16.msra.mxu0 0
      %591 = vmatprep.subr.bf16.mxu0 0
      %592 = vmatpush1.bf16.msra.mxu0 0
      %593 = vmatprep.subr.bf16.mxu0 0
      %594 = vmatpush1.bf16.msra.mxu0 0
      %595 = vmatprep.subr.bf16.mxu0 0
      %596 = vmatpush1.bf16.msra.mxu0 0
      %597 = vmatprep.subr.bf16.mxu0 0
      %598 = vmatpush1.bf16.msra.mxu0 0
      %599 = vmatprep.mubr.bf16.mxu0 0
      %600 = vmatmul.mubr.bf16.gmra.mrb[0].mxu0 %v552
      %v601 = vpop.f32.mrb[0].mxu0
      %v602 = vadd.f32 %v548, %v601
      %v603 = vpop.f32.mrb[0].mxu0
      %v604 = vpop.f32.mrb[0].mxu0
      %v605 = vadd.f32 %v548, %v604
      %v606 = vpop.f32.mrb[0].mxu0
      %607 = vmatprep.mubr.bf16.mxu0 0
      %608 = vmatmul.mubr.bf16.gmra.mrb[0].mxu0 %v555
      %v609 = vpop.f32.mrb[0].mxu0
      %v610 = vadd.f32 %v548, %v609
      %v611 = vpop.f32.mrb[0].mxu0
      %v612 = vpop.f32.mrb[0].mxu0
      %v613 = vadd.f32 %v548, %v612
      %v614 = vpop.f32.mrb[0].mxu0
      %615 = vmatprep.mubr.bf16.mxu0 0
      %616 = vmatmul.mubr.bf16.gmra.mrb[0].mxu0 %v558
      %v617 = vpop.f32.mrb[0].mxu0
      %v618 = vadd.f32 %v548, %v617
      %v619 = vpop.f32.mrb[0].mxu0
      %v620 = vpop.f32.mrb[0].mxu0
      %v621 = vadd.f32 %v548, %v620
      %v622 = vpop.f32.mrb[0].mxu0
      %623 = vmatprep.mubr.bf16.mxu0 0
      %624 = vmatmul.mubr.bf16.gmra.mrb[0].mxu0 %v561
      %v625 = vpop.f32.mrb[0].mxu0
      %v626 = vadd.f32 %v548, %v625
      %v627 = vpop.f32.mrb[0].mxu0
      %v628 = vpop.f32.mrb[0].mxu0
      %v629 = vadd.f32 %v548, %v628
      %v630 = vpop.f32.mrb[0].mxu0
      %631 = vdwg.mxu0
      %v632 = vpack.c.bf16 %v605, %v602
      %v633 = vpack.c.bf16 %v613, %v610
      %v634 = vpack.c.bf16 %v621, %v618
      %v635 = vpack.c.bf16 %v629, %v626
      %v640 = vunpack.c.l.b16 %v632
      %v641 = vunpack.c.h.b16 %v632
      %v642 = vunpack.c.l.b16 %v633
      %v643 = vunpack.c.h.b16 %v633
      %v644 = vunpack.c.l.b16 %v634
      %v645 = vunpack.c.h.b16 %v634
      %v646 = vunpack.c.l.b16 %v635
      %v647 = vunpack.c.h.b16 %v635
      %v648 = vpack.c.b16 %v640, %v640
      %v649 = vpack.c.b16 %v641, %v641
      %v650 = vpack.c.b16 %v642, %v642
      %v651 = vpack.c.b16 %v643, %v643
      %v652 = vpack.c.b16 %v644, %v644
      %v653 = vpack.c.b16 %v645, %v645
      %v654 = vpack.c.b16 %v646, %v646
      %v655 = vpack.c.b16 %v647, %v647
      %vm664 = vcmask 60416
      %665 = vst.msk [vmem:[%s404] sm:$0xf] %vm664, %v648
      %666 = vst.msk [vmem:[%s404 + $0x4] sm:$0xf] %vm664, %v649
      %667 = vst.msk [vmem:[%s404 + $0x8] sm:$0xf] %vm664, %v650
      %668 = vst.msk [vmem:[%s404 + $0xc] sm:$0xf] %vm664, %v651
      %669 = vst.msk [vmem:[%s404 + $0x10] sm:$0xf] %vm664, %v652
      %670 = vst.msk [vmem:[%s404 + $0x14] sm:$0xf] %vm664, %v653
      %671 = vst.msk [vmem:[%s404 + $0x18] sm:$0xf] %vm664, %v654
      %672 = vst.msk [vmem:[%s404 + $0x1c] sm:$0xf] %vm664, %v655
      %v673 = vld [vmem:[%s4] sm:$0x1]
      %v675 = vlaneseq
      %v676 = vshrl.u32 %v675, 7
      %v677 = vsub.s32 0, %v676
      %v678 = vrot.slane %v673, %v677
      %v680 = vmul.f32 %v457, %v678
      %v681 = vmul.f32 %v458, %v678
      %v682 = vmul.f32 %v459, %v678
      %v683 = vmul.f32 %v460, %v678
      %v684 = vmul.f32 %v461, %v678
      %v685 = vmul.f32 %v462, %v678
      %v686 = vmul.f32 %v463, %v678
      %v687 = vmul.f32 %v464, %v678
      %v688 = vmul.f32 %v465, %v678
      %v689 = vmul.f32 %v466, %v678
      %v690 = vmul.f32 %v467, %v678
      %v691 = vmul.f32 %v468, %v678
      %v692 = vmul.f32 %v469, %v678
      %v693 = vmul.f32 %v470, %v678
      %v694 = vmul.f32 %v471, %v678
      %v695 = vmul.f32 %v472, %v678
      %v696 = vmul.f32 %v473, %v678
      %v697 = vmul.f32 %v474, %v678
      %v698 = vmul.f32 %v475, %v678
      %v699 = vmul.f32 %v476, %v678
      %v700 = vmul.f32 %v477, %v678
      %v701 = vmul.f32 %v478, %v678
      %v702 = vmul.f32 %v479, %v678
      %v703 = vmul.f32 %v480, %v678
      %v704 = vmul.f32 %v481, %v678
      %v705 = vmul.f32 %v482, %v678
      %v706 = vmul.f32 %v483, %v678
      %v707 = vmul.f32 %v484, %v678
      %v708 = vmul.f32 %v485, %v678
      %v709 = vmul.f32 %v486, %v678
      %v710 = vmul.f32 %v487, %v678
      %v711 = vmul.f32 %v488, %v678
      %v712 = vmul.f32 %v489, %v678
      %v713 = vmul.f32 %v490, %v678
      %v714 = vmul.f32 %v491, %v678
      %v715 = vmul.f32 %v492, %v678
      %v716 = vmul.f32 %v493, %v678
      %v717 = vmul.f32 %v494, %v678
      %v718 = vmul.f32 %v495, %v678
      %v719 = vmul.f32 %v496, %v678
      %v720 = vmul.f32 %v497, %v678
      %v721 = vmul.f32 %v498, %v678
      %v722 = vmul.f32 %v499, %v678
      %v723 = vmul.f32 %v500, %v678
      %v724 = vmul.f32 %v501, %v678
      %v725 = vmul.f32 %v502, %v678
      %v726 = vmul.f32 %v503, %v678
      %v727 = vmul.f32 %v504, %v678
      %v728 = vmul.f32 %v505, %v678
      %v729 = vmul.f32 %v506, %v678
      %v730 = vmul.f32 %v507, %v678
      %v731 = vld [vmem:[%s5] sm:$0x1]
      %v733 = vlaneseq
      %v734 = vshrl.u32 %v733, 7
      %v735 = vsub.s32 0, %v734
      %v736 = vrot.slane %v731, %v735
      %v738 = vadd.f32 %v680, %v736
      %v739 = vadd.f32 %v681, %v736
      %v740 = vadd.f32 %v682, %v736
      %v741 = vadd.f32 %v683, %v736
      %v742 = vadd.f32 %v684, %v736
      %v743 = vadd.f32 %v685, %v736
      %v744 = vadd.f32 %v686, %v736
      %v745 = vadd.f32 %v687, %v736
      %v746 = vadd.f32 %v688, %v736
      %v747 = vadd.f32 %v689, %v736
      %v748 = vadd.f32 %v690, %v736
      %v749 = vadd.f32 %v691, %v736
      %v750 = vadd.f32 %v692, %v736
      %v751 = vadd.f32 %v693, %v736
      %v752 = vadd.f32 %v694, %v736
      %v753 = vadd.f32 %v695, %v736
      %v754 = vadd.f32 %v696, %v736
      %v755 = vadd.f32 %v697, %v736
      %v756 = vadd.f32 %v698, %v736
      %v757 = vadd.f32 %v699, %v736
      %v758 = vadd.f32 %v700, %v736
      %v759 = vadd.f32 %v701, %v736
      %v760 = vadd.f32 %v702, %v736
      %v761 = vadd.f32 %v703, %v736
      %v762 = vadd.f32 %v704, %v736
      %v763 = vadd.f32 %v705, %v736
      %v764 = vadd.f32 %v706, %v736
      %v765 = vadd.f32 %v707, %v736
      %v766 = vadd.f32 %v708, %v736
      %v767 = vadd.f32 %v709, %v736
      %v768 = vadd.f32 %v710, %v736
      %v769 = vadd.f32 %v711, %v736
      %v770 = vadd.f32 %v712, %v736
      %v771 = vadd.f32 %v713, %v736
      %v772 = vadd.f32 %v714, %v736
      %v773 = vadd.f32 %v715, %v736
      %v774 = vadd.f32 %v716, %v736
      %v775 = vadd.f32 %v717, %v736
      %v776 = vadd.f32 %v718, %v736
      %v777 = vadd.f32 %v719, %v736
      %v778 = vadd.f32 %v720, %v736
      %v779 = vadd.f32 %v721, %v736
      %v780 = vadd.f32 %v722, %v736
      %v781 = vadd.f32 %v723, %v736
      %v782 = vadd.f32 %v724, %v736
      %v783 = vadd.f32 %v725, %v736
      %v784 = vadd.f32 %v726, %v736
      %v785 = vadd.f32 %v727, %v736
      %v786 = vadd.f32 %v728, %v736
      %v787 = vadd.f32 %v729, %v736
      %v788 = vadd.f32 %v730, %v736
      %vm789 = vcmp.ge.f32.partialorder %v738, 0.0
      %vm790 = vcmp.ge.f32.partialorder %v739, 0.0
      %vm791 = vcmp.ge.f32.partialorder %v740, 0.0
      %vm792 = vcmp.ge.f32.partialorder %v741, 0.0
      %vm793 = vcmp.ge.f32.partialorder %v742, 0.0
      %vm794 = vcmp.ge.f32.partialorder %v743, 0.0
      %vm795 = vcmp.ge.f32.partialorder %v744, 0.0
      %vm796 = vcmp.ge.f32.partialorder %v745, 0.0
      %vm797 = vcmp.ge.f32.partialorder %v746, 0.0
      %vm798 = vcmp.ge.f32.partialorder %v747, 0.0
      %vm799 = vcmp.ge.f32.partialorder %v748, 0.0
      %vm800 = vcmp.ge.f32.partialorder %v749, 0.0
      %vm801 = vcmp.ge.f32.partialorder %v750, 0.0
      %vm802 = vcmp.ge.f32.partialorder %v751, 0.0
      %vm803 = vcmp.ge.f32.partialorder %v752, 0.0
      %vm804 = vcmp.ge.f32.partialorder %v753, 0.0
      %vm805 = vcmp.ge.f32.partialorder %v754, 0.0
      %vm806 = vcmp.ge.f32.partialorder %v755, 0.0
      %vm807 = vcmp.ge.f32.partialorder %v756, 0.0
      %vm808 = vcmp.ge.f32.partialorder %v757, 0.0
      %vm809 = vcmp.ge.f32.partialorder %v758, 0.0
      %vm810 = vcmp.ge.f32.partialorder %v759, 0.0
      %vm811 = vcmp.ge.f32.partialorder %v760, 0.0
      %vm812 = vcmp.ge.f32.partialorder %v761, 0.0
      %vm813 = vcmp.ge.f32.partialorder %v762, 0.0
      %vm814 = vcmp.ge.f32.partialorder %v763, 0.0
      %vm815 = vcmp.ge.f32.partialorder %v764, 0.0
      %vm816 = vcmp.ge.f32.partialorder %v765, 0.0
      %vm817 = vcmp.ge.f32.partialorder %v766, 0.0
      %vm818 = vcmp.ge.f32.partialorder %v767, 0.0
      %vm819 = vcmp.ge.f32.partialorder %v768, 0.0
      %vm820 = vcmp.ge.f32.partialorder %v769, 0.0
      %vm821 = vcmp.ge.f32.partialorder %v770, 0.0
      %vm822 = vcmp.ge.f32.partialorder %v771, 0.0
      %vm823 = vcmp.ge.f32.partialorder %v772, 0.0
      %vm824 = vcmp.ge.f32.partialorder %v773, 0.0
      %vm825 = vcmp.ge.f32.partialorder %v774, 0.0
      %vm826 = vcmp.ge.f32.partialorder %v775, 0.0
      %vm827 = vcmp.ge.f32.partialorder %v776, 0.0
      %vm828 = vcmp.ge.f32.partialorder %v777, 0.0
      %vm829 = vcmp.ge.f32.partialorder %v778, 0.0
      %vm830 = vcmp.ge.f32.partialorder %v779, 0.0
      %vm831 = vcmp.ge.f32.partialorder %v780, 0.0
      %vm832 = vcmp.ge.f32.partialorder %v781, 0.0
      %vm833 = vcmp.ge.f32.partialorder %v782, 0.0
      %vm834 = vcmp.ge.f32.partialorder %v783, 0.0
      %vm835 = vcmp.ge.f32.partialorder %v784, 0.0
      %vm836 = vcmp.ge.f32.partialorder %v785, 0.0
      %vm837 = vcmp.ge.f32.partialorder %v786, 0.0
      %vm838 = vcmp.ge.f32.partialorder %v787, 0.0
      %vm839 = vcmp.ge.f32.partialorder %v788, 0.0
      %v840 = vmul.f32 %v738, 0.01
      %v841 = vmul.f32 %v739, 0.01
      %v842 = vmul.f32 %v740, 0.01
      %v843 = vmul.f32 %v741, 0.01
      %v844 = vmul.f32 %v742, 0.01
      %v845 = vmul.f32 %v743, 0.01
      %v846 = vmul.f32 %v744, 0.01
      %v847 = vmul.f32 %v745, 0.01
      %v848 = vmul.f32 %v746, 0.01
      %v849 = vmul.f32 %v747, 0.01
      %v850 = vmul.f32 %v748, 0.01
      %v851 = vmul.f32 %v749, 0.01
      %v852 = vmul.f32 %v750, 0.01
      %v853 = vmul.f32 %v751, 0.01
      %v854 = vmul.f32 %v752, 0.01
      %v855 = vmul.f32 %v753, 0.01
      %v856 = vmul.f32 %v754, 0.01
      %v857 = vmul.f32 %v755, 0.01
      %v858 = vmul.f32 %v756, 0.01
      %v859 = vmul.f32 %v757, 0.01
      %v860 = vmul.f32 %v758, 0.01
      %v861 = vmul.f32 %v759, 0.01
      %v862 = vmul.f32 %v760, 0.01
      %v863 = vmul.f32 %v761, 0.01
      %v864 = vmul.f32 %v762, 0.01
      %v865 = vmul.f32 %v763, 0.01
      %v866 = vmul.f32 %v764, 0.01
      %v867 = vmul.f32 %v765, 0.01
      %v868 = vmul.f32 %v766, 0.01
      %v869 = vmul.f32 %v767, 0.01
      %v870 = vmul.f32 %v768, 0.01
      %v871 = vmul.f32 %v769, 0.01
      %v872 = vmul.f32 %v770, 0.01
      %v873 = vmul.f32 %v771, 0.01
      %v874 = vmul.f32 %v772, 0.01
      %v875 = vmul.f32 %v773, 0.01
      %v876 = vmul.f32 %v774, 0.01
      %v877 = vmul.f32 %v775, 0.01
      %v878 = vmul.f32 %v776, 0.01
      %v879 = vmul.f32 %v777, 0.01
      %v880 = vmul.f32 %v778, 0.01
      %v881 = vmul.f32 %v779, 0.01
      %v882 = vmul.f32 %v780, 0.01
      %v883 = vmul.f32 %v781, 0.01
      %v884 = vmul.f32 %v782, 0.01
      %v885 = vmul.f32 %v783, 0.01
      %v886 = vmul.f32 %v784, 0.01
      %v887 = vmul.f32 %v785, 0.01
      %v888 = vmul.f32 %v786, 0.01
      %v889 = vmul.f32 %v787, 0.01
      %v890 = vmul.f32 %v788, 0.01
      %v891 = vsel %vm789, %v738, %v840
      %v892 = vsel %vm790, %v739, %v841
      %v893 = vsel %vm791, %v740, %v842
      %v894 = vsel %vm792, %v741, %v843
      %v895 = vsel %vm793, %v742, %v844
      %v896 = vsel %vm794, %v743, %v845
      %v897 = vsel %vm795, %v744, %v846
      %v898 = vsel %vm796, %v745, %v847
      %v899 = vsel %vm797, %v746, %v848
      %v900 = vsel %vm798, %v747, %v849
      %v901 = vsel %vm799, %v748, %v850
      %v902 = vsel %vm800, %v749, %v851
      %v903 = vsel %vm801, %v750, %v852
      %v904 = vsel %vm802, %v751, %v853
      %v905 = vsel %vm803, %v752, %v854
      %v906 = vsel %vm804, %v753, %v855
      %v907 = vsel %vm805, %v754, %v856
      %v908 = vsel %vm806, %v755, %v857
      %v909 = vsel %vm807, %v756, %v858
      %v910 = vsel %vm808, %v757, %v859
      %v911 = vsel %vm809, %v758, %v860
      %v912 = vsel %vm810, %v759, %v861
      %v913 = vsel %vm811, %v760, %v862
      %v914 = vsel %vm812, %v761, %v863
      %v915 = vsel %vm813, %v762, %v864
      %v916 = vsel %vm814, %v763, %v865
      %v917 = vsel %vm815, %v764, %v866
      %v918 = vsel %vm816, %v765, %v867
      %v919 = vsel %vm817, %v766, %v868
      %v920 = vsel %vm818, %v767, %v869
      %v921 = vsel %vm819, %v768, %v870
      %v922 = vsel %vm820, %v769, %v871
      %v923 = vsel %vm821, %v770, %v872
      %v924 = vsel %vm822, %v771, %v873
      %v925 = vsel %vm823, %v772, %v874
      %v926 = vsel %vm824, %v773, %v875
      %v927 = vsel %vm825, %v774, %v876
      %v928 = vsel %vm826, %v775, %v877
      %v929 = vsel %vm827, %v776, %v878
      %v930 = vsel %vm828, %v777, %v879
      %v931 = vsel %vm829, %v778, %v880
      %v932 = vsel %vm830, %v779, %v881
      %v933 = vsel %vm831, %v780, %v882
      %v934 = vsel %vm832, %v781, %v883
      %v935 = vsel %vm833, %v782, %v884
      %v936 = vsel %vm834, %v783, %v885
      %v937 = vsel %vm835, %v784, %v886
      %v938 = vsel %vm836, %v785, %v887
      %v939 = vsel %vm837, %v786, %v888
      %v940 = vsel %vm838, %v787, %v889
      %v941 = vsel %vm839, %v788, %v890
      %v942 = vld [vmem:[%s1] sm:$0xff]
      %v943 = vld [vmem:[%s1 + $0x8] sm:$0x1]
      %v944 = vld [vmem:[%s1 + $0x10] sm:$0xff]
      %v945 = vld [vmem:[%s1 + $0x18] sm:$0x1]
      %v946 = vld [vmem:[%s1 + $0x20] sm:$0xff]
      %v947 = vld [vmem:[%s1 + $0x28] sm:$0x1]
      %v948 = vld [vmem:[%s1 + $0x30] sm:$0xff]
      %v949 = vld [vmem:[%s1 + $0x38] sm:$0x1]
      %v950 = vld [vmem:[%s1 + $0x40] sm:$0xff]
      %v951 = vld [vmem:[%s1 + $0x48] sm:$0x1]
      %v952 = vld [vmem:[%s1 + $0x50] sm:$0xff]
      %v953 = vld [vmem:[%s1 + $0x58] sm:$0x1]
      %v954 = vld [vmem:[%s1 + $0x60] sm:$0xff]
      %v955 = vld [vmem:[%s1 + $0x68] sm:$0x1]
      %v956 = vld [vmem:[%s1 + $0x70] sm:$0xff]
      %v957 = vld [vmem:[%s1 + $0x78] sm:$0x1]
      %v958 = vld [vmem:[%s1 + $0x80] sm:$0xff]
      %v959 = vld [vmem:[%s1 + $0x88] sm:$0x1]
      %v960 = vld [vmem:[%s1 + $0x90] sm:$0xff]
      %v961 = vld [vmem:[%s1 + $0xa0] sm:$0xff]
      %v962 = vld [vmem:[%s1 + $0xb0] sm:$0xff]
      %v963 = vld [vmem:[%s1 + $0xc0] sm:$0xff]
      %v964 = vld [vmem:[%s1 + $0xd0] sm:$0xff]
      %v965 = vld [vmem:[%s1 + $0xe0] sm:$0xff]
      %v966 = vld [vmem:[%s1 + $0xf0] sm:$0xff]
      %v967 = vld [vmem:[%s1 + $0x100] sm:$0xff]
      %v968 = vld [vmem:[%s1 + $0x110] sm:$0xff]
      %v969 = vld [vmem:[%s1 + $0x120] sm:$0xff]
      %v970 = vld [vmem:[%s1 + $0x128] sm:$0x1]
      %v971 = vld [vmem:[%s1 + $0x130] sm:$0xff]
      %v972 = vld [vmem:[%s1 + $0x138] sm:$0x1]
      %v973 = vld [vmem:[%s1 + $0x140] sm:$0xff]
      %v974 = vld [vmem:[%s1 + $0x148] sm:$0x1]
      %v975 = vld [vmem:[%s1 + $0x150] sm:$0xff]
      %v976 = vld [vmem:[%s1 + $0x158] sm:$0x1]
      %v977 = vld [vmem:[%s1 + $0x160] sm:$0xff]
      %v978 = vld [vmem:[%s1 + $0x168] sm:$0x1]
      %v979 = vld [vmem:[%s1 + $0x170] sm:$0xff]
      %v980 = vld [vmem:[%s1 + $0x178] sm:$0x1]
      %v981 = vld [vmem:[%s1 + $0x180] sm:$0xff]
      %v982 = vld [vmem:[%s1 + $0x188] sm:$0x1]
      %v983 = vld [vmem:[%s1 + $0x190] sm:$0xff]
      %v984 = vld [vmem:[%s1 + $0x198] sm:$0x1]
      %v985 = vld [vmem:[%s1 + $0x1b0] sm:$0xff]
      %v986 = vld [vmem:[%s1 + $0x1c0] sm:$0xff]
      %v987 = vld [vmem:[%s1 + $0x1d0] sm:$0xff]
      %v988 = vld [vmem:[%s1 + $0x1e0] sm:$0xff]
      %v989 = vld [vmem:[%s1 + $0x1f0] sm:$0xff]
      %v990 = vld [vmem:[%s1 + $0x200] sm:$0xff]
      %v991 = vld [vmem:[%s1 + $0x210] sm:$0xff]
      %v992 = vld [vmem:[%s1 + $0x220] sm:$0xff]
      %994 = vset.pattern.permute.xlu0 0
      %995 = vperm.xlu0 %994, %v942
      %v996 = vpop.permute.xlu0 %995
      %999 = vset.pattern.permute.xlu0 0
      %1000 = vperm.xlu0 %999, %v943
      %v1001 = vpop.permute.xlu0 %1000
      %1004 = vset.pattern.permute.xlu0 0
      %1005 = vperm.xlu0 %1004, %v944
      %v1006 = vpop.permute.xlu0 %1005
      %1009 = vset.pattern.permute.xlu0 0
      %1010 = vperm.xlu0 %1009, %v945
      %v1011 = vpop.permute.xlu0 %1010
      %1014 = vset.pattern.permute.xlu0 0
      %1015 = vperm.xlu0 %1014, %v946
      %v1016 = vpop.permute.xlu0 %1015
      %1019 = vset.pattern.permute.xlu0 0
      %1020 = vperm.xlu0 %1019, %v947
      %v1021 = vpop.permute.xlu0 %1020
      %1024 = vset.pattern.permute.xlu0 0
      %1025 = vperm.xlu0 %1024, %v948
      %v1026 = vpop.permute.xlu0 %1025
      %1029 = vset.pattern.permute.xlu0 0
      %1030 = vperm.xlu0 %1029, %v949
      %v1031 = vpop.permute.xlu0 %1030
      %1034 = vset.pattern.permute.xlu0 0
      %1035 = vperm.xlu0 %1034, %v950
      %v1036 = vpop.permute.xlu0 %1035
      %1039 = vset.pattern.permute.xlu0 0
      %1040 = vperm.xlu0 %1039, %v951
      %v1041 = vpop.permute.xlu0 %1040
      %1044 = vset.pattern.permute.xlu0 0
      %1045 = vperm.xlu0 %1044, %v952
      %v1046 = vpop.permute.xlu0 %1045
      %1049 = vset.pattern.permute.xlu0 0
      %1050 = vperm.xlu0 %1049, %v953
      %v1051 = vpop.permute.xlu0 %1050
      %1054 = vset.pattern.permute.xlu0 0
      %1055 = vperm.xlu0 %1054, %v954
      %v1056 = vpop.permute.xlu0 %1055
      %1059 = vset.pattern.permute.xlu0 0
      %1060 = vperm.xlu0 %1059, %v955
      %v1061 = vpop.permute.xlu0 %1060
      %1064 = vset.pattern.permute.xlu0 0
      %1065 = vperm.xlu0 %1064, %v956
      %v1066 = vpop.permute.xlu0 %1065
      %1069 = vset.pattern.permute.xlu0 0
      %1070 = vperm.xlu0 %1069, %v957
      %v1071 = vpop.permute.xlu0 %1070
      %1074 = vset.pattern.permute.xlu0 0
      %1075 = vperm.xlu0 %1074, %v958
      %v1076 = vpop.permute.xlu0 %1075
      %1079 = vset.pattern.permute.xlu0 0
      %1080 = vperm.xlu0 %1079, %v959
      %v1081 = vpop.permute.xlu0 %1080
      %1084 = vset.pattern.permute.xlu0 0
      %1085 = vperm.xlu0 %1084, %v960
      %v1086 = vpop.permute.xlu0 %1085
      %1089 = vset.pattern.permute.xlu0 0
      %1090 = vperm.xlu0 %1089, %v961
      %v1091 = vpop.permute.xlu0 %1090
      %1094 = vset.pattern.permute.xlu0 0
      %1095 = vperm.xlu0 %1094, %v962
      %v1096 = vpop.permute.xlu0 %1095
      %1099 = vset.pattern.permute.xlu0 0
      %1100 = vperm.xlu0 %1099, %v963
      %v1101 = vpop.permute.xlu0 %1100
      %1104 = vset.pattern.permute.xlu0 0
      %1105 = vperm.xlu0 %1104, %v964
      %v1106 = vpop.permute.xlu0 %1105
      %1109 = vset.pattern.permute.xlu0 0
      %1110 = vperm.xlu0 %1109, %v965
      %v1111 = vpop.permute.xlu0 %1110
      %1114 = vset.pattern.permute.xlu0 0
      %1115 = vperm.xlu0 %1114, %v966
      %v1116 = vpop.permute.xlu0 %1115
      %1119 = vset.pattern.permute.xlu0 0
      %1120 = vperm.xlu0 %1119, %v967
      %v1121 = vpop.permute.xlu0 %1120
      %1124 = vset.pattern.permute.xlu0 0
      %1125 = vperm.xlu0 %1124, %v968
      %v1126 = vpop.permute.xlu0 %1125
      %1129 = vset.pattern.permute.xlu0 0
      %1130 = vperm.xlu0 %1129, %v969
      %v1131 = vpop.permute.xlu0 %1130
      %1134 = vset.pattern.permute.xlu0 0
      %1135 = vperm.xlu0 %1134, %v970
      %v1136 = vpop.permute.xlu0 %1135
      %1139 = vset.pattern.permute.xlu0 0
      %1140 = vperm.xlu0 %1139, %v971
      %v1141 = vpop.permute.xlu0 %1140
      %1144 = vset.pattern.permute.xlu0 0
      %1145 = vperm.xlu0 %1144, %v972
      %v1146 = vpop.permute.xlu0 %1145
      %1149 = vset.pattern.permute.xlu0 0
      %1150 = vperm.xlu0 %1149, %v973
      %v1151 = vpop.permute.xlu0 %1150
      %1154 = vset.pattern.permute.xlu0 0
      %1155 = vperm.xlu0 %1154, %v974
      %v1156 = vpop.permute.xlu0 %1155
      %1159 = vset.pattern.permute.xlu0 0
      %1160 = vperm.xlu0 %1159, %v975
      %v1161 = vpop.permute.xlu0 %1160
      %1164 = vset.pattern.permute.xlu0 0
      %1165 = vperm.xlu0 %1164, %v976
      %v1166 = vpop.permute.xlu0 %1165
      %1169 = vset.pattern.permute.xlu0 0
      %1170 = vperm.xlu0 %1169, %v977
      %v1171 = vpop.permute.xlu0 %1170
      %1174 = vset.pattern.permute.xlu0 0
      %1175 = vperm.xlu0 %1174, %v978
      %v1176 = vpop.permute.xlu0 %1175
      %1179 = vset.pattern.permute.xlu0 0
      %1180 = vperm.xlu0 %1179, %v979
      %v1181 = vpop.permute.xlu0 %1180
      %1184 = vset.pattern.permute.xlu0 0
      %1185 = vperm.xlu0 %1184, %v980
      %v1186 = vpop.permute.xlu0 %1185
      %1189 = vset.pattern.permute.xlu0 0
      %1190 = vperm.xlu0 %1189, %v981
      %v1191 = vpop.permute.xlu0 %1190
      %1194 = vset.pattern.permute.xlu0 0
      %1195 = vperm.xlu0 %1194, %v982
      %v1196 = vpop.permute.xlu0 %1195
      %1199 = vset.pattern.permute.xlu0 0
      %1200 = vperm.xlu0 %1199, %v983
      %v1201 = vpop.permute.xlu0 %1200
      %1204 = vset.pattern.permute.xlu0 0
      %1205 = vperm.xlu0 %1204, %v984
      %v1206 = vpop.permute.xlu0 %1205
      %1209 = vset.pattern.permute.xlu0 0
      %1210 = vperm.xlu0 %1209, %v985
      %v1211 = vpop.permute.xlu0 %1210
      %1214 = vset.pattern.permute.xlu0 0
      %1215 = vperm.xlu0 %1214, %v986
      %v1216 = vpop.permute.xlu0 %1215
      %1219 = vset.pattern.permute.xlu0 0
      %1220 = vperm.xlu0 %1219, %v987
      %v1221 = vpop.permute.xlu0 %1220
      %1224 = vset.pattern.permute.xlu0 0
      %1225 = vperm.xlu0 %1224, %v988
      %v1226 = vpop.permute.xlu0 %1225
      %1229 = vset.pattern.permute.xlu0 0
      %1230 = vperm.xlu0 %1229, %v989
      %v1231 = vpop.permute.xlu0 %1230
      %1234 = vset.pattern.permute.xlu0 0
      %1235 = vperm.xlu0 %1234, %v990
      %v1236 = vpop.permute.xlu0 %1235
      %1239 = vset.pattern.permute.xlu0 0
      %1240 = vperm.xlu0 %1239, %v991
      %v1241 = vpop.permute.xlu0 %1240
      %1244 = vset.pattern.permute.xlu0 0
      %1245 = vperm.xlu0 %1244, %v992
      %v1246 = vpop.permute.xlu0 %1245
      %v1248 = vmul.f32 %v891, %v996
      %v1249 = vmul.f32 %v892, %v1001
      %v1250 = vmul.f32 %v893, %v1006
      %v1251 = vmul.f32 %v894, %v1011
      %v1252 = vmul.f32 %v895, %v1016
      %v1253 = vmul.f32 %v896, %v1021
      %v1254 = vmul.f32 %v897, %v1026
      %v1255 = vmul.f32 %v898, %v1031
      %v1256 = vmul.f32 %v899, %v1036
      %v1257 = vmul.f32 %v900, %v1041
      %v1258 = vmul.f32 %v901, %v1046
      %v1259 = vmul.f32 %v902, %v1051
      %v1260 = vmul.f32 %v903, %v1056
      %v1261 = vmul.f32 %v904, %v1061
      %v1262 = vmul.f32 %v905, %v1066
      %v1263 = vmul.f32 %v906, %v1071
      %v1264 = vmul.f32 %v907, %v1076
      %v1265 = vmul.f32 %v908, %v1081
      %v1266 = vmul.f32 %v909, %v1086
      %v1267 = vmul.f32 %v910, %v1091
      %v1268 = vmul.f32 %v911, %v1096
      %v1269 = vmul.f32 %v912, %v1101
      %v1270 = vmul.f32 %v913, %v1106
      %v1271 = vmul.f32 %v914, %v1111
      %v1272 = vmul.f32 %v915, %v1116
      %v1273 = vmul.f32 %v916, %v1121
      %v1274 = vmul.f32 %v917, %v1126
      %v1275 = vmul.f32 %v918, %v1131
      %v1276 = vmul.f32 %v919, %v1136
      %v1277 = vmul.f32 %v920, %v1141
      %v1278 = vmul.f32 %v921, %v1146
      %v1279 = vmul.f32 %v922, %v1151
      %v1280 = vmul.f32 %v923, %v1156
      %v1281 = vmul.f32 %v924, %v1161
      %v1282 = vmul.f32 %v925, %v1166
      %v1283 = vmul.f32 %v926, %v1171
      %v1284 = vmul.f32 %v927, %v1176
      %v1285 = vmul.f32 %v928, %v1181
      %v1286 = vmul.f32 %v929, %v1186
      %v1287 = vmul.f32 %v930, %v1191
      %v1288 = vmul.f32 %v931, %v1196
      %v1289 = vmul.f32 %v932, %v1201
      %v1290 = vmul.f32 %v933, %v1206
      %v1291 = vmul.f32 %v934, %v1211
      %v1292 = vmul.f32 %v935, %v1216
      %v1293 = vmul.f32 %v936, %v1221
      %v1294 = vmul.f32 %v937, %v1226
      %v1295 = vmul.f32 %v938, %v1231
      %v1296 = vmul.f32 %v939, %v1236
      %v1297 = vmul.f32 %v940, %v1241
      %v1298 = vmul.f32 %v941, %v1246
      %vm1315 = vcmask 1046528
      %v1316 = vrot.slane %v1248, 1
      %v1317 = vrot.slane %v1249, 1
      %v1318 = vsel %vm1315, %v1316, %v1317
      %v1319 = vrot.slane %v1250, 1
      %v1320 = vrot.slane %v1251, 1
      %v1321 = vsel %vm1315, %v1319, %v1320
      %v1322 = vrot.slane %v1252, 1
      %v1323 = vrot.slane %v1253, 1
      %v1324 = vsel %vm1315, %v1322, %v1323
      %v1325 = vrot.slane %v1254, 1
      %v1326 = vrot.slane %v1255, 1
      %v1327 = vsel %vm1315, %v1325, %v1326
      %v1328 = vrot.slane %v1256, 1
      %v1329 = vrot.slane %v1257, 1
      %v1330 = vsel %vm1315, %v1328, %v1329
      %v1331 = vrot.slane %v1258, 1
      %v1332 = vrot.slane %v1259, 1
      %v1333 = vsel %vm1315, %v1331, %v1332
      %v1334 = vrot.slane %v1260, 1
      %v1335 = vrot.slane %v1261, 1
      %v1336 = vsel %vm1315, %v1334, %v1335
      %v1337 = vrot.slane %v1262, 1
      %v1338 = vrot.slane %v1263, 1
      %v1339 = vsel %vm1315, %v1337, %v1338
      %v1356 = vrot.slane %v1275, 1
      %v1357 = vrot.slane %v1276, 1
      %v1358 = vsel %vm1315, %v1356, %v1357
      %v1359 = vrot.slane %v1277, 1
      %v1360 = vrot.slane %v1278, 1
      %v1361 = vsel %vm1315, %v1359, %v1360
      %v1362 = vrot.slane %v1279, 1
      %v1363 = vrot.slane %v1280, 1
      %v1364 = vsel %vm1315, %v1362, %v1363
      %v1365 = vrot.slane %v1281, 1
      %v1366 = vrot.slane %v1282, 1
      %v1367 = vsel %vm1315, %v1365, %v1366
      %v1368 = vrot.slane %v1283, 1
      %v1369 = vrot.slane %v1284, 1
      %v1370 = vsel %vm1315, %v1368, %v1369
      %v1371 = vrot.slane %v1285, 1
      %v1372 = vrot.slane %v1286, 1
      %v1373 = vsel %vm1315, %v1371, %v1372
      %v1374 = vrot.slane %v1287, 1
      %v1375 = vrot.slane %v1288, 1
      %v1376 = vsel %vm1315, %v1374, %v1375
      %v1377 = vrot.slane %v1289, 1
      %v1378 = vrot.slane %v1290, 1
      %v1379 = vsel %vm1315, %v1377, %v1378
      %v1382 = vrot.slane %v1264, 1
      %v1383 = vrot.slane %v1265, 1
      %v1384 = vsel %vm1315, %v1382, %v1383
      %1393 = vrot.lane.b32.xlu0 %v1266, 4
      %v1394 = vpop.permute.xlu0 %1393
      %1395 = vrot.lane.b32.xlu0 %v1267, 4
      %v1396 = vpop.permute.xlu0 %1395
      %1397 = vrot.lane.b32.xlu0 %v1268, 4
      %v1398 = vpop.permute.xlu0 %1397
      %1399 = vrot.lane.b32.xlu0 %v1269, 4
      %v1400 = vpop.permute.xlu0 %1399
      %1401 = vrot.lane.b32.xlu0 %v1270, 4
      %v1402 = vpop.permute.xlu0 %1401
      %1403 = vrot.lane.b32.xlu0 %v1271, 4
      %v1404 = vpop.permute.xlu0 %1403
      %1405 = vrot.lane.b32.xlu0 %v1272, 4
      %v1406 = vpop.permute.xlu0 %1405
      %1407 = vrot.lane.b32.xlu0 %v1273, 4
      %v1408 = vpop.permute.xlu0 %1407
      %1417 = vrot.lane.b32.xlu0 %v1318, 8
      %v1418 = vpop.permute.xlu0 %1417
      %1419 = vrot.lane.b32.xlu0 %v1321, 8
      %v1420 = vpop.permute.xlu0 %1419
      %1421 = vrot.lane.b32.xlu0 %v1324, 8
      %v1422 = vpop.permute.xlu0 %1421
      %1423 = vrot.lane.b32.xlu0 %v1327, 8
      %v1424 = vpop.permute.xlu0 %1423
      %1425 = vrot.lane.b32.xlu0 %v1330, 8
      %v1426 = vpop.permute.xlu0 %1425
      %1427 = vrot.lane.b32.xlu0 %v1333, 8
      %v1428 = vpop.permute.xlu0 %1427
      %1429 = vrot.lane.b32.xlu0 %v1336, 8
      %v1430 = vpop.permute.xlu0 %1429
      %1431 = vrot.lane.b32.xlu0 %v1339, 8
      %v1432 = vpop.permute.xlu0 %1431
      %1441 = vrot.lane.b32.xlu0 %v1275, 12
      %v1442 = vpop.permute.xlu0 %1441
      %1443 = vrot.lane.b32.xlu0 %v1277, 12
      %v1444 = vpop.permute.xlu0 %1443
      %1445 = vrot.lane.b32.xlu0 %v1279, 12
      %v1446 = vpop.permute.xlu0 %1445
      %1447 = vrot.lane.b32.xlu0 %v1281, 12
      %v1448 = vpop.permute.xlu0 %1447
      %1449 = vrot.lane.b32.xlu0 %v1283, 12
      %v1450 = vpop.permute.xlu0 %1449
      %1451 = vrot.lane.b32.xlu0 %v1285, 12
      %v1452 = vpop.permute.xlu0 %1451
      %1453 = vrot.lane.b32.xlu0 %v1287, 12
      %v1454 = vpop.permute.xlu0 %1453
      %1455 = vrot.lane.b32.xlu0 %v1289, 12
      %v1456 = vpop.permute.xlu0 %1455
      %1473 = vrot.lane.b32.xlu0 %v1291, 16
      %v1474 = vpop.permute.xlu0 %1473
      %1475 = vrot.lane.b32.xlu0 %v1292, 16
      %v1476 = vpop.permute.xlu0 %1475
      %1477 = vrot.lane.b32.xlu0 %v1293, 16
      %v1478 = vpop.permute.xlu0 %1477
      %1479 = vrot.lane.b32.xlu0 %v1294, 16
      %v1480 = vpop.permute.xlu0 %1479
      %1481 = vrot.lane.b32.xlu0 %v1295, 16
      %v1482 = vpop.permute.xlu0 %1481
      %1483 = vrot.lane.b32.xlu0 %v1296, 16
      %v1484 = vpop.permute.xlu0 %1483
      %1485 = vrot.lane.b32.xlu0 %v1297, 16
      %v1486 = vpop.permute.xlu0 %1485
      %1487 = vrot.lane.b32.xlu0 %v1298, 16
      %v1488 = vpop.permute.xlu0 %1487
      %1497 = vrot.lane.b32.xlu0 %v1358, 20
      %v1498 = vpop.permute.xlu0 %1497
      %1499 = vrot.lane.b32.xlu0 %v1361, 20
      %v1500 = vpop.permute.xlu0 %1499
      %1501 = vrot.lane.b32.xlu0 %v1364, 20
      %v1502 = vpop.permute.xlu0 %1501
      %1503 = vrot.lane.b32.xlu0 %v1367, 20
      %v1504 = vpop.permute.xlu0 %1503
      %1505 = vrot.lane.b32.xlu0 %v1370, 20
      %v1506 = vpop.permute.xlu0 %1505
      %1507 = vrot.lane.b32.xlu0 %v1373, 20
      %v1508 = vpop.permute.xlu0 %1507
      %1509 = vrot.lane.b32.xlu0 %v1376, 20
      %v1510 = vpop.permute.xlu0 %1509
      %1511 = vrot.lane.b32.xlu0 %v1379, 20
      %v1512 = vpop.permute.xlu0 %1511
      %1521 = vrot.lane.b32.xlu0 %v1250, 24
      %v1522 = vpop.permute.xlu0 %1521
      %1523 = vrot.lane.b32.xlu0 %v1252, 24
      %v1524 = vpop.permute.xlu0 %1523
      %1525 = vrot.lane.b32.xlu0 %v1254, 24
      %v1526 = vpop.permute.xlu0 %1525
      %1527 = vrot.lane.b32.xlu0 %v1256, 24
      %v1528 = vpop.permute.xlu0 %1527
      %1529 = vrot.lane.b32.xlu0 %v1258, 24
      %v1530 = vpop.permute.xlu0 %1529
      %1531 = vrot.lane.b32.xlu0 %v1260, 24
      %v1532 = vpop.permute.xlu0 %1531
      %1533 = vrot.lane.b32.xlu0 %v1262, 24
      %v1534 = vpop.permute.xlu0 %1533
      %1535 = vrot.lane.b32.xlu0 %v1264, 24
      %v1536 = vpop.permute.xlu0 %1535
      %1546 = vrot.lane.b32.xlu0 %v1267, 28
      %v1547 = vpop.permute.xlu0 %1546
      %1548 = vrot.lane.b32.xlu0 %v1268, 28
      %v1549 = vpop.permute.xlu0 %1548
      %1550 = vrot.lane.b32.xlu0 %v1269, 28
      %v1551 = vpop.permute.xlu0 %1550
      %1552 = vrot.lane.b32.xlu0 %v1270, 28
      %v1553 = vpop.permute.xlu0 %1552
      %1554 = vrot.lane.b32.xlu0 %v1271, 28
      %v1555 = vpop.permute.xlu0 %1554
      %1556 = vrot.lane.b32.xlu0 %v1272, 28
      %v1557 = vpop.permute.xlu0 %1556
      %1558 = vrot.lane.b32.xlu0 %v1273, 28
      %v1559 = vpop.permute.xlu0 %1558
      %1560 = vrot.lane.b32.xlu0 %v1274, 28
      %v1561 = vpop.permute.xlu0 %1560
      %1570 = vrot.lane.b32.xlu0 %v1321, 32
      %v1571 = vpop.permute.xlu0 %1570
      %1572 = vrot.lane.b32.xlu0 %v1324, 32
      %v1573 = vpop.permute.xlu0 %1572
      %1574 = vrot.lane.b32.xlu0 %v1327, 32
      %v1575 = vpop.permute.xlu0 %1574
      %1576 = vrot.lane.b32.xlu0 %v1330, 32
      %v1577 = vpop.permute.xlu0 %1576
      %1578 = vrot.lane.b32.xlu0 %v1333, 32
      %v1579 = vpop.permute.xlu0 %1578
      %1580 = vrot.lane.b32.xlu0 %v1336, 32
      %v1581 = vpop.permute.xlu0 %1580
      %1582 = vrot.lane.b32.xlu0 %v1339, 32
      %v1583 = vpop.permute.xlu0 %1582
      %1584 = vrot.lane.b32.xlu0 %v1384, 32
      %v1585 = vpop.permute.xlu0 %1584
      %v1594 = vsel %vm550, %v1248, %v1394
      %v1595 = vsel %vm550, %v1250, %v1396
      %v1596 = vsel %vm550, %v1252, %v1398
      %v1597 = vsel %vm550, %v1254, %v1400
      %v1598 = vsel %vm550, %v1256, %v1402
      %v1599 = vsel %vm550, %v1258, %v1404
      %v1600 = vsel %vm550, %v1260, %v1406
      %v1601 = vsel %vm550, %v1262, %v1408
      %vm1602 = vcmask 64512
      %v1603 = vsel %vm1602, %v1594, %v1418
      %v1604 = vsel %vm1602, %v1595, %v1420
      %v1605 = vsel %vm1602, %v1596, %v1422
      %v1606 = vsel %vm1602, %v1597, %v1424
      %v1607 = vsel %vm1602, %v1598, %v1426
      %v1608 = vsel %vm1602, %v1599, %v1428
      %v1609 = vsel %vm1602, %v1600, %v1430
      %v1610 = vsel %vm1602, %v1601, %v1432
      %vm1611 = vcmask 97280
      %v1612 = vsel %vm1611, %v1603, %v1442
      %v1613 = vsel %vm1611, %v1604, %v1444
      %v1614 = vsel %vm1611, %v1605, %v1446
      %v1615 = vsel %vm1611, %v1606, %v1448
      %v1616 = vsel %vm1611, %v1607, %v1450
      %v1617 = vsel %vm1611, %v1608, %v1452
      %v1618 = vsel %vm1611, %v1609, %v1454
      %v1619 = vsel %vm1611, %v1610, %v1456
      %vm1620 = vcmask 130048
      %v1621 = vsel %vm1620, %v1612, %v1474
      %v1622 = vsel %vm1620, %v1613, %v1476
      %v1623 = vsel %vm1620, %v1614, %v1478
      %v1624 = vsel %vm1620, %v1615, %v1480
      %v1625 = vsel %vm1620, %v1616, %v1482
      %v1626 = vsel %vm1620, %v1617, %v1484
      %v1627 = vsel %vm1620, %v1618, %v1486
      %v1628 = vsel %vm1620, %v1619, %v1488
      %vm1629 = vcmask 162816
      %v1630 = vsel %vm1629, %v1621, %v1498
      %v1631 = vsel %vm1629, %v1622, %v1500
      %v1632 = vsel %vm1629, %v1623, %v1502
      %v1633 = vsel %vm1629, %v1624, %v1504
      %v1634 = vsel %vm1629, %v1625, %v1506
      %v1635 = vsel %vm1629, %v1626, %v1508
      %v1636 = vsel %vm1629, %v1627, %v1510
      %v1637 = vsel %vm1629, %v1628, %v1512
      %vm1638 = vcmask 195584
      %v1639 = vsel %vm1638, %v1630, %v1522
      %v1640 = vsel %vm1638, %v1631, %v1524
      %v1641 = vsel %vm1638, %v1632, %v1526
      %v1642 = vsel %vm1638, %v1633, %v1528
      %v1643 = vsel %vm1638, %v1634, %v1530
      %v1644 = vsel %vm1638, %v1635, %v1532
      %v1645 = vsel %vm1638, %v1636, %v1534
      %v1646 = vsel %vm1638, %v1637, %v1536
      %vm1647 = vcmask 228352
      %v1648 = vsel %vm1647, %v1639, %v1547
      %v1649 = vsel %vm1647, %v1640, %v1549
      %v1650 = vsel %vm1647, %v1641, %v1551
      %v1651 = vsel %vm1647, %v1642, %v1553
      %v1652 = vsel %vm1647, %v1643, %v1555
      %v1653 = vsel %vm1647, %v1644, %v1557
      %v1654 = vsel %vm1647, %v1645, %v1559
      %v1655 = vsel %vm1647, %v1646, %v1561
      %vm1656 = vcmask 261120
      %v1657 = vsel %vm1656, %v1648, %v1571
      %v1658 = vsel %vm1656, %v1649, %v1573
      %v1659 = vsel %vm1656, %v1650, %v1575
      %v1660 = vsel %vm1656, %v1651, %v1577
      %v1661 = vsel %vm1656, %v1652, %v1579
      %v1662 = vsel %vm1656, %v1653, %v1581
      %v1663 = vsel %vm1656, %v1654, %v1583
      %v1664 = vsel %vm1656, %v1655, %v1585
      %v1665 = vpack.c.bf16 %v1658, %v1657
      %v1666 = vpack.c.bf16 %v1660, %v1659
      %v1667 = vpack.c.bf16 %v1662, %v1661
      %v1668 = vpack.c.bf16 %v1664, %v1663
      %v1669 = vld [vmem:[%s2] sm:$0xf]
      %v1670 = vld [vmem:[%s2 + $0x4] sm:$0xf]
      %v1671 = vld [vmem:[%s2 + $0x8] sm:$0xf]
      %v1672 = vld [vmem:[%s2 + $0xc] sm:$0xf]
      %v1673 = vld [vmem:[%s2 + $0x10] sm:$0x3]
      %v1674 = vld [vmem:[%s3] sm:$0x1]
      %v1676 = vlaneseq
      %v1677 = vshrl.u32 %v1676, 7
      %v1678 = vsub.s32 0, %v1677
      %v1679 = vrot.slane %v1674, %v1678
      %v1686 = vunpack.c.l.b16 %v1669
      %v1687 = vunpack.c.l.b16 %v1670
      %v1688 = vunpack.c.l.b16 %v1671
      %v1689 = vunpack.c.l.b16 %v1672
      %v1690 = vunpack.c.l.b16 %v1673
      %v1691 = vpack.c.b16 %v1687, %v1686
      %v1692 = vpack.c.b16 %v1689, %v1688
      %v1693 = vpack.c.b16 %v1690, %v1690
      %vm1696 = vcmask 293888
      %v1698 = vsel %vm1696, %v1665, 0
      %v1701 = vsel %vm1696, %v1666, 0
      %v1704 = vsel %vm1696, %v1667, 0
      %v1707 = vsel %vm1696, %v1668, 0
      %v1710 = vsel %vm563, %v1693, 0
      %1712 = vmatprep.subr.bf16.mxu0 0
      %1713 = vmatpush1.bf16.msra.mxu0 %v1691
      %1714 = vmatprep.subr.bf16.mxu0 0
      %1715 = vmatpush1.bf16.msra.mxu0 %v1692
      %1716 = vmatprep.subr.bf16.mxu0 0
      %1717 = vmatpush1.bf16.msra.mxu0 %v1710
      %1718 = vmatprep.subr.bf16.mxu0 0
      %1719 = vmatpush1.bf16.msra.mxu0 0
      %1720 = vmatprep.subr.bf16.mxu0 0
      %1721 = vmatpush1.bf16.msra.mxu0 0
      %1722 = vmatprep.subr.bf16.mxu0 0
      %1723 = vmatpush1.bf16.msra.mxu0 0
      %1724 = vmatprep.subr.bf16.mxu0 0
      %1725 = vmatpush1.bf16.msra.mxu0 0
      %1726 = vmatprep.subr.bf16.mxu0 0
      %1727 = vmatpush1.bf16.msra.mxu0 0
      %1728 = vmatprep.subr.bf16.mxu0 0
      %1729 = vmatpush1.bf16.msra.mxu0 0
      %1730 = vmatprep.subr.bf16.mxu0 0
      %1731 = vmatpush1.bf16.msra.mxu0 0
      %1732 = vmatprep.subr.bf16.mxu0 0
      %1733 = vmatpush1.bf16.msra.mxu0 0
      %1734 = vmatprep.subr.bf16.mxu0 0
      %1735 = vmatpush1.bf16.msra.mxu0 0
      %1736 = vmatprep.subr.bf16.mxu0 0
      %1737 = vmatpush1.bf16.msra.mxu0 0
      %1738 = vmatprep.subr.bf16.mxu0 0
      %1739 = vmatpush1.bf16.msra.mxu0 0
      %1740 = vmatprep.subr.bf16.mxu0 0
      %1741 = vmatpush1.bf16.msra.mxu0 0
      %1742 = vmatprep.subr.bf16.mxu0 0
      %1743 = vmatpush1.bf16.msra.mxu0 0
      %1744 = vmatprep.mubr.bf16.mxu0 0
      %1745 = vmatmul.mubr.bf16.gmra.mrb[0].mxu0 %v1698
      %v1746 = vpop.f32.mrb[0].mxu0
      %v1747 = vadd.f32 %v1679, %v1746
      %v1748 = vpop.f32.mrb[0].mxu0
      %v1749 = vpop.f32.mrb[0].mxu0
      %v1750 = vadd.f32 %v1679, %v1749
      %v1751 = vpop.f32.mrb[0].mxu0
      %1752 = vmatprep.mubr.bf16.mxu0 0
      %1753 = vmatmul.mubr.bf16.gmra.mrb[0].mxu0 %v1701
      %v1754 = vpop.f32.mrb[0].mxu0
      %v1755 = vadd.f32 %v1679, %v1754
      %v1756 = vpop.f32.mrb[0].mxu0
      %v1757 = vpop.f32.mrb[0].mxu0
      %v1758 = vadd.f32 %v1679, %v1757
      %v1759 = vpop.f32.mrb[0].mxu0
      %1760 = vmatprep.mubr.bf16.mxu0 0
      %1761 = vmatmul.mubr.bf16.gmra.mrb[0].mxu0 %v1704
      %v1762 = vpop.f32.mrb[0].mxu0
      %v1763 = vadd.f32 %v1679, %v1762
      %v1764 = vpop.f32.mrb[0].mxu0
      %v1765 = vpop.f32.mrb[0].mxu0
      %v1766 = vadd.f32 %v1679, %v1765
      %v1767 = vpop.f32.mrb[0].mxu0
      %1768 = vmatprep.mubr.bf16.mxu0 0
      %1769 = vmatmul.mubr.bf16.gmra.mrb[0].mxu0 %v1707
      %v1770 = vpop.f32.mrb[0].mxu0
      %v1771 = vadd.f32 %v1679, %v1770
      %v1772 = vpop.f32.mrb[0].mxu0
      %v1773 = vpop.f32.mrb[0].mxu0
      %v1774 = vadd.f32 %v1679, %v1773
      %v1775 = vpop.f32.mrb[0].mxu0
      %1776 = vdwg.mxu0
      %v1777 = vpack.c.bf16 %v1750, %v1747
      %v1778 = vpack.c.bf16 %v1758, %v1755
      %v1779 = vpack.c.bf16 %v1766, %v1763
      %v1780 = vpack.c.bf16 %v1774, %v1771
      %v1785 = vunpack.c.l.b16 %v1777
      %v1786 = vunpack.c.h.b16 %v1777
      %v1787 = vunpack.c.l.b16 %v1778
      %v1788 = vunpack.c.h.b16 %v1778
      %v1789 = vunpack.c.l.b16 %v1779
      %v1790 = vunpack.c.h.b16 %v1779
      %v1791 = vunpack.c.l.b16 %v1780
      %v1792 = vunpack.c.h.b16 %v1780
      %v1793 = vpack.c.b16 %v1785, %v1785
      %v1794 = vpack.c.b16 %v1786, %v1786
      %v1795 = vpack.c.b16 %v1787, %v1787
      %v1796 = vpack.c.b16 %v1788, %v1788
      %v1797 = vpack.c.b16 %v1789, %v1789
      %v1798 = vpack.c.b16 %v1790, %v1790
      %v1799 = vpack.c.b16 %v1791, %v1791
      %v1800 = vpack.c.b16 %v1792, %v1792
      %1809 = vst.msk [vmem:[%s399] sm:$0xf] %vm664, %v1793
      %1810 = vst.msk [vmem:[%s399 + $0x4] sm:$0xf] %vm664, %v1794
      %1811 = vst.msk [vmem:[%s399 + $0x8] sm:$0xf] %vm664, %v1795
      %1812 = vst.msk [vmem:[%s399 + $0xc] sm:$0xf] %vm664, %v1796
      %1813 = vst.msk [vmem:[%s399 + $0x10] sm:$0xf] %vm664, %v1797
      %1814 = vst.msk [vmem:[%s399 + $0x14] sm:$0xf] %vm664, %v1798
      %1815 = vst.msk [vmem:[%s399 + $0x18] sm:$0xf] %vm664, %v1799
      %1816 = vst.msk [vmem:[%s399 + $0x1c] sm:$0xf] %vm664, %v1800
      %p1817 = scmp.lt.s32.totalorder %s23, 1
      %s1818 = scalar_select %p1817, %s23, 1
      %s1819 = smul.addr %s1818, 8
      %s1820 = smul.addr %s1819, 4
      %s1821 = scalar_lea.vmem %s10, %s1820
      %p1822 = scmp.lt.s32.totalorder %s23, 1
      %s1823 = scalar_select %p1822, %s23, 1
      %s1824 = smul.addr %s1823, 8
      %s1825 = smul.addr %s1824, 4
      %s1826 = scalar_lea.vmem %s11, %s1825
      // Predicated region
      $region61: #{deep_sia_res_block_forward.2} parent=59 // pred_check
        %p1827 = pneg %p256
      $region62: #{deep_sia_res_block_forward.2} parent=59 // pred_check_branch
        %1829 = sbr.rel (%p1827) target = $region64
      $region63: #{deep_sia_res_block_forward.2} parent=59 // pred_region
        _
      $region64: #{deep_sia_res_block_forward.2} parent=59 // pred_fallthru
        _
      // Predicated region
      $region65: #{deep_sia_res_block_forward.2} parent=59 // pred_check
        %p1830 = pneg %p282
      $region66: #{deep_sia_res_block_forward.2} parent=59 // pred_check_branch
        %1832 = sbr.rel (%p1830) target = $region68
      $region67: #{deep_sia_res_block_forward.2} parent=59 // pred_region
        _
      $region68: #{deep_sia_res_block_forward.2} parent=59 // pred_fallthru
        _
    $region60: #{deep_sia_res_block_forward.2} parent=5 // pred_fallthru
      _
    %p1833 = scmp.le.s32.totalorder 2, %s18
    // Predicated region
    $region69: #{deep_sia_res_block_forward.2} parent=5 // pred_check
      %p1834 = pneg %p1833
    $region70: #{deep_sia_res_block_forward.2} parent=5 // pred_check_branch
      %1836 = sbr.rel (%p1834) target = $region72
    $region71: #{deep_sia_res_block_forward.2} parent=5 // pred_region
      %s1837 = ssub.s32 %s18, 2
      // Predicated region
      $region73: #{deep_sia_res_block_forward.2} parent=71 // pred_check
        %p1838 = pneg %p262
      $region74: #{deep_sia_res_block_forward.2} parent=71 // pred_check_branch
        %1840 = sbr.rel (%p1838) target = $region76
      $region75: #{deep_sia_res_block_forward.2} parent=71 // pred_region
        %p1841 = scmp.lt.s32.totalorder %s24, 1
        %s1842 = scalar_select %p1841, %s24, 1
        %s1843 = smul.addr %s1842, 8
        %s1844 = smul.addr %s1843, 4
        %s1845 = scalar_lea.vmem %s10, %s1844
      $region76: #{deep_sia_res_block_forward.2} parent=71 // pred_fallthru
        _
      // Predicated region
      $region77: #{deep_sia_res_block_forward.2} parent=71 // pred_check
        %p1846 = pneg %p288
      $region78: #{deep_sia_res_block_forward.2} parent=71 // pred_check_branch
        %1848 = sbr.rel (%p1846) target = $region80
      $region79: #{deep_sia_res_block_forward.2} parent=71 // pred_region
        %p1849 = scmp.lt.s32.totalorder %s24, 1
        %s1850 = scalar_select %p1849, %s24, 1
        %s1851 = smul.addr %s1850, 8
        %s1852 = smul.addr %s1851, 4
        %s1853 = scalar_lea.vmem %s11, %s1852
      $region80: #{deep_sia_res_block_forward.2} parent=71 // pred_fallthru
        _
    $region72: #{deep_sia_res_block_forward.2} parent=5 // pred_fallthru
      _
  $region6: #{deep_sia_res_block_forward.2} parent=0 // loop_footer
    %s22 = sadd.s32 1, %s18
  $region7: #{deep_sia_res_block_forward.2} parent=0 // loop_footer_branch
    %17 = sbr.rel target = $region3
  $region8: #{deep_sia_res_block_forward.2} parent=0 // loop_exit
    _

// kernel: deep_sia_res_block_forward.3
$region0: #{deep_sia_res_block_forward.3}
  #allocation0 [shape = 'u32[]', space=smem, size = 0x4, offset = 0x4, fixed_abs, tag = 'smem constant byte address 0x4 - core index']
  #allocation1 [shape = 'u32[144,128]{1,0:T(1,128)}', space=vmem, size = 0x12000, scoped, tag = 'internal scratch']
  %s0 = inlined_call_operand.vmem [shape: bf16[2,64,8], index: 0, kind: input, shape index: {}]
  %s1 = inlined_call_operand.vmem [shape: bf16[2,64,8], index: 1, kind: input, shape index: {}]
  %s2 = inlined_call_operand.vmem [shape: f32[1,8], index: 2, kind: input, shape index: {}]
  %s3 = inlined_call_operand.vmem [shape: f32[1,8], index: 3, kind: input, shape index: {}]
  %s4 = inlined_call_operand.vmem [shape: bf16[8,24], index: 4, kind: input, shape index: {}]
  %s5 = inlined_call_operand.vmem [shape: f32[1,24], index: 5, kind: input, shape index: {}]
  %s6 = inlined_call_operand.vmem [shape: bf16[4,64,2], index: 6, kind: input, shape index: {}]
  %s7 = inlined_call_operand.vmem [shape: bf16[4,64,2], index: 7, kind: input, shape index: {}]
  %s8 = inlined_call_operand.vmem [shape: f32[4,128], index: 8, kind: input, shape index: {}]
  %s9 = inlined_call_operand.vmem [shape: bf16[8,8], index: 9, kind: input, shape index: {}]
  %s10 = inlined_call_operand.vmem [shape: f32[1,8], index: 10, kind: input, shape index: {}]
  %s11 = inlined_call_operand.vmem [shape: f32[2,64,8], index: 11, kind: output, shape index: {}]
  %s12 = sld [smem:[#allocation0]]
  $region77: #{deep_sia_res_block_forward.3} parent=0
    _
  %s14 = ssub.s32 1, %s12
  %s15 = scalar_select 0, %s14, %s12
  loop: start=0, step=1, limit=4
  $region2: #{deep_sia_res_block_forward.3} parent=0 // loop_pre_header
    _
  $region3: #{deep_sia_res_block_forward.3} parent=0 // loop_header
    %s17 = sphi 0, %s21
    %p18 = scmp.ge.s32.totalorder %s17, 4
    %s27 = sphi 0, %s29
    %s30 = sphi 0, %s27
    %s31 = sphi 0, %s30
    %s47 = sphi 0, %s31
    %s53 = sphi 0, %s55
    %s56 = sphi 0, %s53
    %s57 = sphi 0, %s56
    %s73 = sphi 0, %s57
    %s77 = sphi 0, %s77
    %s79 = sphi 0, %s77
    %s80 = sphi 0, %s79
    %s94 = sphi 0, %s80
    %s98 = sphi 0, %s98
    %s100 = sphi 0, %s98
    %s101 = sphi 0, %s100
    %s115 = sphi 0, %s101
    %s119 = sphi 0, %s119
    %s121 = sphi 0, %s119
    %s122 = sphi 0, %s121
    %s136 = sphi 0, %s122
    %s140 = sphi 0, %s140
    %s142 = sphi 0, %s140
    %s143 = sphi 0, %s142
    %s157 = sphi 0, %s143
    %s161 = sphi 0, %s161
    %s163 = sphi 0, %s161
    %s164 = sphi 0, %s163
    %s178 = sphi 0, %s164
    %s182 = sphi 0, %s182
    %s184 = sphi 0, %s182
    %s185 = sphi 0, %s184
    %s199 = sphi 0, %s185
    %s203 = sphi 0, %s203
    %s205 = sphi 0, %s203
    %s206 = sphi 0, %s205
    %s220 = sphi 0, %s206
    %s224 = sphi 0, %s224
    %s226 = sphi 0, %s224
    %s227 = sphi 0, %s226
    %s241 = sphi 0, %s227
    %s245 = sphi 0, %s245
    %s247 = sphi 0, %s245
    %s248 = sphi 0, %s247
    %s262 = sphi 0, %s248
    %s268 = sphi 0, %s270
    %s271 = sphi 0, %s268
    %s272 = sphi 0, %s271
    %s288 = sphi 0, %s272
  $region4: #{deep_sia_res_block_forward.3} parent=0 // loop_header_branch
    %20 = sbr.rel (%p18) target = $region8
  $region5: #{deep_sia_res_block_forward.3} parent=0 // loop_body
    %s22 = ssub.s32 %s17, 1
    %s23 = ssub.s32 %s17, 2
    %s24 = sadd.s32 %s17, 1
    %s25 = ssub.s32 %s17, %s24
    %p26 = scmp.eq.s32.totalorder %s25, 0
    %s28 = sadd.s32 %s27, 1
    %s29 = scalar_select %p26, %s27, %s28
    %p32 = pneg %p26
    %p33 = scmp.eq.s32.totalorder %s17, 1
    %p34 = por %p32, %p33
    %p35 = scmp.ne.s32.totalorder %s27, %s30
    %p36 = scmp.eq.s32.totalorder %s17, 0
    %p37 = por %p35, %p36
    %p38 = scmp.ne.s32.totalorder %s27, %s30
    %p39 = scmp.eq.s32.totalorder %s22, 1
    %p40 = por %p38, %p39
    %p41 = scmp.ne.s32.totalorder %s30, %s31
    %p42 = scmp.eq.s32.totalorder %s22, 0
    %p43 = por %p41, %p42
    %p44 = scmp.ne.s32.totalorder %s30, %s31
    %p45 = scmp.eq.s32.totalorder %s23, 1
    %p46 = por %p44, %p45
    %p48 = scmp.ne.s32.totalorder %s31, %s47
    %p49 = scmp.eq.s32.totalorder %s23, 0
    %p50 = por %p48, %p49
    %s51 = ssub.s32 %s17, %s24
    %p52 = scmp.eq.s32.totalorder %s51, 0
    %s54 = sadd.s32 %s53, 1
    %s55 = scalar_select %p52, %s53, %s54
    %p58 = pneg %p52
    %p59 = scmp.eq.s32.totalorder %s17, 1
    %p60 = por %p58, %p59
    %p61 = scmp.ne.s32.totalorder %s53, %s56
    %p62 = scmp.eq.s32.totalorder %s17, 0
    %p63 = por %p61, %p62
    %p64 = scmp.ne.s32.totalorder %s53, %s56
    %p65 = scmp.eq.s32.totalorder %s22, 1
    %p66 = por %p64, %p65
    %p67 = scmp.ne.s32.totalorder %s56, %s57
    %p68 = scmp.eq.s32.totalorder %s22, 0
    %p69 = por %p67, %p68
    %p70 = scmp.ne.s32.totalorder %s56, %s57
    %p71 = scmp.eq.s32.totalorder %s23, 1
    %p72 = por %p70, %p71
    %p74 = scmp.ne.s32.totalorder %s57, %s73
    %p75 = scmp.eq.s32.totalorder %s23, 0
    %p76 = por %p74, %p75
    %s78 = sadd.s32 %s77, 1
    %p81 = scmp.eq.s32.totalorder %s17, 1
    %p82 = scmp.ne.s32.totalorder %s77, %s79
    %p83 = scmp.eq.s32.totalorder %s17, 0
    %p84 = por %p82, %p83
    %p85 = scmp.ne.s32.totalorder %s77, %s79
    %p86 = scmp.eq.s32.totalorder %s22, 1
    %p87 = por %p85, %p86
    %p88 = scmp.ne.s32.totalorder %s79, %s80
    %p89 = scmp.eq.s32.totalorder %s22, 0
    %p90 = por %p88, %p89
    %p91 = scmp.ne.s32.totalorder %s79, %s80
    %p92 = scmp.eq.s32.totalorder %s23, 1
    %p93 = por %p91, %p92
    %p95 = scmp.ne.s32.totalorder %s80, %s94
    %p96 = scmp.eq.s32.totalorder %s23, 0
    %p97 = por %p95, %p96
    %s99 = sadd.s32 %s98, 1
    %p102 = scmp.eq.s32.totalorder %s17, 1
    %p103 = scmp.ne.s32.totalorder %s98, %s100
    %p104 = scmp.eq.s32.totalorder %s17, 0
    %p105 = por %p103, %p104
    %p106 = scmp.ne.s32.totalorder %s98, %s100
    %p107 = scmp.eq.s32.totalorder %s22, 1
    %p108 = por %p106, %p107
    %p109 = scmp.ne.s32.totalorder %s100, %s101
    %p110 = scmp.eq.s32.totalorder %s22, 0
    %p111 = por %p109, %p110
    %p112 = scmp.ne.s32.totalorder %s100, %s101
    %p113 = scmp.eq.s32.totalorder %s23, 1
    %p114 = por %p112, %p113
    %p116 = scmp.ne.s32.totalorder %s101, %s115
    %p117 = scmp.eq.s32.totalorder %s23, 0
    %p118 = por %p116, %p117
    %s120 = sadd.s32 %s119, 1
    %p123 = scmp.eq.s32.totalorder %s17, 1
    %p124 = scmp.ne.s32.totalorder %s119, %s121
    %p125 = scmp.eq.s32.totalorder %s17, 0
    %p126 = por %p124, %p125
    %p127 = scmp.ne.s32.totalorder %s119, %s121
    %p128 = scmp.eq.s32.totalorder %s22, 1
    %p129 = por %p127, %p128
    %p130 = scmp.ne.s32.totalorder %s121, %s122
    %p131 = scmp.eq.s32.totalorder %s22, 0
    %p132 = por %p130, %p131
    %p133 = scmp.ne.s32.totalorder %s121, %s122
    %p134 = scmp.eq.s32.totalorder %s23, 1
    %p135 = por %p133, %p134
    %p137 = scmp.ne.s32.totalorder %s122, %s136
    %p138 = scmp.eq.s32.totalorder %s23, 0
    %p139 = por %p137, %p138
    %s141 = sadd.s32 %s140, 1
    %p144 = scmp.eq.s32.totalorder %s17, 1
    %p145 = scmp.ne.s32.totalorder %s140, %s142
    %p146 = scmp.eq.s32.totalorder %s17, 0
    %p147 = por %p145, %p146
    %p148 = scmp.ne.s32.totalorder %s140, %s142
    %p149 = scmp.eq.s32.totalorder %s22, 1
    %p150 = por %p148, %p149
    %p151 = scmp.ne.s32.totalorder %s142, %s143
    %p152 = scmp.eq.s32.totalorder %s22, 0
    %p153 = por %p151, %p152
    %p154 = scmp.ne.s32.totalorder %s142, %s143
    %p155 = scmp.eq.s32.totalorder %s23, 1
    %p156 = por %p154, %p155
    %p158 = scmp.ne.s32.totalorder %s143, %s157
    %p159 = scmp.eq.s32.totalorder %s23, 0
    %p160 = por %p158, %p159
    %s162 = sadd.s32 %s161, 1
    %p165 = scmp.eq.s32.totalorder %s17, 1
    %p166 = scmp.ne.s32.totalorder %s161, %s163
    %p167 = scmp.eq.s32.totalorder %s17, 0
    %p168 = por %p166, %p167
    %p169 = scmp.ne.s32.totalorder %s161, %s163
    %p170 = scmp.eq.s32.totalorder %s22, 1
    %p171 = por %p169, %p170
    %p172 = scmp.ne.s32.totalorder %s163, %s164
    %p173 = scmp.eq.s32.totalorder %s22, 0
    %p174 = por %p172, %p173
    %p175 = scmp.ne.s32.totalorder %s163, %s164
    %p176 = scmp.eq.s32.totalorder %s23, 1
    %p177 = por %p175, %p176
    %p179 = scmp.ne.s32.totalorder %s164, %s178
    %p180 = scmp.eq.s32.totalorder %s23, 0
    %p181 = por %p179, %p180
    %s183 = sadd.s32 %s182, 1
    %p186 = scmp.eq.s32.totalorder %s17, 1
    %p187 = scmp.ne.s32.totalorder %s182, %s184
    %p188 = scmp.eq.s32.totalorder %s17, 0
    %p189 = por %p187, %p188
    %p190 = scmp.ne.s32.totalorder %s182, %s184
    %p191 = scmp.eq.s32.totalorder %s22, 1
    %p192 = por %p190, %p191
    %p193 = scmp.ne.s32.totalorder %s184, %s185
    %p194 = scmp.eq.s32.totalorder %s22, 0
    %p195 = por %p193, %p194
    %p196 = scmp.ne.s32.totalorder %s184, %s185
    %p197 = scmp.eq.s32.totalorder %s23, 1
    %p198 = por %p196, %p197
    %p200 = scmp.ne.s32.totalorder %s185, %s199
    %p201 = scmp.eq.s32.totalorder %s23, 0
    %p202 = por %p200, %p201
    %s204 = sadd.s32 %s203, 1
    %p207 = scmp.eq.s32.totalorder %s17, 1
    %p208 = scmp.ne.s32.totalorder %s203, %s205
    %p209 = scmp.eq.s32.totalorder %s17, 0
    %p210 = por %p208, %p209
    %p211 = scmp.ne.s32.totalorder %s203, %s205
    %p212 = scmp.eq.s32.totalorder %s22, 1
    %p213 = por %p211, %p212
    %p214 = scmp.ne.s32.totalorder %s205, %s206
    %p215 = scmp.eq.s32.totalorder %s22, 0
    %p216 = por %p214, %p215
    %p217 = scmp.ne.s32.totalorder %s205, %s206
    %p218 = scmp.eq.s32.totalorder %s23, 1
    %p219 = por %p217, %p218
    %p221 = scmp.ne.s32.totalorder %s206, %s220
    %p222 = scmp.eq.s32.totalorder %s23, 0
    %p223 = por %p221, %p222
    %s225 = sadd.s32 %s224, 1
    %p228 = scmp.eq.s32.totalorder %s17, 1
    %p229 = scmp.ne.s32.totalorder %s224, %s226
    %p230 = scmp.eq.s32.totalorder %s17, 0
    %p231 = por %p229, %p230
    %p232 = scmp.ne.s32.totalorder %s224, %s226
    %p233 = scmp.eq.s32.totalorder %s22, 1
    %p234 = por %p232, %p233
    %p235 = scmp.ne.s32.totalorder %s226, %s227
    %p236 = scmp.eq.s32.totalorder %s22, 0
    %p237 = por %p235, %p236
    %p238 = scmp.ne.s32.totalorder %s226, %s227
    %p239 = scmp.eq.s32.totalorder %s23, 1
    %p240 = por %p238, %p239
    %p242 = scmp.ne.s32.totalorder %s227, %s241
    %p243 = scmp.eq.s32.totalorder %s23, 0
    %p244 = por %p242, %p243
    %s246 = sadd.s32 %s245, 1
    %p249 = scmp.eq.s32.totalorder %s17, 1
    %p250 = scmp.ne.s32.totalorder %s245, %s247
    %p251 = scmp.eq.s32.totalorder %s17, 0
    %p252 = por %p250, %p251
    %p253 = scmp.ne.s32.totalorder %s245, %s247
    %p254 = scmp.eq.s32.totalorder %s22, 1
    %p255 = por %p253, %p254
    %p256 = scmp.ne.s32.totalorder %s247, %s248
    %p257 = scmp.eq.s32.totalorder %s22, 0
    %p258 = por %p256, %p257
    %p259 = scmp.ne.s32.totalorder %s247, %s248
    %p260 = scmp.eq.s32.totalorder %s23, 1
    %p261 = por %p259, %p260
    %p263 = scmp.ne.s32.totalorder %s248, %s262
    %p264 = scmp.eq.s32.totalorder %s23, 0
    %p265 = por %p263, %p264
    %s266 = ssub.s32 %s17, %s24
    %p267 = scmp.eq.s32.totalorder %s266, 0
    %s269 = sadd.s32 %s268, 1
    %s270 = scalar_select %p267, %s268, %s269
    %p273 = pneg %p267
    %p274 = scmp.eq.s32.totalorder %s17, 1
    %p275 = por %p273, %p274
    %p276 = scmp.ne.s32.totalorder %s268, %s271
    %p277 = scmp.eq.s32.totalorder %s17, 0
    %p278 = por %p276, %p277
    %p279 = scmp.ne.s32.totalorder %s268, %s271
    %p280 = scmp.eq.s32.totalorder %s22, 1
    %p281 = por %p279, %p280
    %p282 = scmp.ne.s32.totalorder %s271, %s272
    %p283 = scmp.eq.s32.totalorder %s22, 0
    %p284 = por %p282, %p283
    %p285 = scmp.ne.s32.totalorder %s271, %s272
    %p286 = scmp.eq.s32.totalorder %s23, 1
    %p287 = por %p285, %p286
    %p289 = scmp.ne.s32.totalorder %s272, %s288
    %p290 = scmp.eq.s32.totalorder %s23, 0
    %p291 = por %p289, %p290
    %p292 = scmp.le.s32.totalorder 1, %s17
    %p293 = scmp.lt.s32.totalorder %s17, 3
    %p294 = pnand %p292, %p293
    %p295 = pneg %p294
    // Predicated region
    $region9: #{deep_sia_res_block_forward.3} parent=5 // pred_check
      _
    $region10: #{deep_sia_res_block_forward.3} parent=5 // pred_check_branch
      %297 = sbr.rel (%p294) target = $region12
    $region11: #{deep_sia_res_block_forward.3} parent=5 // pred_region
      %s298 = ssub.s32 %s17, 1
      // Predicated region
      $region13: #{deep_sia_res_block_forward.3} parent=11 // pred_check
        %p299 = pneg %p90
      $region14: #{deep_sia_res_block_forward.3} parent=11 // pred_check_branch
        %301 = sbr.rel (%p299) target = $region16
      $region15: #{deep_sia_res_block_forward.3} parent=11 // pred_region
        _
      $region16: #{deep_sia_res_block_forward.3} parent=11 // pred_fallthru
        _
      // Predicated region
      $region17: #{deep_sia_res_block_forward.3} parent=11 // pred_check
        %p302 = pneg %p111
      $region18: #{deep_sia_res_block_forward.3} parent=11 // pred_check_branch
        %304 = sbr.rel (%p302) target = $region20
      $region19: #{deep_sia_res_block_forward.3} parent=11 // pred_region
        _
      $region20: #{deep_sia_res_block_forward.3} parent=11 // pred_fallthru
        _
      // Predicated region
      $region21: #{deep_sia_res_block_forward.3} parent=11 // pred_check
        %p305 = pneg %p132
      $region22: #{deep_sia_res_block_forward.3} parent=11 // pred_check_branch
        %307 = sbr.rel (%p305) target = $region24
      $region23: #{deep_sia_res_block_forward.3} parent=11 // pred_region
        _
      $region24: #{deep_sia_res_block_forward.3} parent=11 // pred_fallthru
        _
      // Predicated region
      $region25: #{deep_sia_res_block_forward.3} parent=11 // pred_check
        %p308 = pneg %p153
      $region26: #{deep_sia_res_block_forward.3} parent=11 // pred_check_branch
        %310 = sbr.rel (%p308) target = $region28
      $region27: #{deep_sia_res_block_forward.3} parent=11 // pred_region
        _
      $region28: #{deep_sia_res_block_forward.3} parent=11 // pred_fallthru
        _
      // Predicated region
      $region29: #{deep_sia_res_block_forward.3} parent=11 // pred_check
        %p311 = pneg %p174
      $region30: #{deep_sia_res_block_forward.3} parent=11 // pred_check_branch
        %313 = sbr.rel (%p311) target = $region32
      $region31: #{deep_sia_res_block_forward.3} parent=11 // pred_region
        _
      $region32: #{deep_sia_res_block_forward.3} parent=11 // pred_fallthru
        _
      // Predicated region
      $region33: #{deep_sia_res_block_forward.3} parent=11 // pred_check
        %p314 = pneg %p195
      $region34: #{deep_sia_res_block_forward.3} parent=11 // pred_check_branch
        %316 = sbr.rel (%p314) target = $region36
      $region35: #{deep_sia_res_block_forward.3} parent=11 // pred_region
        _
      $region36: #{deep_sia_res_block_forward.3} parent=11 // pred_fallthru
        _
      // Predicated region
      $region37: #{deep_sia_res_block_forward.3} parent=11 // pred_check
        %p317 = pneg %p216
      $region38: #{deep_sia_res_block_forward.3} parent=11 // pred_check_branch
        %319 = sbr.rel (%p317) target = $region40
      $region39: #{deep_sia_res_block_forward.3} parent=11 // pred_region
        _
      $region40: #{deep_sia_res_block_forward.3} parent=11 // pred_fallthru
        _
      // Predicated region
      $region41: #{deep_sia_res_block_forward.3} parent=11 // pred_check
        %p320 = pneg %p237
      $region42: #{deep_sia_res_block_forward.3} parent=11 // pred_check_branch
        %322 = sbr.rel (%p320) target = $region44
      $region43: #{deep_sia_res_block_forward.3} parent=11 // pred_region
        _
      $region44: #{deep_sia_res_block_forward.3} parent=11 // pred_fallthru
        _
      // Predicated region
      $region45: #{deep_sia_res_block_forward.3} parent=11 // pred_check
        %p323 = pneg %p258
      $region46: #{deep_sia_res_block_forward.3} parent=11 // pred_check_branch
        %325 = sbr.rel (%p323) target = $region48
      $region47: #{deep_sia_res_block_forward.3} parent=11 // pred_region
        _
      $region48: #{deep_sia_res_block_forward.3} parent=11 // pred_fallthru
        _
    $region12: #{deep_sia_res_block_forward.3} parent=5 // pred_fallthru
      _
    %p326 = scmp.lt.s32.totalorder %s17, 2
    // Predicated region
    $region49: #{deep_sia_res_block_forward.3} parent=5 // pred_check
      %p327 = pneg %p326
    $region50: #{deep_sia_res_block_forward.3} parent=5 // pred_check_branch
      %329 = sbr.rel (%p327) target = $region52
    $region51: #{deep_sia_res_block_forward.3} parent=5 // pred_region
      // Predicated region
      $region53: #{deep_sia_res_block_forward.3} parent=51 // pred_check
        %p330 = pneg %p37
      $region54: #{deep_sia_res_block_forward.3} parent=51 // pred_check_branch
        %332 = sbr.rel (%p330) target = $region56
      $region55: #{deep_sia_res_block_forward.3} parent=51 // pred_region
        %p333 = scmp.lt.s32.totalorder %s17, 1
        %s334 = scalar_select %p333, %s17, 1
        %s335 = smul.addr %s334, 8
        %s336 = smul.addr %s335, 4
        %s337 = scalar_lea.vmem %s0, %s336
      $region56: #{deep_sia_res_block_forward.3} parent=51 // pred_fallthru
        _
      // Predicated region
      $region57: #{deep_sia_res_block_forward.3} parent=51 // pred_check
        %p338 = pneg %p63
      $region58: #{deep_sia_res_block_forward.3} parent=51 // pred_check_branch
        %340 = sbr.rel (%p338) target = $region60
      $region59: #{deep_sia_res_block_forward.3} parent=51 // pred_region
        %p341 = scmp.lt.s32.totalorder %s17, 1
        %s342 = scalar_select %p341, %s17, 1
        %s343 = smul.addr %s342, 8
        %s344 = smul.addr %s343, 4
        %s345 = scalar_lea.vmem %s1, %s344
      $region60: #{deep_sia_res_block_forward.3} parent=51 // pred_fallthru
        _
    $region52: #{deep_sia_res_block_forward.3} parent=5 // pred_fallthru
      _
    %p346 = scmp.le.s32.totalorder 1, %s17
    %p347 = scmp.lt.s32.totalorder %s17, 3
    %p348 = pnand %p346, %p347
    %p349 = pneg %p348
    // Predicated region
    $region61: #{deep_sia_res_block_forward.3} parent=5 // pred_check
      _
    $region62: #{deep_sia_res_block_forward.3} parent=5 // pred_check_branch
      %351 = sbr.rel (%p348) target = $region64
    $region63: #{deep_sia_res_block_forward.3} parent=5 // pred_region
      %s352 = ssub.s32 %s17, 1
      %p353 = scmp.lt.s32.totalorder %s22, 1
      %s354 = scalar_select %p353, %s22, 1
      %s355 = smul.addr %s354, 8
      %s356 = smul.addr %s355, 4
      %s357 = scalar_lea.vmem %s0, %s356
      %p358 = pneg %p43
      %p359 = pneg %p40
      %p360 = scmp.lt.s32.totalorder %s22, 1
      %s361 = scalar_select %p360, %s22, 1
      %s362 = smul.addr %s361, 8
      %s363 = smul.addr %s362, 4
      %s364 = scalar_lea.vmem %s1, %s363
      %p365 = pneg %p69
      %p366 = pneg %p66
      %p367 = pneg %p90
      %p368 = pneg %p87
      %p369 = pneg %p111
      %p370 = pneg %p108
      %p371 = pneg %p132
      %p372 = pneg %p129
      %p373 = pneg %p153
      %p374 = pneg %p150
      %p375 = pneg %p174
      %p376 = pneg %p171
      %p377 = pneg %p195
      %p378 = pneg %p192
      %p379 = pneg %p216
      %p380 = pneg %p213
      %p381 = pneg %p237
      %p382 = pneg %p234
      %p383 = pneg %p258
      %p384 = pneg %p255
      %p385 = pneg %p284
      %p386 = pneg %p281
      %p387 = scmp.lt.s32.totalorder %s22, 1
      %s388 = scalar_select %p387, %s22, 1
      %s389 = smul.addr %s388, 8
      %s390 = smul.addr %s389, 8
      %s391 = scalar_lea.vmem %s11, %s390
      %p392 = scmp.lt.s32.totalorder %s22, 1
      %s393 = scalar_select %p392, %s22, 1
      %s394 = smul.addr %s393, 8
      %s395 = smul.addr %s394, 4
      %s396 = scalar_lea.vmem %s0, %s395
      %p397 = scmp.lt.s32.totalorder %s22, 1
      %s398 = scalar_select %p397, %s22, 1
      %s399 = smul.addr %s398, 8
      %s400 = smul.addr %s399, 4
      %s401 = scalar_lea.vmem %s1, %s400
      %p402 = scmp.lt.s32.totalorder %s22, 1
      %s403 = scalar_select %p402, %s22, 1
      %s404 = smul.addr %s403, 8
      %s405 = smul.addr %s404, 8
      %s406 = scalar_lea.vmem %s11, %s405
      %v408 = vld [vmem:[%s396] sm:$0xf]
      %v409 = vld [vmem:[%s396 + $0x4] sm:$0xf]
      %v410 = vld [vmem:[%s396 + $0x8] sm:$0xf]
      %v411 = vld [vmem:[%s396 + $0xc] sm:$0xf]
      %v412 = vld [vmem:[%s396 + $0x10] sm:$0xf]
      %v413 = vld [vmem:[%s396 + $0x14] sm:$0xf]
      %v414 = vld [vmem:[%s396 + $0x18] sm:$0xf]
      %v415 = vld [vmem:[%s396 + $0x1c] sm:$0xf]
      %v416 = vunpack.c.l.bf16 %v408
      %v417 = vunpack.c.l.bf16 %v409
      %v418 = vunpack.c.l.bf16 %v410
      %v419 = vunpack.c.l.bf16 %v411
      %v420 = vunpack.c.l.bf16 %v412
      %v421 = vunpack.c.l.bf16 %v413
      %v422 = vunpack.c.l.bf16 %v414
      %v423 = vunpack.c.l.bf16 %v415
      %vm424 = vcmask 64512
      %v425 = vsel %vm424, %v416, 0.0
      %426 = vadd.xlane.f32.xlu0 %v425
      %v427 = vpop.xlane.xlu0 %426
      %v428 = vsel %vm424, %v417, 0.0
      %429 = vadd.xlane.f32.xlu0 %v428
      %v430 = vpop.xlane.xlu0 %429
      %v431 = vsel %vm424, %v418, 0.0
      %432 = vadd.xlane.f32.xlu0 %v431
      %v433 = vpop.xlane.xlu0 %432
      %v434 = vsel %vm424, %v419, 0.0
      %435 = vadd.xlane.f32.xlu0 %v434
      %v436 = vpop.xlane.xlu0 %435
      %v437 = vsel %vm424, %v420, 0.0
      %438 = vadd.xlane.f32.xlu0 %v437
      %v439 = vpop.xlane.xlu0 %438
      %v440 = vsel %vm424, %v421, 0.0
      %441 = vadd.xlane.f32.xlu0 %v440
      %v442 = vpop.xlane.xlu0 %441
      %v443 = vsel %vm424, %v422, 0.0
      %444 = vadd.xlane.f32.xlu0 %v443
      %v445 = vpop.xlane.xlu0 %444
      %v446 = vsel %vm424, %v423, 0.0
      %447 = vadd.xlane.f32.xlu0 %v446
      %v448 = vpop.xlane.xlu0 %447
      %v449 = vrcp.pop 8.0
      %v450 = vmul.f32 %v427, %v449
      %v451 = vmul.f32 %v430, %v449
      %v452 = vmul.f32 %v433, %v449
      %v453 = vmul.f32 %v436, %v449
      %v454 = vmul.f32 %v439, %v449
      %v455 = vmul.f32 %v442, %v449
      %v456 = vmul.f32 %v445, %v449
      %v457 = vmul.f32 %v448, %v449
      %v458 = vsub.f32 %v416, %v450
      %v459 = vsub.f32 %v417, %v451
      %v460 = vsub.f32 %v418, %v452
      %v461 = vsub.f32 %v419, %v453
      %v462 = vsub.f32 %v420, %v454
      %v463 = vsub.f32 %v421, %v455
      %v464 = vsub.f32 %v422, %v456
      %v465 = vsub.f32 %v423, %v457
      %v466 = vmul.f32 %v458, %v458
      %v467 = vmul.f32 %v459, %v459
      %v468 = vmul.f32 %v460, %v460
      %v469 = vmul.f32 %v461, %v461
      %v470 = vmul.f32 %v462, %v462
      %v471 = vmul.f32 %v463, %v463
      %v472 = vmul.f32 %v464, %v464
      %v473 = vmul.f32 %v465, %v465
      %v474 = vsel %vm424, %v466, 0.0
      %475 = vadd.xlane.f32.xlu0 %v474
      %v476 = vpop.xlane.xlu0 %475
      %v477 = vsel %vm424, %v467, 0.0
      %478 = vadd.xlane.f32.xlu0 %v477
      %v479 = vpop.xlane.xlu0 %478
      %v480 = vsel %vm424, %v468, 0.0
      %481 = vadd.xlane.f32.xlu0 %v480
      %v482 = vpop.xlane.xlu0 %481
      %v483 = vsel %vm424, %v469, 0.0
      %484 = vadd.xlane.f32.xlu0 %v483
      %v485 = vpop.xlane.xlu0 %484
      %v486 = vsel %vm424, %v470, 0.0
      %487 = vadd.xlane.f32.xlu0 %v486
      %v488 = vpop.xlane.xlu0 %487
      %v489 = vsel %vm424, %v471, 0.0
      %490 = vadd.xlane.f32.xlu0 %v489
      %v491 = vpop.xlane.xlu0 %490
      %v492 = vsel %vm424, %v472, 0.0
      %493 = vadd.xlane.f32.xlu0 %v492
      %v494 = vpop.xlane.xlu0 %493
      %v495 = vsel %vm424, %v473, 0.0
      %496 = vadd.xlane.f32.xlu0 %v495
      %v497 = vpop.xlane.xlu0 %496
      %v498 = vmul.f32 %v476, %v449
      %v499 = vmul.f32 %v479, %v449
      %v500 = vmul.f32 %v482, %v449
      %v501 = vmul.f32 %v485, %v449
      %v502 = vmul.f32 %v488, %v449
      %v503 = vmul.f32 %v491, %v449
      %v504 = vmul.f32 %v494, %v449
      %v505 = vmul.f32 %v497, %v449
      %v506 = vadd.f32 %v498, 1e-05
      %v507 = vadd.f32 %v499, 1e-05
      %v508 = vadd.f32 %v500, 1e-05
      %v509 = vadd.f32 %v501, 1e-05
      %v510 = vadd.f32 %v502, 1e-05
      %v511 = vadd.f32 %v503, 1e-05
      %v512 = vadd.f32 %v504, 1e-05
      %v513 = vadd.f32 %v505, 1e-05
      %v514 = vrsqrt.pop %v506
      %v515 = vrsqrt.pop %v507
      %v516 = vrsqrt.pop %v508
      %v517 = vrsqrt.pop %v509
      %v518 = vrsqrt.pop %v510
      %v519 = vrsqrt.pop %v511
      %v520 = vrsqrt.pop %v512
      %v521 = vrsqrt.pop %v513
      %v522 = vmul.f32 %v458, %v514
      %v523 = vmul.f32 %v459, %v515
      %v524 = vmul.f32 %v460, %v516
      %v525 = vmul.f32 %v461, %v517
      %v526 = vmul.f32 %v462, %v518
      %v527 = vmul.f32 %v463, %v519
      %v528 = vmul.f32 %v464, %v520
      %v529 = vmul.f32 %v465, %v521
      %v530 = vld [vmem:[%s2] sm:$0x1]
      %v532 = vlaneseq
      %v533 = vshrl.u32 %v532, 7
      %v534 = vsub.s32 0, %v533
      %v535 = vrot.slane %v530, %v534
      %v537 = vmul.f32 %v522, %v535
      %v538 = vmul.f32 %v523, %v535
      %v539 = vmul.f32 %v524, %v535
      %v540 = vmul.f32 %v525, %v535
      %v541 = vmul.f32 %v526, %v535
      %v542 = vmul.f32 %v527, %v535
      %v543 = vmul.f32 %v528, %v535
      %v544 = vmul.f32 %v529, %v535
      %v545 = vld [vmem:[%s3] sm:$0x1]
      %v547 = vlaneseq
      %v548 = vshrl.u32 %v547, 7
      %v549 = vsub.s32 0, %v548
      %v550 = vrot.slane %v545, %v549
      %v552 = vadd.f32 %v537, %v550
      %v553 = vadd.f32 %v538, %v550
      %v554 = vadd.f32 %v539, %v550
      %v555 = vadd.f32 %v540, %v550
      %v556 = vadd.f32 %v541, %v550
      %v557 = vadd.f32 %v542, %v550
      %v558 = vadd.f32 %v543, %v550
      %v559 = vadd.f32 %v544, %v550
      %v560 = vpack.c.bf16 %v553, %v552
      %v561 = vpack.c.bf16 %v555, %v554
      %v562 = vpack.c.bf16 %v557, %v556
      %v563 = vpack.c.bf16 %v559, %v558
      %v564 = vld [vmem:[%s4] sm:$0xf]
      %v565 = vld [vmem:[%s5] sm:$0x1]
      %v567 = vlaneseq
      %v568 = vshrl.u32 %v567, 7
      %v569 = vsub.s32 0, %v568
      %v570 = vrot.slane %v565, %v569
      %v573 = vsel %vm424, %v560, 0
      %v576 = vsel %vm424, %v561, 0
      %v579 = vsel %vm424, %v562, 0
      %v582 = vsel %vm424, %v563, 0
      %vm584 = vcmask 1043456
      %v586 = vsel %vm584, %v564, 0
      %588 = vmatprep.subr.bf16.mxu0 0
      %589 = vmatpush1.bf16.msra.mxu0 %v586
      %590 = vmatprep.subr.bf16.mxu0 0
      %591 = vmatpush1.bf16.msra.mxu0 0
      %592 = vmatprep.subr.bf16.mxu0 0
      %593 = vmatpush1.bf16.msra.mxu0 0
      %594 = vmatprep.subr.bf16.mxu0 0
      %595 = vmatpush1.bf16.msra.mxu0 0
      %596 = vmatprep.subr.bf16.mxu0 0
      %597 = vmatpush1.bf16.msra.mxu0 0
      %598 = vmatprep.subr.bf16.mxu0 0
      %599 = vmatpush1.bf16.msra.mxu0 0
      %600 = vmatprep.subr.bf16.mxu0 0
      %601 = vmatpush1.bf16.msra.mxu0 0
      %602 = vmatprep.subr.bf16.mxu0 0
      %603 = vmatpush1.bf16.msra.mxu0 0
      %604 = vmatprep.subr.bf16.mxu0 0
      %605 = vmatpush1.bf16.msra.mxu0 0
      %606 = vmatprep.subr.bf16.mxu0 0
      %607 = vmatpush1.bf16.msra.mxu0 0
      %608 = vmatprep.subr.bf16.mxu0 0
      %609 = vmatpush1.bf16.msra.mxu0 0
      %610 = vmatprep.subr.bf16.mxu0 0
      %611 = vmatpush1.bf16.msra.mxu0 0
      %612 = vmatprep.subr.bf16.mxu0 0
      %613 = vmatpush1.bf16.msra.mxu0 0
      %614 = vmatprep.subr.bf16.mxu0 0
      %615 = vmatpush1.bf16.msra.mxu0 0
      %616 = vmatprep.subr.bf16.mxu0 0
      %617 = vmatpush1.bf16.msra.mxu0 0
      %618 = vmatprep.subr.bf16.mxu0 0
      %619 = vmatpush1.bf16.msra.mxu0 0
      %620 = vmatprep.mubr.bf16.mxu0 0
      %621 = vmatmul.mubr.bf16.gmra.mrb[0].mxu0 %v573
      %v622 = vpop.f32.mrb[0].mxu0
      %v623 = vadd.f32 %v570, %v622
      %v624 = vpop.f32.mrb[0].mxu0
      %v625 = vpop.f32.mrb[0].mxu0
      %v626 = vadd.f32 %v570, %v625
      %v627 = vpop.f32.mrb[0].mxu0
      %628 = vmatprep.mubr.bf16.mxu0 0
      %629 = vmatmul.mubr.bf16.gmra.mrb[0].mxu0 %v576
      %v630 = vpop.f32.mrb[0].mxu0
      %v631 = vadd.f32 %v570, %v630
      %v632 = vpop.f32.mrb[0].mxu0
      %v633 = vpop.f32.mrb[0].mxu0
      %v634 = vadd.f32 %v570, %v633
      %v635 = vpop.f32.mrb[0].mxu0
      %636 = vmatprep.mubr.bf16.mxu0 0
      %637 = vmatmul.mubr.bf16.gmra.mrb[0].mxu0 %v579
      %v638 = vpop.f32.mrb[0].mxu0
      %v639 = vadd.f32 %v570, %v638
      %v640 = vpop.f32.mrb[0].mxu0
      %v641 = vpop.f32.mrb[0].mxu0
      %v642 = vadd.f32 %v570, %v641
      %v643 = vpop.f32.mrb[0].mxu0
      %644 = vmatprep.mubr.bf16.mxu0 0
      %645 = vmatmul.mubr.bf16.gmra.mrb[0].mxu0 %v582
      %v646 = vpop.f32.mrb[0].mxu0
      %v647 = vadd.f32 %v570, %v646
      %v648 = vpop.f32.mrb[0].mxu0
      %v649 = vpop.f32.mrb[0].mxu0
      %v650 = vadd.f32 %v570, %v649
      %v651 = vpop.f32.mrb[0].mxu0
      %652 = vdwg.mxu0
      %v653 = vld [vmem:[%s6] sm:$0xf]
      %v654 = vld [vmem:[%s6 + $0x4] sm:$0xf]
      %v655 = vld [vmem:[%s6 + $0x8] sm:$0xf]
      %v656 = vld [vmem:[%s6 + $0xc] sm:$0xf]
      %v657 = vld [vmem:[%s6 + $0x10] sm:$0xf]
      %v658 = vld [vmem:[%s6 + $0x14] sm:$0xf]
      %v659 = vld [vmem:[%s6 + $0x18] sm:$0xf]
      %v660 = vld [vmem:[%s6 + $0x1c] sm:$0xf]
      %v661 = vld [vmem:[%s6 + $0x20] sm:$0xf]
      %v662 = vld [vmem:[%s6 + $0x24] sm:$0xf]
      %v663 = vld [vmem:[%s6 + $0x28] sm:$0xf]
      %v664 = vld [vmem:[%s6 + $0x2c] sm:$0xf]
      %v665 = vld [vmem:[%s6 + $0x30] sm:$0xf]
      %v666 = vld [vmem:[%s6 + $0x34] sm:$0xf]
      %v667 = vld [vmem:[%s6 + $0x38] sm:$0xf]
      %v668 = vld [vmem:[%s6 + $0x3c] sm:$0xf]
      %v669 = vld [vmem:[%s6 + $0x40] sm:$0xf]
      %v670 = vld [vmem:[%s6 + $0x44] sm:$0xf]
      %v671 = vld [vmem:[%s6 + $0x48] sm:$0xf]
      %v672 = vld [vmem:[%s6 + $0x4c] sm:$0xf]
      %v673 = vld [vmem:[%s6 + $0x50] sm:$0xf]
      %v674 = vld [vmem:[%s6 + $0x54] sm:$0xf]
      %v675 = vld [vmem:[%s6 + $0x58] sm:$0xf]
      %v676 = vld [vmem:[%s6 + $0x5c] sm:$0xf]
      %v677 = vld [vmem:[%s6 + $0x60] sm:$0xf]
      %v678 = vld [vmem:[%s6 + $0x64] sm:$0xf]
      %v679 = vld [vmem:[%s6 + $0x68] sm:$0xf]
      %v680 = vld [vmem:[%s6 + $0x6c] sm:$0xf]
      %v681 = vld [vmem:[%s6 + $0x70] sm:$0xf]
      %v682 = vld [vmem:[%s6 + $0x74] sm:$0xf]
      %v683 = vld [vmem:[%s6 + $0x78] sm:$0xf]
      %v684 = vld [vmem:[%s6 + $0x7c] sm:$0xf]
      %v685 = vld [vmem:[%s7] sm:$0xf]
      %v686 = vld [vmem:[%s7 + $0x4] sm:$0xf]
      %v687 = vld [vmem:[%s7 + $0x8] sm:$0xf]
      %v688 = vld [vmem:[%s7 + $0xc] sm:$0xf]
      %v689 = vld [vmem:[%s7 + $0x10] sm:$0xf]
      %v690 = vld [vmem:[%s7 + $0x14] sm:$0xf]
      %v691 = vld [vmem:[%s7 + $0x18] sm:$0xf]
      %v692 = vld [vmem:[%s7 + $0x1c] sm:$0xf]
      %v693 = vld [vmem:[%s7 + $0x20] sm:$0xf]
      %v694 = vld [vmem:[%s7 + $0x24] sm:$0xf]
      %v695 = vld [vmem:[%s7 + $0x28] sm:$0xf]
      %v696 = vld [vmem:[%s7 + $0x2c] sm:$0xf]
      %v697 = vld [vmem:[%s7 + $0x30] sm:$0xf]
      %v698 = vld [vmem:[%s7 + $0x34] sm:$0xf]
      %v699 = vld [vmem:[%s7 + $0x38] sm:$0xf]
      %v700 = vld [vmem:[%s7 + $0x3c] sm:$0xf]
      %v701 = vld [vmem:[%s7 + $0x40] sm:$0xf]
      %v702 = vld [vmem:[%s7 + $0x44] sm:$0xf]
      %v703 = vld [vmem:[%s7 + $0x48] sm:$0xf]
      %v704 = vld [vmem:[%s7 + $0x4c] sm:$0xf]
      %v705 = vld [vmem:[%s7 + $0x50] sm:$0xf]
      %v706 = vld [vmem:[%s7 + $0x54] sm:$0xf]
      %v707 = vld [vmem:[%s7 + $0x58] sm:$0xf]
      %v708 = vld [vmem:[%s7 + $0x5c] sm:$0xf]
      %v709 = vld [vmem:[%s7 + $0x60] sm:$0xf]
      %v710 = vld [vmem:[%s7 + $0x64] sm:$0xf]
      %v711 = vld [vmem:[%s7 + $0x68] sm:$0xf]
      %v712 = vld [vmem:[%s7 + $0x6c] sm:$0xf]
      %v713 = vld [vmem:[%s7 + $0x70] sm:$0xf]
      %v714 = vld [vmem:[%s7 + $0x74] sm:$0xf]
      %v715 = vld [vmem:[%s7 + $0x78] sm:$0xf]
      %v716 = vld [vmem:[%s7 + $0x7c] sm:$0xf]
      %v717 = vld [vmem:[%s8] sm:$0xf]
      %v718 = vpack.c.bf16 %v626, %v623
      %v719 = vpack.c.bf16 %v634, %v631
      %v720 = vpack.c.bf16 %v642, %v639
      %v721 = vpack.c.bf16 %v650, %v647
      %v730 = vunpack.c.l.b16 %v653
      %v731 = vunpack.c.l.b16 %v654
      %v732 = vunpack.c.l.b16 %v655
      %v733 = vunpack.c.l.b16 %v656
      %v734 = vunpack.c.l.b16 %v657
      %v735 = vunpack.c.l.b16 %v658
      %v736 = vunpack.c.l.b16 %v659
      %v737 = vunpack.c.l.b16 %v660
      %v738 = vpack.c.b16 %v731, %v730
      %v739 = vpack.c.b16 %v733, %v732
      %v740 = vpack.c.b16 %v735, %v734
      %v741 = vpack.c.b16 %v737, %v736
      %742 = vrot.lane.b32.xlu0 %v738, 8
      %v743 = vpop.permute.xlu0 %742
      %744 = vrot.lane.b32.xlu0 %v739, 8
      %v745 = vpop.permute.xlu0 %744
      %746 = vrot.lane.b32.xlu0 %v740, 8
      %v747 = vpop.permute.xlu0 %746
      %748 = vrot.lane.b32.xlu0 %v741, 8
      %v749 = vpop.permute.xlu0 %748
      %v758 = vunpack.c.l.b16 %v685
      %v759 = vunpack.c.l.b16 %v686
      %v760 = vunpack.c.l.b16 %v687
      %v761 = vunpack.c.l.b16 %v688
      %v762 = vunpack.c.l.b16 %v689
      %v763 = vunpack.c.l.b16 %v690
      %v764 = vunpack.c.l.b16 %v691
      %v765 = vunpack.c.l.b16 %v692
      %v766 = vpack.c.b16 %v759, %v758
      %v767 = vpack.c.b16 %v761, %v760
      %v768 = vpack.c.b16 %v763, %v762
      %v769 = vpack.c.b16 %v765, %v764
      %770 = vrot.lane.b32.xlu0 %v766, 16
      %v771 = vpop.permute.xlu0 %770
      %772 = vrot.lane.b32.xlu0 %v767, 16
      %v773 = vpop.permute.xlu0 %772
      %774 = vrot.lane.b32.xlu0 %v768, 16
      %v775 = vpop.permute.xlu0 %774
      %776 = vrot.lane.b32.xlu0 %v769, 16
      %v777 = vpop.permute.xlu0 %776
      %v778 = vlaneseq
      %v779 = vshrl.u32 %v778, 7
      %v780 = vsub.s32 0, %v779
      %v781 = vrot.slane %v717, %v780
      %786 = vrot.lane.b32.xlu0 %v718, 120
      %v787 = vpop.permute.xlu0 %786
      %788 = vrot.lane.b32.xlu0 %v719, 120
      %v789 = vpop.permute.xlu0 %788
      %790 = vrot.lane.b32.xlu0 %v720, 120
      %v791 = vpop.permute.xlu0 %790
      %792 = vrot.lane.b32.xlu0 %v721, 120
      %v793 = vpop.permute.xlu0 %792
      %794 = vrot.lane.b32.xlu0 %v743, 120
      %v795 = vpop.permute.xlu0 %794
      %796 = vrot.lane.b32.xlu0 %v745, 120
      %v797 = vpop.permute.xlu0 %796
      %798 = vrot.lane.b32.xlu0 %v747, 120
      %v799 = vpop.permute.xlu0 %798
      %800 = vrot.lane.b32.xlu0 %v749, 120
      %v801 = vpop.permute.xlu0 %800
      %vm802 = vcmask 15360
      %v804 = vsel %vm802, %v718, 0
      %v807 = vsel %vm802, %v719, 0
      %v810 = vsel %vm802, %v720, 0
      %v813 = vsel %vm802, %v721, 0
      %v816 = vsel %vm802, %v787, 0
      %v819 = vsel %vm802, %v789, 0
      %v822 = vsel %vm802, %v791, 0
      %v825 = vsel %vm802, %v793, 0
      %v828 = vsel %vm802, %v795, 0
      %v831 = vsel %vm802, %v797, 0
      %v834 = vsel %vm802, %v799, 0
      %v837 = vsel %vm802, %v801, 0
      %839 = vmatprep.subr.bf16.mxu0 0
      %840 = vmatpush1.bf16.xpose.msra.mxu0 %v816
      %841 = vmatprep.subr.bf16.mxu0 0
      %842 = vmatpush1.bf16.xpose.msra.mxu0 %v819
      %843 = vmatprep.subr.bf16.mxu0 0
      %844 = vmatpush1.bf16.xpose.msra.mxu0 %v822
      %845 = vmatprep.subr.bf16.mxu0 0
      %846 = vmatpush1.bf16.xpose.msra.mxu0 %v825
      %847 = vmatprep.subr.bf16.mxu0 0
      %848 = vmatpush1.bf16.xpose.msra.mxu0 %v828
      %849 = vmatprep.subr.bf16.mxu0 0
      %850 = vmatpush1.bf16.xpose.msra.mxu0 %v831
      %851 = vmatprep.subr.bf16.mxu0 0
      %852 = vmatpush1.bf16.xpose.msra.mxu0 %v834
      %853 = vmatprep.subr.bf16.mxu0 0
      %854 = vmatpush1.bf16.xpose.msra.mxu0 %v837
      %855 = vmatprep.subr.bf16.mxu0 0
      %856 = vmatpush1.bf16.xpose.msra.mxu0 0
      %857 = vmatprep.subr.bf16.mxu0 0
      %858 = vmatpush1.bf16.xpose.msra.mxu0 0
      %859 = vmatprep.subr.bf16.mxu0 0
      %860 = vmatpush1.bf16.xpose.msra.mxu0 0
      %861 = vmatprep.subr.bf16.mxu0 0
      %862 = vmatpush1.bf16.xpose.msra.mxu0 0
      %863 = vmatprep.subr.bf16.mxu0 0
      %864 = vmatpush1.bf16.xpose.msra.mxu0 0
      %865 = vmatprep.subr.bf16.mxu0 0
      %866 = vmatpush1.bf16.xpose.msra.mxu0 0
      %867 = vmatprep.subr.bf16.mxu0 0
      %868 = vmatpush1.bf16.xpose.msra.mxu0 0
      %869 = vmatprep.subr.bf16.mxu0 0
      %870 = vmatpush1.bf16.xpose.msra.mxu0 0
      %871 = vmatprep.mubr.bf16.mxu0 0
      %872 = vmatmul.mubr.bf16.gmra.mrb[0].mxu0 %v804
      %v873 = vpop.f32.mrb[0].mxu0
      %v874 = vadd.f32 %v781, %v873
      %v875 = vpop.f32.mrb[0].mxu0
      %v876 = vpop.f32.mrb[0].mxu0
      %v877 = vadd.f32 %v781, %v876
      %v878 = vpop.f32.mrb[0].mxu0
      %879 = vmatprep.mubr.bf16.mxu0 0
      %880 = vmatmul.mubr.bf16.gmra.mrb[0].mxu0 %v807
      %v881 = vpop.f32.mrb[0].mxu0
      %v882 = vadd.f32 %v781, %v881
      %v883 = vpop.f32.mrb[0].mxu0
      %v884 = vpop.f32.mrb[0].mxu0
      %v885 = vadd.f32 %v781, %v884
      %v886 = vpop.f32.mrb[0].mxu0
      %887 = vmatprep.mubr.bf16.mxu0 0
      %888 = vmatmul.mubr.bf16.gmra.mrb[0].mxu0 %v810
      %v889 = vpop.f32.mrb[0].mxu0
      %v890 = vadd.f32 %v781, %v889
      %v891 = vpop.f32.mrb[0].mxu0
      %v892 = vpop.f32.mrb[0].mxu0
      %v893 = vadd.f32 %v781, %v892
      %v894 = vpop.f32.mrb[0].mxu0
      %895 = vmatprep.mubr.bf16.mxu0 0
      %896 = vmatmul.mubr.bf16.gmra.mrb[0].mxu0 %v813
      %v897 = vpop.f32.mrb[0].mxu0
      %v898 = vadd.f32 %v781, %v897
      %v899 = vpop.f32.mrb[0].mxu0
      %v900 = vpop.f32.mrb[0].mxu0
      %v901 = vadd.f32 %v781, %v900
      %v902 = vpop.f32.mrb[0].mxu0
      %903 = vdwg.mxu0
      %904 = vmax.xlane.f32.xlu0 %v874
      %v905 = vpop.xlane.xlu0 %904
      %906 = vmax.xlane.f32.xlu0 %v877
      %v907 = vpop.xlane.xlu0 %906
      %908 = vmax.xlane.f32.xlu0 %v882
      %v909 = vpop.xlane.xlu0 %908
      %910 = vmax.xlane.f32.xlu0 %v885
      %v911 = vpop.xlane.xlu0 %910
      %912 = vmax.xlane.f32.xlu0 %v890
      %v913 = vpop.xlane.xlu0 %912
      %914 = vmax.xlane.f32.xlu0 %v893
      %v915 = vpop.xlane.xlu0 %914
      %916 = vmax.xlane.f32.xlu0 %v898
      %v917 = vpop.xlane.xlu0 %916
      %918 = vmax.xlane.f32.xlu0 %v901
      %v919 = vpop.xlane.xlu0 %918
      %v920 = vsub.f32 %v874, %v905
      %v921 = vsub.f32 %v877, %v907
      %v922 = vsub.f32 %v882, %v909
      %v923 = vsub.f32 %v885, %v911
      %v924 = vsub.f32 %v890, %v913
      %v925 = vsub.f32 %v893, %v915
      %v926 = vsub.f32 %v898, %v917
      %v927 = vsub.f32 %v901, %v919
      %v928 = vmul.f32 %v920, 1.442695
      %v929 = vpow.pop %v928
      %v930 = vmul.f32 %v921, 1.442695
      %v931 = vpow.pop %v930
      %v932 = vmul.f32 %v922, 1.442695
      %v933 = vpow.pop %v932
      %v934 = vmul.f32 %v923, 1.442695
      %v935 = vpow.pop %v934
      %v936 = vmul.f32 %v924, 1.442695
      %v937 = vpow.pop %v936
      %v938 = vmul.f32 %v925, 1.442695
      %v939 = vpow.pop %v938
      %v940 = vmul.f32 %v926, 1.442695
      %v941 = vpow.pop %v940
      %v942 = vmul.f32 %v927, 1.442695
      %v943 = vpow.pop %v942
      %944 = vadd.xlane.f32.xlu0 %v929
      %v945 = vpop.xlane.xlu0 %944
      %946 = vadd.xlane.f32.xlu0 %v931
      %v947 = vpop.xlane.xlu0 %946
      %948 = vadd.xlane.f32.xlu0 %v933
      %v949 = vpop.xlane.xlu0 %948
      %950 = vadd.xlane.f32.xlu0 %v935
      %v951 = vpop.xlane.xlu0 %950
      %952 = vadd.xlane.f32.xlu0 %v937
      %v953 = vpop.xlane.xlu0 %952
      %954 = vadd.xlane.f32.xlu0 %v939
      %v955 = vpop.xlane.xlu0 %954
      %956 = vadd.xlane.f32.xlu0 %v941
      %v957 = vpop.xlane.xlu0 %956
      %958 = vadd.xlane.f32.xlu0 %v943
      %v959 = vpop.xlane.xlu0 %958
      %v960 = vpack.c.bf16 %v931, %v929
      %v961 = vpack.c.bf16 %v935, %v933
      %v962 = vpack.c.bf16 %v939, %v937
      %v963 = vpack.c.bf16 %v943, %v941
      %964 = vrot.lane.b32.xlu0 %v718, 112
      %v965 = vpop.permute.xlu0 %964
      %966 = vrot.lane.b32.xlu0 %v719, 112
      %v967 = vpop.permute.xlu0 %966
      %968 = vrot.lane.b32.xlu0 %v720, 112
      %v969 = vpop.permute.xlu0 %968
      %970 = vrot.lane.b32.xlu0 %v721, 112
      %v971 = vpop.permute.xlu0 %970
      %972 = vrot.lane.b32.xlu0 %v771, 112
      %v973 = vpop.permute.xlu0 %972
      %974 = vrot.lane.b32.xlu0 %v773, 112
      %v975 = vpop.permute.xlu0 %974
      %976 = vrot.lane.b32.xlu0 %v775, 112
      %v977 = vpop.permute.xlu0 %976
      %978 = vrot.lane.b32.xlu0 %v777, 112
      %v979 = vpop.permute.xlu0 %978
      %988 = vmatprep.subr.bf16.mxu0 0
      %989 = vmatpush1.bf16.msra.mxu0 %v965
      %990 = vmatprep.subr.bf16.mxu0 0
      %991 = vmatpush1.bf16.msra.mxu0 %v967
      %992 = vmatprep.subr.bf16.mxu0 0
      %993 = vmatpush1.bf16.msra.mxu0 %v969
      %994 = vmatprep.subr.bf16.mxu0 0
      %995 = vmatpush1.bf16.msra.mxu0 %v971
      %996 = vmatprep.subr.bf16.mxu0 0
      %997 = vmatpush1.bf16.msra.mxu0 %v973
      %998 = vmatprep.subr.bf16.mxu0 0
      %999 = vmatpush1.bf16.msra.mxu0 %v975
      %1000 = vmatprep.subr.bf16.mxu0 0
      %1001 = vmatpush1.bf16.msra.mxu0 %v977
      %1002 = vmatprep.subr.bf16.mxu0 0
      %1003 = vmatpush1.bf16.msra.mxu0 %v979
      %1004 = vmatprep.subr.bf16.mxu0 0
      %1005 = vmatpush1.bf16.msra.mxu0 0
      %1006 = vmatprep.subr.bf16.mxu0 0
      %1007 = vmatpush1.bf16.msra.mxu0 0
      %1008 = vmatprep.subr.bf16.mxu0 0
      %1009 = vmatpush1.bf16.msra.mxu0 0
      %1010 = vmatprep.subr.bf16.mxu0 0
      %1011 = vmatpush1.bf16.msra.mxu0 0
      %1012 = vmatprep.subr.bf16.mxu0 0
      %1013 = vmatpush1.bf16.msra.mxu0 0
      %1014 = vmatprep.subr.bf16.mxu0 0
      %1015 = vmatpush1.bf16.msra.mxu0 0
      %1016 = vmatprep.subr.bf16.mxu0 0
      %1017 = vmatpush1.bf16.msra.mxu0 0
      %1018 = vmatprep.subr.bf16.mxu0 0
      %1019 = vmatpush1.bf16.msra.mxu0 0
      %1020 = vmatprep.mubr.bf16.mxu0 0
      %1021 = vmatmul.mubr.bf16.gmra.mrb[0].mxu0 %v960
      %v1022 = vpop.f32.mrb[0].mxu0
      %v1023 = vadd.f32 0.0, %v1022
      %v1024 = vpop.f32.mrb[0].mxu0
      %v1025 = vpop.f32.mrb[0].mxu0
      %v1026 = vadd.f32 0.0, %v1025
      %v1027 = vpop.f32.mrb[0].mxu0
      %1028 = vmatprep.mubr.bf16.mxu0 0
      %1029 = vmatmul.mubr.bf16.gmra.mrb[0].mxu0 %v961
      %v1030 = vpop.f32.mrb[0].mxu0
      %v1031 = vadd.f32 0.0, %v1030
      %v1032 = vpop.f32.mrb[0].mxu0
      %v1033 = vpop.f32.mrb[0].mxu0
      %v1034 = vadd.f32 0.0, %v1033
      %v1035 = vpop.f32.mrb[0].mxu0
      %1036 = vmatprep.mubr.bf16.mxu0 0
      %1037 = vmatmul.mubr.bf16.gmra.mrb[0].mxu0 %v962
      %v1038 = vpop.f32.mrb[0].mxu0
      %v1039 = vadd.f32 0.0, %v1038
      %v1040 = vpop.f32.mrb[0].mxu0
      %v1041 = vpop.f32.mrb[0].mxu0
      %v1042 = vadd.f32 0.0, %v1041
      %v1043 = vpop.f32.mrb[0].mxu0
      %1044 = vmatprep.mubr.bf16.mxu0 0
      %1045 = vmatmul.mubr.bf16.gmra.mrb[0].mxu0 %v963
      %v1046 = vpop.f32.mrb[0].mxu0
      %v1047 = vadd.f32 0.0, %v1046
      %v1048 = vpop.f32.mrb[0].mxu0
      %v1049 = vpop.f32.mrb[0].mxu0
      %v1050 = vadd.f32 0.0, %v1049
      %v1051 = vpop.f32.mrb[0].mxu0
      %1052 = vdwg.mxu0
      %v1053 = vrcp.pop %v945
      %v1054 = vrcp.pop %v947
      %v1055 = vrcp.pop %v949
      %v1056 = vrcp.pop %v951
      %v1057 = vrcp.pop %v953
      %v1058 = vrcp.pop %v955
      %v1059 = vrcp.pop %v957
      %v1060 = vrcp.pop %v959
      %v1061 = vmul.f32 %v1023, %v1053
      %v1062 = vmul.f32 %v1026, %v1054
      %v1063 = vmul.f32 %v1031, %v1055
      %v1064 = vmul.f32 %v1034, %v1056
      %v1065 = vmul.f32 %v1039, %v1057
      %v1066 = vmul.f32 %v1042, %v1058
      %v1067 = vmul.f32 %v1047, %v1059
      %v1068 = vmul.f32 %v1050, %v1060
      %v1077 = vunpack.c.l.b16 %v661
      %v1078 = vunpack.c.l.b16 %v662
      %v1079 = vunpack.c.l.b16 %v663
      %v1080 = vunpack.c.l.b16 %v664
      %v1081 = vunpack.c.l.b16 %v665
      %v1082 = vunpack.c.l.b16 %v666
      %v1083 = vunpack.c.l.b16 %v667
      %v1084 = vunpack.c.l.b16 %v668
      %v1085 = vpack.c.b16 %v1078, %v1077
      %v1086 = vpack.c.b16 %v1080, %v1079
      %v1087 = vpack.c.b16 %v1082, %v1081
      %v1088 = vpack.c.b16 %v1084, %v1083
      %1089 = vrot.lane.b32.xlu0 %v1085, 10
      %v1090 = vpop.permute.xlu0 %1089
      %1091 = vrot.lane.b32.xlu0 %v1086, 10
      %v1092 = vpop.permute.xlu0 %1091
      %1093 = vrot.lane.b32.xlu0 %v1087, 10
      %v1094 = vpop.permute.xlu0 %1093
      %1095 = vrot.lane.b32.xlu0 %v1088, 10
      %v1096 = vpop.permute.xlu0 %1095
      %v1105 = vunpack.c.l.b16 %v693
      %v1106 = vunpack.c.l.b16 %v694
      %v1107 = vunpack.c.l.b16 %v695
      %v1108 = vunpack.c.l.b16 %v696
      %v1109 = vunpack.c.l.b16 %v697
      %v1110 = vunpack.c.l.b16 %v698
      %v1111 = vunpack.c.l.b16 %v699
      %v1112 = vunpack.c.l.b16 %v700
      %v1113 = vpack.c.b16 %v1106, %v1105
      %v1114 = vpack.c.b16 %v1108, %v1107
      %v1115 = vpack.c.b16 %v1110, %v1109
      %v1116 = vpack.c.b16 %v1112, %v1111
      %1117 = vrot.lane.b32.xlu0 %v1113, 18
      %v1118 = vpop.permute.xlu0 %1117
      %1119 = vrot.lane.b32.xlu0 %v1114, 18
      %v1120 = vpop.permute.xlu0 %1119
      %1121 = vrot.lane.b32.xlu0 %v1115, 18
      %v1122 = vpop.permute.xlu0 %1121
      %1123 = vrot.lane.b32.xlu0 %v1116, 18
      %v1124 = vpop.permute.xlu0 %1123
      %v1125 = vlaneseq
      %v1126 = vshrl.u32 %v1125, 7
      %v1127 = vsub.s32 1, %v1126
      %v1128 = vrot.slane %v717, %v1127
      %1129 = vrot.lane.b32.xlu0 %v718, 126
      %v1130 = vpop.permute.xlu0 %1129
      %1131 = vrot.lane.b32.xlu0 %v719, 126
      %v1132 = vpop.permute.xlu0 %1131
      %1133 = vrot.lane.b32.xlu0 %v720, 126
      %v1134 = vpop.permute.xlu0 %1133
      %1135 = vrot.lane.b32.xlu0 %v721, 126
      %v1136 = vpop.permute.xlu0 %1135
      %1137 = vrot.lane.b32.xlu0 %v718, 118
      %v1138 = vpop.permute.xlu0 %1137
      %1139 = vrot.lane.b32.xlu0 %v719, 118
      %v1140 = vpop.permute.xlu0 %1139
      %1141 = vrot.lane.b32.xlu0 %v720, 118
      %v1142 = vpop.permute.xlu0 %1141
      %1143 = vrot.lane.b32.xlu0 %v721, 118
      %v1144 = vpop.permute.xlu0 %1143
      %1145 = vrot.lane.b32.xlu0 %v1090, 118
      %v1146 = vpop.permute.xlu0 %1145
      %1147 = vrot.lane.b32.xlu0 %v1092, 118
      %v1148 = vpop.permute.xlu0 %1147
      %1149 = vrot.lane.b32.xlu0 %v1094, 118
      %v1150 = vpop.permute.xlu0 %1149
      %1151 = vrot.lane.b32.xlu0 %v1096, 118
      %v1152 = vpop.permute.xlu0 %1151
      %v1154 = vsel %vm802, %v1130, 0
      %v1157 = vsel %vm802, %v1132, 0
      %v1160 = vsel %vm802, %v1134, 0
      %v1163 = vsel %vm802, %v1136, 0
      %v1166 = vsel %vm802, %v1138, 0
      %v1169 = vsel %vm802, %v1140, 0
      %v1172 = vsel %vm802, %v1142, 0
      %v1175 = vsel %vm802, %v1144, 0
      %v1178 = vsel %vm802, %v1146, 0
      %v1181 = vsel %vm802, %v1148, 0
      %v1184 = vsel %vm802, %v1150, 0
      %v1187 = vsel %vm802, %v1152, 0
      %1189 = vmatprep.subr.bf16.mxu0 0
      %1190 = vmatpush1.bf16.xpose.msra.mxu0 %v1166
      %1191 = vmatprep.subr.bf16.mxu0 0
      %1192 = vmatpush1.bf16.xpose.msra.mxu0 %v1169
      %1193 = vmatprep.subr.bf16.mxu0 0
      %1194 = vmatpush1.bf16.xpose.msra.mxu0 %v1172
      %1195 = vmatprep.subr.bf16.mxu0 0
      %1196 = vmatpush1.bf16.xpose.msra.mxu0 %v1175
      %1197 = vmatprep.subr.bf16.mxu0 0
      %1198 = vmatpush1.bf16.xpose.msra.mxu0 %v1178
      %1199 = vmatprep.subr.bf16.mxu0 0
      %1200 = vmatpush1.bf16.xpose.msra.mxu0 %v1181
      %1201 = vmatprep.subr.bf16.mxu0 0
      %1202 = vmatpush1.bf16.xpose.msra.mxu0 %v1184
      %1203 = vmatprep.subr.bf16.mxu0 0
      %1204 = vmatpush1.bf16.xpose.msra.mxu0 %v1187
      %1205 = vmatprep.subr.bf16.mxu0 0
      %1206 = vmatpush1.bf16.xpose.msra.mxu0 0
      %1207 = vmatprep.subr.bf16.mxu0 0
      %1208 = vmatpush1.bf16.xpose.msra.mxu0 0
      %1209 = vmatprep.subr.bf16.mxu0 0
      %1210 = vmatpush1.bf16.xpose.msra.mxu0 0
      %1211 = vmatprep.subr.bf16.mxu0 0
      %1212 = vmatpush1.bf16.xpose.msra.mxu0 0
      %1213 = vmatprep.subr.bf16.mxu0 0
      %1214 = vmatpush1.bf16.xpose.msra.mxu0 0
      %1215 = vmatprep.subr.bf16.mxu0 0
      %1216 = vmatpush1.bf16.xpose.msra.mxu0 0
      %1217 = vmatprep.subr.bf16.mxu0 0
      %1218 = vmatpush1.bf16.xpose.msra.mxu0 0
      %1219 = vmatprep.subr.bf16.mxu0 0
      %1220 = vmatpush1.bf16.xpose.msra.mxu0 0
      %1221 = vmatprep.mubr.bf16.mxu0 0
      %1222 = vmatmul.mubr.bf16.gmra.mrb[0].mxu0 %v1154
      %v1223 = vpop.f32.mrb[0].mxu0
      %v1224 = vadd.f32 %v1128, %v1223
      %v1225 = vpop.f32.mrb[0].mxu0
      %v1226 = vpop.f32.mrb[0].mxu0
      %v1227 = vadd.f32 %v1128, %v1226
      %v1228 = vpop.f32.mrb[0].mxu0
      %1229 = vmatprep.mubr.bf16.mxu0 0
      %1230 = vmatmul.mubr.bf16.gmra.mrb[0].mxu0 %v1157
      %v1231 = vpop.f32.mrb[0].mxu0
      %v1232 = vadd.f32 %v1128, %v1231
      %v1233 = vpop.f32.mrb[0].mxu0
      %v1234 = vpop.f32.mrb[0].mxu0
      %v1235 = vadd.f32 %v1128, %v1234
      %v1236 = vpop.f32.mrb[0].mxu0
      %1237 = vmatprep.mubr.bf16.mxu0 0
      %1238 = vmatmul.mubr.bf16.gmra.mrb[0].mxu0 %v1160
      %v1239 = vpop.f32.mrb[0].mxu0
      %v1240 = vadd.f32 %v1128, %v1239
      %v1241 = vpop.f32.mrb[0].mxu0
      %v1242 = vpop.f32.mrb[0].mxu0
      %v1243 = vadd.f32 %v1128, %v1242
      %v1244 = vpop.f32.mrb[0].mxu0
      %1245 = vmatprep.mubr.bf16.mxu0 0
      %1246 = vmatmul.mubr.bf16.gmra.mrb[0].mxu0 %v1163
      %v1247 = vpop.f32.mrb[0].mxu0
      %v1248 = vadd.f32 %v1128, %v1247
      %v1249 = vpop.f32.mrb[0].mxu0
      %v1250 = vpop.f32.mrb[0].mxu0
      %v1251 = vadd.f32 %v1128, %v1250
      %v1252 = vpop.f32.mrb[0].mxu0
      %1253 = vdwg.mxu0
      %1254 = vmax.xlane.f32.xlu0 %v1224
      %v1255 = vpop.xlane.xlu0 %1254
      %1256 = vmax.xlane.f32.xlu0 %v1227
      %v1257 = vpop.xlane.xlu0 %1256
      %1258 = vmax.xlane.f32.xlu0 %v1232
      %v1259 = vpop.xlane.xlu0 %1258
      %1260 = vmax.xlane.f32.xlu0 %v1235
      %v1261 = vpop.xlane.xlu0 %1260
      %1262 = vmax.xlane.f32.xlu0 %v1240
      %v1263 = vpop.xlane.xlu0 %1262
      %1264 = vmax.xlane.f32.xlu0 %v1243
      %v1265 = vpop.xlane.xlu0 %1264
      %1266 = vmax.xlane.f32.xlu0 %v1248
      %v1267 = vpop.xlane.xlu0 %1266
      %1268 = vmax.xlane.f32.xlu0 %v1251
      %v1269 = vpop.xlane.xlu0 %1268
      %v1270 = vsub.f32 %v1224, %v1255
      %v1271 = vsub.f32 %v1227, %v1257
      %v1272 = vsub.f32 %v1232, %v1259
      %v1273 = vsub.f32 %v1235, %v1261
      %v1274 = vsub.f32 %v1240, %v1263
      %v1275 = vsub.f32 %v1243, %v1265
      %v1276 = vsub.f32 %v1248, %v1267
      %v1277 = vsub.f32 %v1251, %v1269
      %v1278 = vmul.f32 %v1270, 1.442695
      %v1279 = vpow.pop %v1278
      %v1280 = vmul.f32 %v1271, 1.442695
      %v1281 = vpow.pop %v1280
      %v1282 = vmul.f32 %v1272, 1.442695
      %v1283 = vpow.pop %v1282
      %v1284 = vmul.f32 %v1273, 1.442695
      %v1285 = vpow.pop %v1284
      %v1286 = vmul.f32 %v1274, 1.442695
      %v1287 = vpow.pop %v1286
      %v1288 = vmul.f32 %v1275, 1.442695
      %v1289 = vpow.pop %v1288
      %v1290 = vmul.f32 %v1276, 1.442695
      %v1291 = vpow.pop %v1290
      %v1292 = vmul.f32 %v1277, 1.442695
      %v1293 = vpow.pop %v1292
      %1294 = vadd.xlane.f32.xlu0 %v1279
      %v1295 = vpop.xlane.xlu0 %1294
      %1296 = vadd.xlane.f32.xlu0 %v1281
      %v1297 = vpop.xlane.xlu0 %1296
      %1298 = vadd.xlane.f32.xlu0 %v1283
      %v1299 = vpop.xlane.xlu0 %1298
      %1300 = vadd.xlane.f32.xlu0 %v1285
      %v1301 = vpop.xlane.xlu0 %1300
      %1302 = vadd.xlane.f32.xlu0 %v1287
      %v1303 = vpop.xlane.xlu0 %1302
      %1304 = vadd.xlane.f32.xlu0 %v1289
      %v1305 = vpop.xlane.xlu0 %1304
      %1306 = vadd.xlane.f32.xlu0 %v1291
      %v1307 = vpop.xlane.xlu0 %1306
      %1308 = vadd.xlane.f32.xlu0 %v1293
      %v1309 = vpop.xlane.xlu0 %1308
      %v1310 = vpack.c.bf16 %v1281, %v1279
      %v1311 = vpack.c.bf16 %v1285, %v1283
      %v1312 = vpack.c.bf16 %v1289, %v1287
      %v1313 = vpack.c.bf16 %v1293, %v1291
      %1314 = vrot.lane.b32.xlu0 %v718, 110
      %v1315 = vpop.permute.xlu0 %1314
      %1316 = vrot.lane.b32.xlu0 %v719, 110
      %v1317 = vpop.permute.xlu0 %1316
      %1318 = vrot.lane.b32.xlu0 %v720, 110
      %v1319 = vpop.permute.xlu0 %1318
      %1320 = vrot.lane.b32.xlu0 %v721, 110
      %v1321 = vpop.permute.xlu0 %1320
      %1322 = vrot.lane.b32.xlu0 %v1118, 110
      %v1323 = vpop.permute.xlu0 %1322
      %1324 = vrot.lane.b32.xlu0 %v1120, 110
      %v1325 = vpop.permute.xlu0 %1324
      %1326 = vrot.lane.b32.xlu0 %v1122, 110
      %v1327 = vpop.permute.xlu0 %1326
      %1328 = vrot.lane.b32.xlu0 %v1124, 110
      %v1329 = vpop.permute.xlu0 %1328
      %1338 = vmatprep.subr.bf16.mxu0 0
      %1339 = vmatpush1.bf16.msra.mxu0 %v1315
      %1340 = vmatprep.subr.bf16.mxu0 0
      %1341 = vmatpush1.bf16.msra.mxu0 %v1317
      %1342 = vmatprep.subr.bf16.mxu0 0
      %1343 = vmatpush1.bf16.msra.mxu0 %v1319
      %1344 = vmatprep.subr.bf16.mxu0 0
      %1345 = vmatpush1.bf16.msra.mxu0 %v1321
      %1346 = vmatprep.subr.bf16.mxu0 0
      %1347 = vmatpush1.bf16.msra.mxu0 %v1323
      %1348 = vmatprep.subr.bf16.mxu0 0
      %1349 = vmatpush1.bf16.msra.mxu0 %v1325
      %1350 = vmatprep.subr.bf16.mxu0 0
      %1351 = vmatpush1.bf16.msra.mxu0 %v1327
      %1352 = vmatprep.subr.bf16.mxu0 0
      %1353 = vmatpush1.bf16.msra.mxu0 %v1329
      %1354 = vmatprep.subr.bf16.mxu0 0
      %1355 = vmatpush1.bf16.msra.mxu0 0
      %1356 = vmatprep.subr.bf16.mxu0 0
      %1357 = vmatpush1.bf16.msra.mxu0 0
      %1358 = vmatprep.subr.bf16.mxu0 0
      %1359 = vmatpush1.bf16.msra.mxu0 0
      %1360 = vmatprep.subr.bf16.mxu0 0
      %1361 = vmatpush1.bf16.msra.mxu0 0
      %1362 = vmatprep.subr.bf16.mxu0 0
      %1363 = vmatpush1.bf16.msra.mxu0 0
      %1364 = vmatprep.subr.bf16.mxu0 0
      %1365 = vmatpush1.bf16.msra.mxu0 0
      %1366 = vmatprep.subr.bf16.mxu0 0
      %1367 = vmatpush1.bf16.msra.mxu0 0
      %1368 = vmatprep.subr.bf16.mxu0 0
      %1369 = vmatpush1.bf16.msra.mxu0 0
      %1370 = vmatprep.mubr.bf16.mxu0 0
      %1371 = vmatmul.mubr.bf16.gmra.mrb[0].mxu0 %v1310
      %v1372 = vpop.f32.mrb[0].mxu0
      %v1373 = vadd.f32 0.0, %v1372
      %v1374 = vpop.f32.mrb[0].mxu0
      %v1375 = vpop.f32.mrb[0].mxu0
      %v1376 = vadd.f32 0.0, %v1375
      %v1377 = vpop.f32.mrb[0].mxu0
      %1378 = vmatprep.mubr.bf16.mxu0 0
      %1379 = vmatmul.mubr.bf16.gmra.mrb[0].mxu0 %v1311
      %v1380 = vpop.f32.mrb[0].mxu0
      %v1381 = vadd.f32 0.0, %v1380
      %v1382 = vpop.f32.mrb[0].mxu0
      %v1383 = vpop.f32.mrb[0].mxu0
      %v1384 = vadd.f32 0.0, %v1383
      %v1385 = vpop.f32.mrb[0].mxu0
      %1386 = vmatprep.mubr.bf16.mxu0 0
      %1387 = vmatmul.mubr.bf16.gmra.mrb[0].mxu0 %v1312
      %v1388 = vpop.f32.mrb[0].mxu0
      %v1389 = vadd.f32 0.0, %v1388
      %v1390 = vpop.f32.mrb[0].mxu0
      %v1391 = vpop.f32.mrb[0].mxu0
      %v1392 = vadd.f32 0.0, %v1391
      %v1393 = vpop.f32.mrb[0].mxu0
      %1394 = vmatprep.mubr.bf16.mxu0 0
      %1395 = vmatmul.mubr.bf16.gmra.mrb[0].mxu0 %v1313
      %v1396 = vpop.f32.mrb[0].mxu0
      %v1397 = vadd.f32 0.0, %v1396
      %v1398 = vpop.f32.mrb[0].mxu0
      %v1399 = vpop.f32.mrb[0].mxu0
      %v1400 = vadd.f32 0.0, %v1399
      %v1401 = vpop.f32.mrb[0].mxu0
      %1402 = vdwg.mxu0
      %v1403 = vrcp.pop %v1295
      %v1404 = vrcp.pop %v1297
      %v1405 = vrcp.pop %v1299
      %v1406 = vrcp.pop %v1301
      %v1407 = vrcp.pop %v1303
      %v1408 = vrcp.pop %v1305
      %v1409 = vrcp.pop %v1307
      %v1410 = vrcp.pop %v1309
      %v1411 = vmul.f32 %v1373, %v1403
      %v1412 = vmul.f32 %v1376, %v1404
      %v1413 = vmul.f32 %v1381, %v1405
      %v1414 = vmul.f32 %v1384, %v1406
      %v1415 = vmul.f32 %v1389, %v1407
      %v1416 = vmul.f32 %v1392, %v1408
      %v1417 = vmul.f32 %v1397, %v1409
      %v1418 = vmul.f32 %v1400, %v1410
      %v1427 = vunpack.c.l.b16 %v669
      %v1428 = vunpack.c.l.b16 %v670
      %v1429 = vunpack.c.l.b16 %v671
      %v1430 = vunpack.c.l.b16 %v672
      %v1431 = vunpack.c.l.b16 %v673
      %v1432 = vunpack.c.l.b16 %v674
      %v1433 = vunpack.c.l.b16 %v675
      %v1434 = vunpack.c.l.b16 %v676
      %v1435 = vpack.c.b16 %v1428, %v1427
      %v1436 = vpack.c.b16 %v1430, %v1429
      %v1437 = vpack.c.b16 %v1432, %v1431
      %v1438 = vpack.c.b16 %v1434, %v1433
      %1439 = vrot.lane.b32.xlu0 %v1435, 12
      %v1440 = vpop.permute.xlu0 %1439
      %1441 = vrot.lane.b32.xlu0 %v1436, 12
      %v1442 = vpop.permute.xlu0 %1441
      %1443 = vrot.lane.b32.xlu0 %v1437, 12
      %v1444 = vpop.permute.xlu0 %1443
      %1445 = vrot.lane.b32.xlu0 %v1438, 12
      %v1446 = vpop.permute.xlu0 %1445
      %v1455 = vunpack.c.l.b16 %v701
      %v1456 = vunpack.c.l.b16 %v702
      %v1457 = vunpack.c.l.b16 %v703
      %v1458 = vunpack.c.l.b16 %v704
      %v1459 = vunpack.c.l.b16 %v705
      %v1460 = vunpack.c.l.b16 %v706
      %v1461 = vunpack.c.l.b16 %v707
      %v1462 = vunpack.c.l.b16 %v708
      %v1463 = vpack.c.b16 %v1456, %v1455
      %v1464 = vpack.c.b16 %v1458, %v1457
      %v1465 = vpack.c.b16 %v1460, %v1459
      %v1466 = vpack.c.b16 %v1462, %v1461
      %1467 = vrot.lane.b32.xlu0 %v1463, 20
      %v1468 = vpop.permute.xlu0 %1467
      %1469 = vrot.lane.b32.xlu0 %v1464, 20
      %v1470 = vpop.permute.xlu0 %1469
      %1471 = vrot.lane.b32.xlu0 %v1465, 20
      %v1472 = vpop.permute.xlu0 %1471
      %1473 = vrot.lane.b32.xlu0 %v1466, 20
      %v1474 = vpop.permute.xlu0 %1473
      %v1475 = vlaneseq
      %v1476 = vshrl.u32 %v1475, 7
      %v1477 = vsub.s32 2, %v1476
      %v1478 = vrot.slane %v717, %v1477
      %1479 = vrot.lane.b32.xlu0 %v718, 124
      %v1480 = vpop.permute.xlu0 %1479
      %1481 = vrot.lane.b32.xlu0 %v719, 124
      %v1482 = vpop.permute.xlu0 %1481
      %1483 = vrot.lane.b32.xlu0 %v720, 124
      %v1484 = vpop.permute.xlu0 %1483
      %1485 = vrot.lane.b32.xlu0 %v721, 124
      %v1486 = vpop.permute.xlu0 %1485
      %1487 = vrot.lane.b32.xlu0 %v718, 116
      %v1488 = vpop.permute.xlu0 %1487
      %1489 = vrot.lane.b32.xlu0 %v719, 116
      %v1490 = vpop.permute.xlu0 %1489
      %1491 = vrot.lane.b32.xlu0 %v720, 116
      %v1492 = vpop.permute.xlu0 %1491
      %1493 = vrot.lane.b32.xlu0 %v721, 116
      %v1494 = vpop.permute.xlu0 %1493
      %1495 = vrot.lane.b32.xlu0 %v1440, 116
      %v1496 = vpop.permute.xlu0 %1495
      %1497 = vrot.lane.b32.xlu0 %v1442, 116
      %v1498 = vpop.permute.xlu0 %1497
      %1499 = vrot.lane.b32.xlu0 %v1444, 116
      %v1500 = vpop.permute.xlu0 %1499
      %1501 = vrot.lane.b32.xlu0 %v1446, 116
      %v1502 = vpop.permute.xlu0 %1501
      %v1504 = vsel %vm802, %v1480, 0
      %v1507 = vsel %vm802, %v1482, 0
      %v1510 = vsel %vm802, %v1484, 0
      %v1513 = vsel %vm802, %v1486, 0
      %v1516 = vsel %vm802, %v1488, 0
      %v1519 = vsel %vm802, %v1490, 0
      %v1522 = vsel %vm802, %v1492, 0
      %v1525 = vsel %vm802, %v1494, 0
      %v1528 = vsel %vm802, %v1496, 0
      %v1531 = vsel %vm802, %v1498, 0
      %v1534 = vsel %vm802, %v1500, 0
      %v1537 = vsel %vm802, %v1502, 0
      %1539 = vmatprep.subr.bf16.mxu0 0
      %1540 = vmatpush1.bf16.xpose.msra.mxu0 %v1516
      %1541 = vmatprep.subr.bf16.mxu0 0
      %1542 = vmatpush1.bf16.xpose.msra.mxu0 %v1519
      %1543 = vmatprep.subr.bf16.mxu0 0
      %1544 = vmatpush1.bf16.xpose.msra.mxu0 %v1522
      %1545 = vmatprep.subr.bf16.mxu0 0
      %1546 = vmatpush1.bf16.xpose.msra.mxu0 %v1525
      %1547 = vmatprep.subr.bf16.mxu0 0
      %1548 = vmatpush1.bf16.xpose.msra.mxu0 %v1528
      %1549 = vmatprep.subr.bf16.mxu0 0
      %1550 = vmatpush1.bf16.xpose.msra.mxu0 %v1531
      %1551 = vmatprep.subr.bf16.mxu0 0
      %1552 = vmatpush1.bf16.xpose.msra.mxu0 %v1534
      %1553 = vmatprep.subr.bf16.mxu0 0
      %1554 = vmatpush1.bf16.xpose.msra.mxu0 %v1537
      %1555 = vmatprep.subr.bf16.mxu0 0
      %1556 = vmatpush1.bf16.xpose.msra.mxu0 0
      %1557 = vmatprep.subr.bf16.mxu0 0
      %1558 = vmatpush1.bf16.xpose.msra.mxu0 0
      %1559 = vmatprep.subr.bf16.mxu0 0
      %1560 = vmatpush1.bf16.xpose.msra.mxu0 0
      %1561 = vmatprep.subr.bf16.mxu0 0
      %1562 = vmatpush1.bf16.xpose.msra.mxu0 0
      %1563 = vmatprep.subr.bf16.mxu0 0
      %1564 = vmatpush1.bf16.xpose.msra.mxu0 0
      %1565 = vmatprep.subr.bf16.mxu0 0
      %1566 = vmatpush1.bf16.xpose.msra.mxu0 0
      %1567 = vmatprep.subr.bf16.mxu0 0
      %1568 = vmatpush1.bf16.xpose.msra.mxu0 0
      %1569 = vmatprep.subr.bf16.mxu0 0
      %1570 = vmatpush1.bf16.xpose.msra.mxu0 0
      %1571 = vmatprep.mubr.bf16.mxu0 0
      %1572 = vmatmul.mubr.bf16.gmra.mrb[0].mxu0 %v1504
      %v1573 = vpop.f32.mrb[0].mxu0
      %v1574 = vadd.f32 %v1478, %v1573
      %v1575 = vpop.f32.mrb[0].mxu0
      %v1576 = vpop.f32.mrb[0].mxu0
      %v1577 = vadd.f32 %v1478, %v1576
      %v1578 = vpop.f32.mrb[0].mxu0
      %1579 = vmatprep.mubr.bf16.mxu0 0
      %1580 = vmatmul.mubr.bf16.gmra.mrb[0].mxu0 %v1507
      %v1581 = vpop.f32.mrb[0].mxu0
      %v1582 = vadd.f32 %v1478, %v1581
      %v1583 = vpop.f32.mrb[0].mxu0
      %v1584 = vpop.f32.mrb[0].mxu0
      %v1585 = vadd.f32 %v1478, %v1584
      %v1586 = vpop.f32.mrb[0].mxu0
      %1587 = vmatprep.mubr.bf16.mxu0 0
      %1588 = vmatmul.mubr.bf16.gmra.mrb[0].mxu0 %v1510
      %v1589 = vpop.f32.mrb[0].mxu0
      %v1590 = vadd.f32 %v1478, %v1589
      %v1591 = vpop.f32.mrb[0].mxu0
      %v1592 = vpop.f32.mrb[0].mxu0
      %v1593 = vadd.f32 %v1478, %v1592
      %v1594 = vpop.f32.mrb[0].mxu0
      %1595 = vmatprep.mubr.bf16.mxu0 0
      %1596 = vmatmul.mubr.bf16.gmra.mrb[0].mxu0 %v1513
      %v1597 = vpop.f32.mrb[0].mxu0
      %v1598 = vadd.f32 %v1478, %v1597
      %v1599 = vpop.f32.mrb[0].mxu0
      %v1600 = vpop.f32.mrb[0].mxu0
      %v1601 = vadd.f32 %v1478, %v1600
      %v1602 = vpop.f32.mrb[0].mxu0
      %1603 = vdwg.mxu0
      %1604 = vmax.xlane.f32.xlu0 %v1574
      %v1605 = vpop.xlane.xlu0 %1604
      %1606 = vmax.xlane.f32.xlu0 %v1577
      %v1607 = vpop.xlane.xlu0 %1606
      %1608 = vmax.xlane.f32.xlu0 %v1582
      %v1609 = vpop.xlane.xlu0 %1608
      %1610 = vmax.xlane.f32.xlu0 %v1585
      %v1611 = vpop.xlane.xlu0 %1610
      %1612 = vmax.xlane.f32.xlu0 %v1590
      %v1613 = vpop.xlane.xlu0 %1612
      %1614 = vmax.xlane.f32.xlu0 %v1593
      %v1615 = vpop.xlane.xlu0 %1614
      %1616 = vmax.xlane.f32.xlu0 %v1598
      %v1617 = vpop.xlane.xlu0 %1616
      %1618 = vmax.xlane.f32.xlu0 %v1601
      %v1619 = vpop.xlane.xlu0 %1618
      %v1620 = vsub.f32 %v1574, %v1605
      %v1621 = vsub.f32 %v1577, %v1607
      %v1622 = vsub.f32 %v1582, %v1609
      %v1623 = vsub.f32 %v1585, %v1611
      %v1624 = vsub.f32 %v1590, %v1613
      %v1625 = vsub.f32 %v1593, %v1615
      %v1626 = vsub.f32 %v1598, %v1617
      %v1627 = vsub.f32 %v1601, %v1619
      %v1628 = vmul.f32 %v1620, 1.442695
      %v1629 = vpow.pop %v1628
      %v1630 = vmul.f32 %v1621, 1.442695
      %v1631 = vpow.pop %v1630
      %v1632 = vmul.f32 %v1622, 1.442695
      %v1633 = vpow.pop %v1632
      %v1634 = vmul.f32 %v1623, 1.442695
      %v1635 = vpow.pop %v1634
      %v1636 = vmul.f32 %v1624, 1.442695
      %v1637 = vpow.pop %v1636
      %v1638 = vmul.f32 %v1625, 1.442695
      %v1639 = vpow.pop %v1638
      %v1640 = vmul.f32 %v1626, 1.442695
      %v1641 = vpow.pop %v1640
      %v1642 = vmul.f32 %v1627, 1.442695
      %v1643 = vpow.pop %v1642
      %1644 = vadd.xlane.f32.xlu0 %v1629
      %v1645 = vpop.xlane.xlu0 %1644
      %1646 = vadd.xlane.f32.xlu0 %v1631
      %v1647 = vpop.xlane.xlu0 %1646
      %1648 = vadd.xlane.f32.xlu0 %v1633
      %v1649 = vpop.xlane.xlu0 %1648
      %1650 = vadd.xlane.f32.xlu0 %v1635
      %v1651 = vpop.xlane.xlu0 %1650
      %1652 = vadd.xlane.f32.xlu0 %v1637
      %v1653 = vpop.xlane.xlu0 %1652
      %1654 = vadd.xlane.f32.xlu0 %v1639
      %v1655 = vpop.xlane.xlu0 %1654
      %1656 = vadd.xlane.f32.xlu0 %v1641
      %v1657 = vpop.xlane.xlu0 %1656
      %1658 = vadd.xlane.f32.xlu0 %v1643
      %v1659 = vpop.xlane.xlu0 %1658
      %v1660 = vpack.c.bf16 %v1631, %v1629
      %v1661 = vpack.c.bf16 %v1635, %v1633
      %v1662 = vpack.c.bf16 %v1639, %v1637
      %v1663 = vpack.c.bf16 %v1643, %v1641
      %1664 = vrot.lane.b32.xlu0 %v718, 108
      %v1665 = vpop.permute.xlu0 %1664
      %1666 = vrot.lane.b32.xlu0 %v719, 108
      %v1667 = vpop.permute.xlu0 %1666
      %1668 = vrot.lane.b32.xlu0 %v720, 108
      %v1669 = vpop.permute.xlu0 %1668
      %1670 = vrot.lane.b32.xlu0 %v721, 108
      %v1671 = vpop.permute.xlu0 %1670
      %1672 = vrot.lane.b32.xlu0 %v1468, 108
      %v1673 = vpop.permute.xlu0 %1672
      %1674 = vrot.lane.b32.xlu0 %v1470, 108
      %v1675 = vpop.permute.xlu0 %1674
      %1676 = vrot.lane.b32.xlu0 %v1472, 108
      %v1677 = vpop.permute.xlu0 %1676
      %1678 = vrot.lane.b32.xlu0 %v1474, 108
      %v1679 = vpop.permute.xlu0 %1678
      %1688 = vmatprep.subr.bf16.mxu0 0
      %1689 = vmatpush1.bf16.msra.mxu0 %v1665
      %1690 = vmatprep.subr.bf16.mxu0 0
      %1691 = vmatpush1.bf16.msra.mxu0 %v1667
      %1692 = vmatprep.subr.bf16.mxu0 0
      %1693 = vmatpush1.bf16.msra.mxu0 %v1669
      %1694 = vmatprep.subr.bf16.mxu0 0
      %1695 = vmatpush1.bf16.msra.mxu0 %v1671
      %1696 = vmatprep.subr.bf16.mxu0 0
      %1697 = vmatpush1.bf16.msra.mxu0 %v1673
      %1698 = vmatprep.subr.bf16.mxu0 0
      %1699 = vmatpush1.bf16.msra.mxu0 %v1675
      %1700 = vmatprep.subr.bf16.mxu0 0
      %1701 = vmatpush1.bf16.msra.mxu0 %v1677
      %1702 = vmatprep.subr.bf16.mxu0 0
      %1703 = vmatpush1.bf16.msra.mxu0 %v1679
      %1704 = vmatprep.subr.bf16.mxu0 0
      %1705 = vmatpush1.bf16.msra.mxu0 0
      %1706 = vmatprep.subr.bf16.mxu0 0
      %1707 = vmatpush1.bf16.msra.mxu0 0
      %1708 = vmatprep.subr.bf16.mxu0 0
      %1709 = vmatpush1.bf16.msra.mxu0 0
      %1710 = vmatprep.subr.bf16.mxu0 0
      %1711 = vmatpush1.bf16.msra.mxu0 0
      %1712 = vmatprep.subr.bf16.mxu0 0
      %1713 = vmatpush1.bf16.msra.mxu0 0
      %1714 = vmatprep.subr.bf16.mxu0 0
      %1715 = vmatpush1.bf16.msra.mxu0 0
      %1716 = vmatprep.subr.bf16.mxu0 0
      %1717 = vmatpush1.bf16.msra.mxu0 0
      %1718 = vmatprep.subr.bf16.mxu0 0
      %1719 = vmatpush1.bf16.msra.mxu0 0
      %1720 = vmatprep.mubr.bf16.mxu0 0
      %1721 = vmatmul.mubr.bf16.gmra.mrb[0].mxu0 %v1660
      %v1722 = vpop.f32.mrb[0].mxu0
      %v1723 = vadd.f32 0.0, %v1722
      %v1724 = vpop.f32.mrb[0].mxu0
      %v1725 = vpop.f32.mrb[0].mxu0
      %v1726 = vadd.f32 0.0, %v1725
      %v1727 = vpop.f32.mrb[0].mxu0
      %1728 = vmatprep.mubr.bf16.mxu0 0
      %1729 = vmatmul.mubr.bf16.gmra.mrb[0].mxu0 %v1661
      %v1730 = vpop.f32.mrb[0].mxu0
      %v1731 = vadd.f32 0.0, %v1730
      %v1732 = vpop.f32.mrb[0].mxu0
      %v1733 = vpop.f32.mrb[0].mxu0
      %v1734 = vadd.f32 0.0, %v1733
      %v1735 = vpop.f32.mrb[0].mxu0
      %1736 = vmatprep.mubr.bf16.mxu0 0
      %1737 = vmatmul.mubr.bf16.gmra.mrb[0].mxu0 %v1662
      %v1738 = vpop.f32.mrb[0].mxu0
      %v1739 = vadd.f32 0.0, %v1738
      %v1740 = vpop.f32.mrb[0].mxu0
      %v1741 = vpop.f32.mrb[0].mxu0
      %v1742 = vadd.f32 0.0, %v1741
      %v1743 = vpop.f32.mrb[0].mxu0
      %1744 = vmatprep.mubr.bf16.mxu0 0
      %1745 = vmatmul.mubr.bf16.gmra.mrb[0].mxu0 %v1663
      %v1746 = vpop.f32.mrb[0].mxu0
      %v1747 = vadd.f32 0.0, %v1746
      %v1748 = vpop.f32.mrb[0].mxu0
      %v1749 = vpop.f32.mrb[0].mxu0
      %v1750 = vadd.f32 0.0, %v1749
      %v1751 = vpop.f32.mrb[0].mxu0
      %1752 = vdwg.mxu0
      %v1753 = vrcp.pop %v1645
      %v1754 = vrcp.pop %v1647
      %v1755 = vrcp.pop %v1649
      %v1756 = vrcp.pop %v1651
      %v1757 = vrcp.pop %v1653
      %v1758 = vrcp.pop %v1655
      %v1759 = vrcp.pop %v1657
      %v1760 = vrcp.pop %v1659
      %v1761 = vmul.f32 %v1723, %v1753
      %v1762 = vmul.f32 %v1726, %v1754
      %v1763 = vmul.f32 %v1731, %v1755
      %v1764 = vmul.f32 %v1734, %v1756
      %v1765 = vmul.f32 %v1739, %v1757
      %v1766 = vmul.f32 %v1742, %v1758
      %v1767 = vmul.f32 %v1747, %v1759
      %v1768 = vmul.f32 %v1750, %v1760
      %v1777 = vunpack.c.l.b16 %v677
      %v1778 = vunpack.c.l.b16 %v678
      %v1779 = vunpack.c.l.b16 %v679
      %v1780 = vunpack.c.l.b16 %v680
      %v1781 = vunpack.c.l.b16 %v681
      %v1782 = vunpack.c.l.b16 %v682
      %v1783 = vunpack.c.l.b16 %v683
      %v1784 = vunpack.c.l.b16 %v684
      %v1785 = vpack.c.b16 %v1778, %v1777
      %v1786 = vpack.c.b16 %v1780, %v1779
      %v1787 = vpack.c.b16 %v1782, %v1781
      %v1788 = vpack.c.b16 %v1784, %v1783
      %1789 = vrot.lane.b32.xlu0 %v1785, 14
      %v1790 = vpop.permute.xlu0 %1789
      %1791 = vrot.lane.b32.xlu0 %v1786, 14
      %v1792 = vpop.permute.xlu0 %1791
      %1793 = vrot.lane.b32.xlu0 %v1787, 14
      %v1794 = vpop.permute.xlu0 %1793
      %1795 = vrot.lane.b32.xlu0 %v1788, 14
      %v1796 = vpop.permute.xlu0 %1795
      %v1805 = vunpack.c.l.b16 %v709
      %v1806 = vunpack.c.l.b16 %v710
      %v1807 = vunpack.c.l.b16 %v711
      %v1808 = vunpack.c.l.b16 %v712
      %v1809 = vunpack.c.l.b16 %v713
      %v1810 = vunpack.c.l.b16 %v714
      %v1811 = vunpack.c.l.b16 %v715
      %v1812 = vunpack.c.l.b16 %v716
      %v1813 = vpack.c.b16 %v1806, %v1805
      %v1814 = vpack.c.b16 %v1808, %v1807
      %v1815 = vpack.c.b16 %v1810, %v1809
      %v1816 = vpack.c.b16 %v1812, %v1811
      %1817 = vrot.lane.b32.xlu0 %v1813, 22
      %v1818 = vpop.permute.xlu0 %1817
      %1819 = vrot.lane.b32.xlu0 %v1814, 22
      %v1820 = vpop.permute.xlu0 %1819
      %1821 = vrot.lane.b32.xlu0 %v1815, 22
      %v1822 = vpop.permute.xlu0 %1821
      %1823 = vrot.lane.b32.xlu0 %v1816, 22
      %v1824 = vpop.permute.xlu0 %1823
      %v1825 = vlaneseq
      %v1826 = vshrl.u32 %v1825, 7
      %v1827 = vsub.s32 3, %v1826
      %v1828 = vrot.slane %v717, %v1827
      %1829 = vrot.lane.b32.xlu0 %v718, 122
      %v1830 = vpop.permute.xlu0 %1829
      %1831 = vrot.lane.b32.xlu0 %v719, 122
      %v1832 = vpop.permute.xlu0 %1831
      %1833 = vrot.lane.b32.xlu0 %v720, 122
      %v1834 = vpop.permute.xlu0 %1833
      %1835 = vrot.lane.b32.xlu0 %v721, 122
      %v1836 = vpop.permute.xlu0 %1835
      %1837 = vrot.lane.b32.xlu0 %v718, 114
      %v1838 = vpop.permute.xlu0 %1837
      %1839 = vrot.lane.b32.xlu0 %v719, 114
      %v1840 = vpop.permute.xlu0 %1839
      %1841 = vrot.lane.b32.xlu0 %v720, 114
      %v1842 = vpop.permute.xlu0 %1841
      %1843 = vrot.lane.b32.xlu0 %v721, 114
      %v1844 = vpop.permute.xlu0 %1843
      %1845 = vrot.lane.b32.xlu0 %v1790, 114
      %v1846 = vpop.permute.xlu0 %1845
      %1847 = vrot.lane.b32.xlu0 %v1792, 114
      %v1848 = vpop.permute.xlu0 %1847
      %1849 = vrot.lane.b32.xlu0 %v1794, 114
      %v1850 = vpop.permute.xlu0 %1849
      %1851 = vrot.lane.b32.xlu0 %v1796, 114
      %v1852 = vpop.permute.xlu0 %1851
      %v1854 = vsel %vm802, %v1830, 0
      %v1857 = vsel %vm802, %v1832, 0
      %v1860 = vsel %vm802, %v1834, 0
      %v1863 = vsel %vm802, %v1836, 0
      %v1866 = vsel %vm802, %v1838, 0
      %v1869 = vsel %vm802, %v1840, 0
      %v1872 = vsel %vm802, %v1842, 0
      %v1875 = vsel %vm802, %v1844, 0
      %v1878 = vsel %vm802, %v1846, 0
      %v1881 = vsel %vm802, %v1848, 0
      %v1884 = vsel %vm802, %v1850, 0
      %v1887 = vsel %vm802, %v1852, 0
      %1889 = vmatprep.subr.bf16.mxu0 0
      %1890 = vmatpush1.bf16.xpose.msra.mxu0 %v1866
      %1891 = vmatprep.subr.bf16.mxu0 0
      %1892 = vmatpush1.bf16.xpose.msra.mxu0 %v1869
      %1893 = vmatprep.subr.bf16.mxu0 0
      %1894 = vmatpush1.bf16.xpose.msra.mxu0 %v1872
      %1895 = vmatprep.subr.bf16.mxu0 0
      %1896 = vmatpush1.bf16.xpose.msra.mxu0 %v1875
      %1897 = vmatprep.subr.bf16.mxu0 0
      %1898 = vmatpush1.bf16.xpose.msra.mxu0 %v1878
      %1899 = vmatprep.subr.bf16.mxu0 0
      %1900 = vmatpush1.bf16.xpose.msra.mxu0 %v1881
      %1901 = vmatprep.subr.bf16.mxu0 0
      %1902 = vmatpush1.bf16.xpose.msra.mxu0 %v1884
      %1903 = vmatprep.subr.bf16.mxu0 0
      %1904 = vmatpush1.bf16.xpose.msra.mxu0 %v1887
      %1905 = vmatprep.subr.bf16.mxu0 0
      %1906 = vmatpush1.bf16.xpose.msra.mxu0 0
      %1907 = vmatprep.subr.bf16.mxu0 0
      %1908 = vmatpush1.bf16.xpose.msra.mxu0 0
      %1909 = vmatprep.subr.bf16.mxu0 0
      %1910 = vmatpush1.bf16.xpose.msra.mxu0 0
      %1911 = vmatprep.subr.bf16.mxu0 0
      %1912 = vmatpush1.bf16.xpose.msra.mxu0 0
      %1913 = vmatprep.subr.bf16.mxu0 0
      %1914 = vmatpush1.bf16.xpose.msra.mxu0 0
      %1915 = vmatprep.subr.bf16.mxu0 0
      %1916 = vmatpush1.bf16.xpose.msra.mxu0 0
      %1917 = vmatprep.subr.bf16.mxu0 0
      %1918 = vmatpush1.bf16.xpose.msra.mxu0 0
      %1919 = vmatprep.subr.bf16.mxu0 0
      %1920 = vmatpush1.bf16.xpose.msra.mxu0 0
      %1921 = vmatprep.mubr.bf16.mxu0 0
      %1922 = vmatmul.mubr.bf16.gmra.mrb[0].mxu0 %v1854
      %v1923 = vpop.f32.mrb[0].mxu0
      %v1924 = vadd.f32 %v1828, %v1923
      %v1925 = vpop.f32.mrb[0].mxu0
      %v1926 = vpop.f32.mrb[0].mxu0
      %v1927 = vadd.f32 %v1828, %v1926
      %v1928 = vpop.f32.mrb[0].mxu0
      %1929 = vmatprep.mubr.bf16.mxu0 0
      %1930 = vmatmul.mubr.bf16.gmra.mrb[0].mxu0 %v1857
      %v1931 = vpop.f32.mrb[0].mxu0
      %v1932 = vadd.f32 %v1828, %v1931
      %v1933 = vpop.f32.mrb[0].mxu0
      %v1934 = vpop.f32.mrb[0].mxu0
      %v1935 = vadd.f32 %v1828, %v1934
      %v1936 = vpop.f32.mrb[0].mxu0
      %1937 = vmatprep.mubr.bf16.mxu0 0
      %1938 = vmatmul.mubr.bf16.gmra.mrb[0].mxu0 %v1860
      %v1939 = vpop.f32.mrb[0].mxu0
      %v1940 = vadd.f32 %v1828, %v1939
      %v1941 = vpop.f32.mrb[0].mxu0
      %v1942 = vpop.f32.mrb[0].mxu0
      %v1943 = vadd.f32 %v1828, %v1942
      %v1944 = vpop.f32.mrb[0].mxu0
      %1945 = vmatprep.mubr.bf16.mxu0 0
      %1946 = vmatmul.mubr.bf16.gmra.mrb[0].mxu0 %v1863
      %v1947 = vpop.f32.mrb[0].mxu0
      %v1948 = vadd.f32 %v1828, %v1947
      %v1949 = vpop.f32.mrb[0].mxu0
      %v1950 = vpop.f32.mrb[0].mxu0
      %v1951 = vadd.f32 %v1828, %v1950
      %v1952 = vpop.f32.mrb[0].mxu0
      %1953 = vdwg.mxu0
      %1954 = vmax.xlane.f32.xlu0 %v1924
      %v1955 = vpop.xlane.xlu0 %1954
      %1956 = vmax.xlane.f32.xlu0 %v1927
      %v1957 = vpop.xlane.xlu0 %1956
      %1958 = vmax.xlane.f32.xlu0 %v1932
      %v1959 = vpop.xlane.xlu0 %1958
      %1960 = vmax.xlane.f32.xlu0 %v1935
      %v1961 = vpop.xlane.xlu0 %1960
      %1962 = vmax.xlane.f32.xlu0 %v1940
      %v1963 = vpop.xlane.xlu0 %1962
      %1964 = vmax.xlane.f32.xlu0 %v1943
      %v1965 = vpop.xlane.xlu0 %1964
      %1966 = vmax.xlane.f32.xlu0 %v1948
      %v1967 = vpop.xlane.xlu0 %1966
      %1968 = vmax.xlane.f32.xlu0 %v1951
      %v1969 = vpop.xlane.xlu0 %1968
      %v1970 = vsub.f32 %v1924, %v1955
      %v1971 = vsub.f32 %v1927, %v1957
      %v1972 = vsub.f32 %v1932, %v1959
      %v1973 = vsub.f32 %v1935, %v1961
      %v1974 = vsub.f32 %v1940, %v1963
      %v1975 = vsub.f32 %v1943, %v1965
      %v1976 = vsub.f32 %v1948, %v1967
      %v1977 = vsub.f32 %v1951, %v1969
      %v1978 = vmul.f32 %v1970, 1.442695
      %v1979 = vpow.pop %v1978
      %v1980 = vmul.f32 %v1971, 1.442695
      %v1981 = vpow.pop %v1980
      %v1982 = vmul.f32 %v1972, 1.442695
      %v1983 = vpow.pop %v1982
      %v1984 = vmul.f32 %v1973, 1.442695
      %v1985 = vpow.pop %v1984
      %v1986 = vmul.f32 %v1974, 1.442695
      %v1987 = vpow.pop %v1986
      %v1988 = vmul.f32 %v1975, 1.442695
      %v1989 = vpow.pop %v1988
      %v1990 = vmul.f32 %v1976, 1.442695
      %v1991 = vpow.pop %v1990
      %v1992 = vmul.f32 %v1977, 1.442695
      %v1993 = vpow.pop %v1992
      %1994 = vadd.xlane.f32.xlu0 %v1979
      %v1995 = vpop.xlane.xlu0 %1994
      %1996 = vadd.xlane.f32.xlu0 %v1981
      %v1997 = vpop.xlane.xlu0 %1996
      %1998 = vadd.xlane.f32.xlu0 %v1983
      %v1999 = vpop.xlane.xlu0 %1998
      %2000 = vadd.xlane.f32.xlu0 %v1985
      %v2001 = vpop.xlane.xlu0 %2000
      %2002 = vadd.xlane.f32.xlu0 %v1987
      %v2003 = vpop.xlane.xlu0 %2002
      %2004 = vadd.xlane.f32.xlu0 %v1989
      %v2005 = vpop.xlane.xlu0 %2004
      %2006 = vadd.xlane.f32.xlu0 %v1991
      %v2007 = vpop.xlane.xlu0 %2006
      %2008 = vadd.xlane.f32.xlu0 %v1993
      %v2009 = vpop.xlane.xlu0 %2008
      %v2010 = vpack.c.bf16 %v1981, %v1979
      %v2011 = vpack.c.bf16 %v1985, %v1983
      %v2012 = vpack.c.bf16 %v1989, %v1987
      %v2013 = vpack.c.bf16 %v1993, %v1991
      %2014 = vrot.lane.b32.xlu0 %v718, 106
      %v2015 = vpop.permute.xlu0 %2014
      %2016 = vrot.lane.b32.xlu0 %v719, 106
      %v2017 = vpop.permute.xlu0 %2016
      %2018 = vrot.lane.b32.xlu0 %v720, 106
      %v2019 = vpop.permute.xlu0 %2018
      %2020 = vrot.lane.b32.xlu0 %v721, 106
      %v2021 = vpop.permute.xlu0 %2020
      %2022 = vrot.lane.b32.xlu0 %v1818, 106
      %v2023 = vpop.permute.xlu0 %2022
      %2024 = vrot.lane.b32.xlu0 %v1820, 106
      %v2025 = vpop.permute.xlu0 %2024
      %2026 = vrot.lane.b32.xlu0 %v1822, 106
      %v2027 = vpop.permute.xlu0 %2026
      %2028 = vrot.lane.b32.xlu0 %v1824, 106
      %v2029 = vpop.permute.xlu0 %2028
      %2038 = vmatprep.subr.bf16.mxu0 0
      %2039 = vmatpush1.bf16.msra.mxu0 %v2015
      %2040 = vmatprep.subr.bf16.mxu0 0
      %2041 = vmatpush1.bf16.msra.mxu0 %v2017
      %2042 = vmatprep.subr.bf16.mxu0 0
      %2043 = vmatpush1.bf16.msra.mxu0 %v2019
      %2044 = vmatprep.subr.bf16.mxu0 0
      %2045 = vmatpush1.bf16.msra.mxu0 %v2021
      %2046 = vmatprep.subr.bf16.mxu0 0
      %2047 = vmatpush1.bf16.msra.mxu0 %v2023
      %2048 = vmatprep.subr.bf16.mxu0 0
      %2049 = vmatpush1.bf16.msra.mxu0 %v2025
      %2050 = vmatprep.subr.bf16.mxu0 0
      %2051 = vmatpush1.bf16.msra.mxu0 %v2027
      %2052 = vmatprep.subr.bf16.mxu0 0
      %2053 = vmatpush1.bf16.msra.mxu0 %v2029
      %2054 = vmatprep.subr.bf16.mxu0 0
      %2055 = vmatpush1.bf16.msra.mxu0 0
      %2056 = vmatprep.subr.bf16.mxu0 0
      %2057 = vmatpush1.bf16.msra.mxu0 0
      %2058 = vmatprep.subr.bf16.mxu0 0
      %2059 = vmatpush1.bf16.msra.mxu0 0
      %2060 = vmatprep.subr.bf16.mxu0 0
      %2061 = vmatpush1.bf16.msra.mxu0 0
      %2062 = vmatprep.subr.bf16.mxu0 0
      %2063 = vmatpush1.bf16.msra.mxu0 0
      %2064 = vmatprep.subr.bf16.mxu0 0
      %2065 = vmatpush1.bf16.msra.mxu0 0
      %2066 = vmatprep.subr.bf16.mxu0 0
      %2067 = vmatpush1.bf16.msra.mxu0 0
      %2068 = vmatprep.subr.bf16.mxu0 0
      %2069 = vmatpush1.bf16.msra.mxu0 0
      %2070 = vmatprep.mubr.bf16.mxu0 0
      %2071 = vmatmul.mubr.bf16.gmra.mrb[0].mxu0 %v2010
      %v2072 = vpop.f32.mrb[0].mxu0
      %v2073 = vadd.f32 0.0, %v2072
      %v2074 = vpop.f32.mrb[0].mxu0
      %v2075 = vpop.f32.mrb[0].mxu0
      %v2076 = vadd.f32 0.0, %v2075
      %v2077 = vpop.f32.mrb[0].mxu0
      %2078 = vmatprep.mubr.bf16.mxu0 0
      %2079 = vmatmul.mubr.bf16.gmra.mrb[0].mxu0 %v2011
      %v2080 = vpop.f32.mrb[0].mxu0
      %v2081 = vadd.f32 0.0, %v2080
      %v2082 = vpop.f32.mrb[0].mxu0
      %v2083 = vpop.f32.mrb[0].mxu0
      %v2084 = vadd.f32 0.0, %v2083
      %v2085 = vpop.f32.mrb[0].mxu0
      %2086 = vmatprep.mubr.bf16.mxu0 0
      %2087 = vmatmul.mubr.bf16.gmra.mrb[0].mxu0 %v2012
      %v2088 = vpop.f32.mrb[0].mxu0
      %v2089 = vadd.f32 0.0, %v2088
      %v2090 = vpop.f32.mrb[0].mxu0
      %v2091 = vpop.f32.mrb[0].mxu0
      %v2092 = vadd.f32 0.0, %v2091
      %v2093 = vpop.f32.mrb[0].mxu0
      %2094 = vmatprep.mubr.bf16.mxu0 0
      %2095 = vmatmul.mubr.bf16.gmra.mrb[0].mxu0 %v2013
      %v2096 = vpop.f32.mrb[0].mxu0
      %v2097 = vadd.f32 0.0, %v2096
      %v2098 = vpop.f32.mrb[0].mxu0
      %v2099 = vpop.f32.mrb[0].mxu0
      %v2100 = vadd.f32 0.0, %v2099
      %v2101 = vpop.f32.mrb[0].mxu0
      %2102 = vdwg.mxu0
      %v2103 = vrcp.pop %v1995
      %v2104 = vrcp.pop %v1997
      %v2105 = vrcp.pop %v1999
      %v2106 = vrcp.pop %v2001
      %v2107 = vrcp.pop %v2003
      %v2108 = vrcp.pop %v2005
      %v2109 = vrcp.pop %v2007
      %v2110 = vrcp.pop %v2009
      %v2111 = vmul.f32 %v2073, %v2103
      %v2112 = vmul.f32 %v2076, %v2104
      %v2113 = vmul.f32 %v2081, %v2105
      %v2114 = vmul.f32 %v2084, %v2106
      %v2115 = vmul.f32 %v2089, %v2107
      %v2116 = vmul.f32 %v2092, %v2108
      %v2117 = vmul.f32 %v2097, %v2109
      %v2118 = vmul.f32 %v2100, %v2110
      %2127 = vrot.lane.b32.xlu0 %v1411, 2
      %v2128 = vpop.permute.xlu0 %2127
      %2129 = vrot.lane.b32.xlu0 %v1412, 2
      %v2130 = vpop.permute.xlu0 %2129
      %2131 = vrot.lane.b32.xlu0 %v1413, 2
      %v2132 = vpop.permute.xlu0 %2131
      %2133 = vrot.lane.b32.xlu0 %v1414, 2
      %v2134 = vpop.permute.xlu0 %2133
      %2135 = vrot.lane.b32.xlu0 %v1415, 2
      %v2136 = vpop.permute.xlu0 %2135
      %2137 = vrot.lane.b32.xlu0 %v1416, 2
      %v2138 = vpop.permute.xlu0 %2137
      %2139 = vrot.lane.b32.xlu0 %v1417, 2
      %v2140 = vpop.permute.xlu0 %2139
      %2141 = vrot.lane.b32.xlu0 %v1418, 2
      %v2142 = vpop.permute.xlu0 %2141
      %2159 = vrot.lane.b32.xlu0 %v1761, 4
      %v2160 = vpop.permute.xlu0 %2159
      %2161 = vrot.lane.b32.xlu0 %v1762, 4
      %v2162 = vpop.permute.xlu0 %2161
      %2163 = vrot.lane.b32.xlu0 %v1763, 4
      %v2164 = vpop.permute.xlu0 %2163
      %2165 = vrot.lane.b32.xlu0 %v1764, 4
      %v2166 = vpop.permute.xlu0 %2165
      %2167 = vrot.lane.b32.xlu0 %v1765, 4
      %v2168 = vpop.permute.xlu0 %2167
      %2169 = vrot.lane.b32.xlu0 %v1766, 4
      %v2170 = vpop.permute.xlu0 %2169
      %2171 = vrot.lane.b32.xlu0 %v1767, 4
      %v2172 = vpop.permute.xlu0 %2171
      %2173 = vrot.lane.b32.xlu0 %v1768, 4
      %v2174 = vpop.permute.xlu0 %2173
      %2191 = vrot.lane.b32.xlu0 %v2111, 6
      %v2192 = vpop.permute.xlu0 %2191
      %2193 = vrot.lane.b32.xlu0 %v2112, 6
      %v2194 = vpop.permute.xlu0 %2193
      %2195 = vrot.lane.b32.xlu0 %v2113, 6
      %v2196 = vpop.permute.xlu0 %2195
      %2197 = vrot.lane.b32.xlu0 %v2114, 6
      %v2198 = vpop.permute.xlu0 %2197
      %2199 = vrot.lane.b32.xlu0 %v2115, 6
      %v2200 = vpop.permute.xlu0 %2199
      %2201 = vrot.lane.b32.xlu0 %v2116, 6
      %v2202 = vpop.permute.xlu0 %2201
      %2203 = vrot.lane.b32.xlu0 %v2117, 6
      %v2204 = vpop.permute.xlu0 %2203
      %2205 = vrot.lane.b32.xlu0 %v2118, 6
      %v2206 = vpop.permute.xlu0 %2205
      %v2215 = vsel %vm802, %v1061, %v2128
      %v2216 = vsel %vm802, %v1062, %v2130
      %v2217 = vsel %vm802, %v1063, %v2132
      %v2218 = vsel %vm802, %v1064, %v2134
      %v2219 = vsel %vm802, %v1065, %v2136
      %v2220 = vsel %vm802, %v1066, %v2138
      %v2221 = vsel %vm802, %v1067, %v2140
      %v2222 = vsel %vm802, %v1068, %v2142
      %vm2223 = vcmask 31744
      %v2224 = vsel %vm2223, %v2215, %v2160
      %v2225 = vsel %vm2223, %v2216, %v2162
      %v2226 = vsel %vm2223, %v2217, %v2164
      %v2227 = vsel %vm2223, %v2218, %v2166
      %v2228 = vsel %vm2223, %v2219, %v2168
      %v2229 = vsel %vm2223, %v2220, %v2170
      %v2230 = vsel %vm2223, %v2221, %v2172
      %v2231 = vsel %vm2223, %v2222, %v2174
      %vm2232 = vcmask 48128
      %v2233 = vsel %vm2232, %v2224, %v2192
      %v2234 = vsel %vm2232, %v2225, %v2194
      %v2235 = vsel %vm2232, %v2226, %v2196
      %v2236 = vsel %vm2232, %v2227, %v2198
      %v2237 = vsel %vm2232, %v2228, %v2200
      %v2238 = vsel %vm2232, %v2229, %v2202
      %v2239 = vsel %vm2232, %v2230, %v2204
      %v2240 = vsel %vm2232, %v2231, %v2206
      %v2241 = vpack.c.bf16 %v2234, %v2233
      %v2242 = vpack.c.bf16 %v2236, %v2235
      %v2243 = vpack.c.bf16 %v2238, %v2237
      %v2244 = vpack.c.bf16 %v2240, %v2239
      %v2245 = vld [vmem:[%s9] sm:$0xf]
      %v2246 = vld [vmem:[%s10] sm:$0x1]
      %v2248 = vlaneseq
      %v2249 = vshrl.u32 %v2248, 7
      %v2250 = vsub.s32 0, %v2249
      %v2251 = vrot.slane %v2246, %v2250
      %v2254 = vsel %vm424, %v2241, 0
      %v2257 = vsel %vm424, %v2242, 0
      %v2260 = vsel %vm424, %v2243, 0
      %v2263 = vsel %vm424, %v2244, 0
      %v2266 = vsel %vm584, %v2245, 0
      %2268 = vmatprep.subr.bf16.mxu0 0
      %2269 = vmatpush1.bf16.msra.mxu0 %v2266
      %2270 = vmatprep.subr.bf16.mxu0 0
      %2271 = vmatpush1.bf16.msra.mxu0 0
      %2272 = vmatprep.subr.bf16.mxu0 0
      %2273 = vmatpush1.bf16.msra.mxu0 0
      %2274 = vmatprep.subr.bf16.mxu0 0
      %2275 = vmatpush1.bf16.msra.mxu0 0
      %2276 = vmatprep.subr.bf16.mxu0 0
      %2277 = vmatpush1.bf16.msra.mxu0 0
      %2278 = vmatprep.subr.bf16.mxu0 0
      %2279 = vmatpush1.bf16.msra.mxu0 0
      %2280 = vmatprep.subr.bf16.mxu0 0
      %2281 = vmatpush1.bf16.msra.mxu0 0
      %2282 = vmatprep.subr.bf16.mxu0 0
      %2283 = vmatpush1.bf16.msra.mxu0 0
      %2284 = vmatprep.subr.bf16.mxu0 0
      %2285 = vmatpush1.bf16.msra.mxu0 0
      %2286 = vmatprep.subr.bf16.mxu0 0
      %2287 = vmatpush1.bf16.msra.mxu0 0
      %2288 = vmatprep.subr.bf16.mxu0 0
      %2289 = vmatpush1.bf16.msra.mxu0 0
      %2290 = vmatprep.subr.bf16.mxu0 0
      %2291 = vmatpush1.bf16.msra.mxu0 0
      %2292 = vmatprep.subr.bf16.mxu0 0
      %2293 = vmatpush1.bf16.msra.mxu0 0
      %2294 = vmatprep.subr.bf16.mxu0 0
      %2295 = vmatpush1.bf16.msra.mxu0 0
      %2296 = vmatprep.subr.bf16.mxu0 0
      %2297 = vmatpush1.bf16.msra.mxu0 0
      %2298 = vmatprep.subr.bf16.mxu0 0
      %2299 = vmatpush1.bf16.msra.mxu0 0
      %2300 = vmatprep.mubr.bf16.mxu0 0
      %2301 = vmatmul.mubr.bf16.gmra.mrb[0].mxu0 %v2254
      %v2302 = vpop.f32.mrb[0].mxu0
      %v2303 = vadd.f32 %v2251, %v2302
      %v2304 = vpop.f32.mrb[0].mxu0
      %v2305 = vpop.f32.mrb[0].mxu0
      %v2306 = vadd.f32 %v2251, %v2305
      %v2307 = vpop.f32.mrb[0].mxu0
      %2308 = vmatprep.mubr.bf16.mxu0 0
      %2309 = vmatmul.mubr.bf16.gmra.mrb[0].mxu0 %v2257
      %v2310 = vpop.f32.mrb[0].mxu0
      %v2311 = vadd.f32 %v2251, %v2310
      %v2312 = vpop.f32.mrb[0].mxu0
      %v2313 = vpop.f32.mrb[0].mxu0
      %v2314 = vadd.f32 %v2251, %v2313
      %v2315 = vpop.f32.mrb[0].mxu0
      %2316 = vmatprep.mubr.bf16.mxu0 0
      %2317 = vmatmul.mubr.bf16.gmra.mrb[0].mxu0 %v2260
      %v2318 = vpop.f32.mrb[0].mxu0
      %v2319 = vadd.f32 %v2251, %v2318
      %v2320 = vpop.f32.mrb[0].mxu0
      %v2321 = vpop.f32.mrb[0].mxu0
      %v2322 = vadd.f32 %v2251, %v2321
      %v2323 = vpop.f32.mrb[0].mxu0
      %2324 = vmatprep.mubr.bf16.mxu0 0
      %2325 = vmatmul.mubr.bf16.gmra.mrb[0].mxu0 %v2263
      %v2326 = vpop.f32.mrb[0].mxu0
      %v2327 = vadd.f32 %v2251, %v2326
      %v2328 = vpop.f32.mrb[0].mxu0
      %v2329 = vpop.f32.mrb[0].mxu0
      %v2330 = vadd.f32 %v2251, %v2329
      %v2331 = vpop.f32.mrb[0].mxu0
      %2332 = vdwg.mxu0
      %v2333 = vadd.f32 %v2303, %v416
      %v2334 = vadd.f32 %v2306, %v417
      %v2335 = vadd.f32 %v2311, %v418
      %v2336 = vadd.f32 %v2314, %v419
      %v2337 = vadd.f32 %v2319, %v420
      %v2338 = vadd.f32 %v2322, %v421
      %v2339 = vadd.f32 %v2327, %v422
      %v2340 = vadd.f32 %v2330, %v423
      %v2341 = vld [vmem:[%s401] sm:$0xf]
      %v2342 = vld [vmem:[%s401 + $0x4] sm:$0xf]
      %v2343 = vld [vmem:[%s401 + $0x8] sm:$0xf]
      %v2344 = vld [vmem:[%s401 + $0xc] sm:$0xf]
      %v2345 = vld [vmem:[%s401 + $0x10] sm:$0xf]
      %v2346 = vld [vmem:[%s401 + $0x14] sm:$0xf]
      %v2347 = vld [vmem:[%s401 + $0x18] sm:$0xf]
      %v2348 = vld [vmem:[%s401 + $0x1c] sm:$0xf]
      %v2349 = vunpack.c.l.bf16 %v2341
      %v2350 = vunpack.c.l.bf16 %v2342
      %v2351 = vunpack.c.l.bf16 %v2343
      %v2352 = vunpack.c.l.bf16 %v2344
      %v2353 = vunpack.c.l.bf16 %v2345
      %v2354 = vunpack.c.l.bf16 %v2346
      %v2355 = vunpack.c.l.bf16 %v2347
      %v2356 = vunpack.c.l.bf16 %v2348
      %v2357 = vadd.f32 %v2333, %v2349
      %v2358 = vadd.f32 %v2334, %v2350
      %v2359 = vadd.f32 %v2335, %v2351
      %v2360 = vadd.f32 %v2336, %v2352
      %v2361 = vadd.f32 %v2337, %v2353
      %v2362 = vadd.f32 %v2338, %v2354
      %v2363 = vadd.f32 %v2339, %v2355
      %v2364 = vadd.f32 %v2340, %v2356
      %2365 = vst.msk [vmem:[%s406] sm:$0xff] %vm424, %v2357
      %2366 = vst.msk [vmem:[%s406 + $0x8] sm:$0xff] %vm424, %v2358
      %2367 = vst.msk [vmem:[%s406 + $0x10] sm:$0xff] %vm424, %v2359
      %2368 = vst.msk [vmem:[%s406 + $0x18] sm:$0xff] %vm424, %v2360
      %2369 = vst.msk [vmem:[%s406 + $0x20] sm:$0xff] %vm424, %v2361
      %2370 = vst.msk [vmem:[%s406 + $0x28] sm:$0xff] %vm424, %v2362
      %2371 = vst.msk [vmem:[%s406 + $0x30] sm:$0xff] %vm424, %v2363
      %2372 = vst.msk [vmem:[%s406 + $0x38] sm:$0xff] %vm424, %v2364
      %p2373 = scmp.lt.s32.totalorder %s22, 1
      %s2374 = scalar_select %p2373, %s22, 1
      %s2375 = smul.addr %s2374, 8
      %s2376 = smul.addr %s2375, 8
      %s2377 = scalar_lea.vmem %s11, %s2376
      // Predicated region
      $region65: #{deep_sia_res_block_forward.3} parent=63 // pred_check
        %p2378 = pneg %p281
      $region66: #{deep_sia_res_block_forward.3} parent=63 // pred_check_branch
        %2380 = sbr.rel (%p2378) target = $region68
      $region67: #{deep_sia_res_block_forward.3} parent=63 // pred_region
        _
      $region68: #{deep_sia_res_block_forward.3} parent=63 // pred_fallthru
        _
    $region64: #{deep_sia_res_block_forward.3} parent=5 // pred_fallthru
      _
    %p2381 = scmp.le.s32.totalorder 2, %s17
    // Predicated region
    $region69: #{deep_sia_res_block_forward.3} parent=5 // pred_check
      %p2382 = pneg %p2381
    $region70: #{deep_sia_res_block_forward.3} parent=5 // pred_check_branch
      %2384 = sbr.rel (%p2382) target = $region72
    $region71: #{deep_sia_res_block_forward.3} parent=5 // pred_region
      %s2385 = ssub.s32 %s17, 2
      // Predicated region
      $region73: #{deep_sia_res_block_forward.3} parent=71 // pred_check
        %p2386 = pneg %p287
      $region74: #{deep_sia_res_block_forward.3} parent=71 // pred_check_branch
        %2388 = sbr.rel (%p2386) target = $region76
      $region75: #{deep_sia_res_block_forward.3} parent=71 // pred_region
        %p2389 = scmp.lt.s32.totalorder %s23, 1
        %s2390 = scalar_select %p2389, %s23, 1
        %s2391 = smul.addr %s2390, 8
        %s2392 = smul.addr %s2391, 8
        %s2393 = scalar_lea.vmem %s11, %s2392
      $region76: #{deep_sia_res_block_forward.3} parent=71 // pred_fallthru
        _
    $region72: #{deep_sia_res_block_forward.3} parent=5 // pred_fallthru
      _
  $region6: #{deep_sia_res_block_forward.3} parent=0 // loop_footer
    %s21 = sadd.s32 1, %s17
  $region7: #{deep_sia_res_block_forward.3} parent=0 // loop_footer_branch
    %16 = sbr.rel target = $region3
  $region8: #{deep_sia_res_block_forward.3} parent=0 // loop_exit
    _

</llo_original>
